<compile_context>
chip_gen: v7x
topology: tpu7x:2x2x1
jax: 0.10.0
libtpu: 0.0.40
codegen_flags: <defaults>
</compile_context>

<pallas_src>
import jax
import jax.numpy as jnp
from jax import lax
from jax.experimental import pallas as pl
from jax.experimental.pallas import tpu as pltpu

EPS = 1e-5
_VMEM = pl.BlockSpec(memory_space=pltpu.MemorySpace.VMEM)

# conv2 / pooling geometry (fixed 5x5 -> 2x2 -> 1x1)
_POS = ((0, 0), (0, 1), (1, 0), (1, 1))                   # 2x2 positions, row-major
# MaxPool2d(2) on the virtual-width-7 conv1 map: flat spatial index s = y*7 + x.
# Pooled output position (oy,ox) reads s = (2oy+i)*7 + (2ox+j), i,j in {0,1}.
_POOL1 = ((0, 1, 7, 8), (2, 3, 9, 10), (14, 15, 21, 22), (16, 17, 23, 24))


# -----------------------------------------------------------------------------
# Fused kernel:
#   conv1 + BN + ReLU + MaxPool(2)  ->  conv2 + BN + ReLU + MaxPool(2)
#   -> fc1 + ReLU -> fc2 -> sigmoid
# -----------------------------------------------------------------------------
def _relation_net_kernel(xp_ref, w_ref, sp_ref, fcw_ref, out_ref):
    N = out_ref.shape[0]

    # Small per-channel parameter slab (8, 64): one row per parameter vector.
    b1 = sp_ref[0:1, :]
    g1 = sp_ref[1:2, :]
    be1 = sp_ref[2:3, :]
    b2 = sp_ref[3:4, :]
    g2 = sp_ref[4:5, :]
    be2 = sp_ref[5:6, :]
    fc1b = sp_ref[6:7, 0:8]
    fc2b = sp_ref[7:8, 0:1]

    # ---- block 1: conv1 as 9 tap matmuls over contiguous 35N-row windows -------
    # xp rows are spatial-major over the zero-padded 7x7 map (row = p*N + n,
    # p = py*7 + px, plus 2 appended zero rows).  Output row f*N + n holds the
    # conv result at spatial f = y*7 + x (x = 5,6 are junk, never read).
    y1 = None
    for t in range(9):                                     # tap t = dy*3 + dx
        off = (t // 3) * 7 + (t % 3)                       # dy*7 + dx
        xt = xp_ref[off * N:(off + 35) * N, :]             # (35N, 128) static slice
        wt = w_ref[t * 128:(t + 1) * 128, :]               # (128, 64)
        c = jnp.dot(xt, wt, preferred_element_type=jnp.float32)
        y1 = c if y1 is None else y1 + c
    y1 = y1 + b1                                           # (35N, 64)

    # BatchNorm over the 25 valid spatial positions (x in 0..4 of each row y).
    cnt1 = float(25 * N)
    s1 = None
    for r in range(5):
        blk = jnp.sum(y1[(r * 7) * N:(r * 7 + 5) * N, :], axis=0, keepdims=True)
        s1 = blk if s1 is None else s1 + blk
    mean1 = s1 * (1.0 / cnt1)
    d1 = y1 - mean1
    v1 = None
    for r in range(5):
        dblk = d1[(r * 7) * N:(r * 7 + 5) * N, :]
        blk = jnp.sum(dblk * dblk, axis=0, keepdims=True)
        v1 = blk if v1 is None else v1 + blk
    var1 = v1 * (1.0 / cnt1)                               # biased variance
    z1 = jnp.maximum(d1 * lax.rsqrt(var1 + EPS) * g1 + be1, 0.0)

    # MaxPool2d(2): 5x5 -> 2x2 (floor).  Spatial position s is the contiguous
    # (N, 64) row slab z1[s*N:(s+1)*N]; concatenate the 4 pooled positions on lanes.
    def slab(s):
        return z1[s * N:(s + 1) * N, :]

    pooled = jnp.concatenate(
        [jnp.maximum(jnp.maximum(slab(a), slab(b)), jnp.maximum(slab(c), slab(d)))
         for (a, b, c, d) in _POOL1], axis=1)              # (N, 256)

    # ---- block 2: conv2 (3x3, pad 1 on 2x2) as 4 block matmuls ------------------
    cols = []
    for o in range(4):                                     # output position o
        w2o = w_ref[1152 + o * 256:1152 + (o + 1) * 256, :]  # (256, 64)
        cols.append(jnp.dot(pooled, w2o, preferred_element_type=jnp.float32) + b2)
    cnt2 = float(4 * N)
    mean2 = jnp.sum(cols[0] + cols[1] + cols[2] + cols[3],
                    axis=0, keepdims=True) * (1.0 / cnt2)
    d2 = [c - mean2 for c in cols]
    var2 = jnp.sum(d2[0] * d2[0] + d2[1] * d2[1] + d2[2] * d2[2] + d2[3] * d2[3],
                   axis=0, keepdims=True) * (1.0 / cnt2)
    inv2 = lax.rsqrt(var2 + EPS)
    z2 = [jnp.maximum(d * inv2 * g2 + be2, 0.0) for d in d2]
    # MaxPool2d(2) on 2x2 -> 1x1: max over the 4 conv2 output positions.
    feat = jnp.maximum(jnp.maximum(z2[0], z2[1]), jnp.maximum(z2[2], z2[3]))  # (N,64)

    # ---- head: fc1 + ReLU + fc2 + sigmoid ---------------------------------------
    fc1w = fcw_ref[0:64, :]                                # (64, 8)
    fc2w = fcw_ref[64:72, 0:1]                             # (8, 1)
    h = jnp.maximum(jnp.dot(feat, fc1w,
                            preferred_element_type=jnp.float32) + fc1b, 0.0)
    o = jnp.dot(h, fc2w, preferred_element_type=jnp.float32) + fc2b
    out_ref[...] = 1.0 / (1.0 + jnp.exp(-o))


# -----------------------------------------------------------------------------
# One-time weight packing (NOT on the per-call forward path).
# -----------------------------------------------------------------------------
def pack_params(params):
    # conv1: (cout=64, cin=128, 3, 3) OIHW -> tap-major (9*128, 64), tap t = dy*3+dx.
    w1p = jnp.transpose(params["w1"], (2, 3, 1, 0)).reshape(9 * 128, 64)
    # conv2 on the 2x2 pooled map: one (256, 64) tap-selection block per output
    # position; rows ordered by pooled-input position in _POS order.
    w2taps = jnp.transpose(params["w2"], (2, 3, 1, 0)).reshape(9, 64, 64)
    w2blocks = []
    for (oy, ox) in _POS:
        rows = [w2taps[(ky - oy + 1) * 3 + (kx - ox + 1)] for (ky, kx) in _POS]
        w2blocks.append(jnp.concatenate(rows, axis=0))     # (256, 64)
    wcat = jnp.concatenate([w1p] + w2blocks, axis=0)       # (2176, 64)

    small = jnp.zeros((8, 64), jnp.float32)
    small = small.at[0, :].set(params["b1"])
    small = small.at[1, :].set(params["g1"])
    small = small.at[2, :].set(params["be1"])
    small = small.at[3, :].set(params["b2"])
    small = small.at[4, :].set(params["g2"])
    small = small.at[5, :].set(params["be2"])
    small = small.at[6, 0:8].set(params["fc1b"])
    small = small.at[7, 0:1].set(params["fc2b"])

    fcw = jnp.zeros((72, 8), jnp.float32)
    fcw = fcw.at[0:64, :].set(params["fc1w"].T)            # (64, 8)
    fcw = fcw.at[64:72, 0:1].set(params["fc2w"].T)         # (8, 1)
    return {"w": wcat, "small": small, "fcw": fcw}


# -----------------------------------------------------------------------------
# Forward wrapper: minimal layout glue (pad + spatial-major transpose) + kernel.
# -----------------------------------------------------------------------------
def relation_net_forward(packed, x_nchw):
    N = x_nchw.shape[0]
    x = jnp.transpose(x_nchw, (0, 2, 3, 1)).astype(jnp.float32)     # NCHW -> NHWC
    xp = jnp.pad(x, ((0, 0), (1, 1), (1, 1), (0, 0)))               # (N, 7, 7, 128)
    # Spatial-major rows: row = (py*7 + px)*N + n; append 2*N zero rows so every
    # conv1 tap reads one contiguous 35*N-row window.
    xp = jnp.transpose(xp, (1, 2, 0, 3)).reshape(49 * N, 128)
    xp = jnp.pad(xp, ((0, 2 * N), (0, 0)))                          # (51N, 128)

    return pl.pallas_call(
        _relation_net_kernel,
        out_shape=jax.ShapeDtypeStruct((N, 1), jnp.float32),
        in_specs=[_VMEM] * 4,
        out_specs=_VMEM,
    )(xp, packed["w"], packed["small"], packed["fcw"])


# -----------------------------------------------------------------------------
# Pure-JAX reference (NCHW, mirrors the PyTorch forward) for verification
# -----------------------------------------------------------------------------
def _ref_forward(params, x_nchw):
    def conv_bn_relu_pool(x, w, b, g, be):
        y = lax.conv_general_dilated(x, w, (1, 1), ((1, 1), (1, 1)),
                                     dimension_numbers=("NCHW", "OIHW", "NCHW"))
        y = y + b[None, :, None, None]
        mean = jnp.mean(y, axis=(0, 2, 3), keepdims=True)
        var = jnp.mean((y - mean) ** 2, axis=(0, 2, 3), keepdims=True)
        y = (y - mean) * lax.rsqrt(var + EPS) * g[None, :, None, None] + be[None, :, None, None]
        y = jnp.maximum(y, 0.0)
        N, C, H, W = y.shape
        Ho, Wo = H // 2, W // 2
        y = y[:, :, :Ho * 2, :Wo * 2].reshape(N, C, Ho, 2, Wo, 2)
        return jnp.max(y, axis=(3, 5))

    o1 = conv_bn_relu_pool(x_nchw, params["w1"], params["b1"], params["g1"], params["be1"])
    o2 = conv_bn_relu_pool(o1, params["w2"], params["b2"], params["g2"], params["be2"])
    f = o2.reshape(o2.shape[0], -1)
    h = jnp.maximum(f @ params["fc1w"].T + params["fc1b"], 0.0)
    return jax.nn.sigmoid(h @ params["fc2w"].T + params["fc2b"])


def init_params(key):
    ks = jax.random.split(key, 10)
    sc = 0.05
    return {
        "w1": jax.random.normal(ks[0], (64, 128, 3, 3), jnp.float32) * sc,
        "b1": jax.random.normal(ks[1], (64,), jnp.float32) * sc,
        "g1": 1.0 + 0.1 * jax.random.normal(ks[2], (64,), jnp.float32),
        "be1": 0.1 * jax.random.normal(ks[3], (64,), jnp.float32),
        "w2": jax.random.normal(ks[4], (64, 64, 3, 3), jnp.float32) * sc,
        "b2": jax.random.normal(ks[5], (64,), jnp.float32) * sc,
        "g2": 1.0 + 0.1 * jax.random.normal(ks[6], (64,), jnp.float32),
        "be2": 0.1 * jax.random.normal(ks[7], (64,), jnp.float32),
        "fc1w": jax.random.normal(ks[8], (8, 64), jnp.float32) * sc,
        "fc1b": jnp.zeros((8,), jnp.float32),
        "fc2w": jax.random.normal(ks[9], (1, 8), jnp.float32) * sc,
        "fc2b": jnp.zeros((1,), jnp.float32),
    }


if __name__ == "__main__":
    key = jax.random.PRNGKey(0)
    pkey, xkey = jax.random.split(key)
    params = init_params(pkey)
    packed = pack_params(params)          # one-time packing, off the forward path

    # way * batch = 4 * 2 = 8 samples, concatenated feature maps (64*2, 5, 5)
    x = jax.random.normal(xkey, (8, 128, 5, 5), jnp.float32)

    fwd = jax.jit(relation_net_forward)
    out = jax.block_until_ready(fwd(packed, x))
    assert out.shape == (8, 1), out.shape

    ref = jax.block_until_ready(jax.jit(_ref_forward)(params, x))
    assert jnp.max(jnp.abs(out - ref)) < 1e-4, float(jnp.max(jnp.abs(out - ref)))

    print("KERNEL_OK")
</pallas_src>

<mosaic_0001>
module attributes {stable_mosaic.version = 11 : i64} {
  func.func @_relation_net_kernel(%arg0: memref<408x128xf32, #tpu.memory_space<vmem>>, %arg1: memref<2176x64xf32, #tpu.memory_space<vmem>>, %arg2: memref<8x64xf32, #tpu.memory_space<vmem>>, %arg3: memref<72x8xf32, #tpu.memory_space<vmem>>, %arg4: memref<8x1xf32, #tpu.memory_space<vmem>>) attributes {dimension_semantics = [], scalar_prefetch = 0 : i64, scratch_operands = 0 : i64, tpu.core_type = #tpu.core_type<tc>} {
    %c0 = arith.constant 0 : index
    %c0_0 = arith.constant 0 : index
    %0 = vector.load %arg2[%c0, %c0_0] : memref<8x64xf32, #tpu.memory_space<vmem>>, vector<1x64xf32>
    %c1 = arith.constant 1 : index
    %c0_1 = arith.constant 0 : index
    %1 = vector.load %arg2[%c1, %c0_1] : memref<8x64xf32, #tpu.memory_space<vmem>>, vector<1x64xf32>
    %c2 = arith.constant 2 : index
    %c0_2 = arith.constant 0 : index
    %2 = vector.load %arg2[%c2, %c0_2] : memref<8x64xf32, #tpu.memory_space<vmem>>, vector<1x64xf32>
    %c3 = arith.constant 3 : index
    %c0_3 = arith.constant 0 : index
    %3 = vector.load %arg2[%c3, %c0_3] : memref<8x64xf32, #tpu.memory_space<vmem>>, vector<1x64xf32>
    %c4 = arith.constant 4 : index
    %c0_4 = arith.constant 0 : index
    %4 = vector.load %arg2[%c4, %c0_4] : memref<8x64xf32, #tpu.memory_space<vmem>>, vector<1x64xf32>
    %c5 = arith.constant 5 : index
    %c0_5 = arith.constant 0 : index
    %5 = vector.load %arg2[%c5, %c0_5] : memref<8x64xf32, #tpu.memory_space<vmem>>, vector<1x64xf32>
    %c6 = arith.constant 6 : index
    %c0_6 = arith.constant 0 : index
    %6 = vector.load %arg2[%c6, %c0_6] : memref<8x64xf32, #tpu.memory_space<vmem>>, vector<1x8xf32>
    %c7 = arith.constant 7 : index
    %c0_7 = arith.constant 0 : index
    %7 = vector.load %arg2[%c7, %c0_7] : memref<8x64xf32, #tpu.memory_space<vmem>>, vector<1x1xf32>
    %c0_8 = arith.constant 0 : index
    %c0_9 = arith.constant 0 : index
    %8 = vector.load %arg0[%c0_8, %c0_9] : memref<408x128xf32, #tpu.memory_space<vmem>>, vector<280x128xf32>
    %c0_10 = arith.constant 0 : index
    %c0_11 = arith.constant 0 : index
    %9 = vector.load %arg1[%c0_10, %c0_11] : memref<2176x64xf32, #tpu.memory_space<vmem>>, vector<128x64xf32>
    %cst = arith.constant dense<0.000000e+00> : vector<280x64xf32>
    %10 = tpu.matmul %8, %9, %cst {dimension_numbers = #tpu.dot_dimension_numbers<[1], [0], [0], [1], [0, 0, 1, 1], [], []>} : vector<280x128xf32>, vector<128x64xf32>, vector<280x64xf32> -> vector<280x64xf32>
    %c8 = arith.constant 8 : index
    %c0_12 = arith.constant 0 : index
    %11 = vector.load %arg0[%c8, %c0_12] : memref<408x128xf32, #tpu.memory_space<vmem>>, vector<280x128xf32>
    %c128 = arith.constant 128 : index
    %c0_13 = arith.constant 0 : index
    %12 = vector.load %arg1[%c128, %c0_13] : memref<2176x64xf32, #tpu.memory_space<vmem>>, vector<128x64xf32>
    %cst_14 = arith.constant dense<0.000000e+00> : vector<280x64xf32>
    %13 = tpu.matmul %11, %12, %cst_14 {dimension_numbers = #tpu.dot_dimension_numbers<[1], [0], [0], [1], [0, 0, 1, 1], [], []>} : vector<280x128xf32>, vector<128x64xf32>, vector<280x64xf32> -> vector<280x64xf32>
    %14 = arith.addf %10, %13 : vector<280x64xf32>
    %c16 = arith.constant 16 : index
    %c0_15 = arith.constant 0 : index
    %15 = vector.load %arg0[%c16, %c0_15] : memref<408x128xf32, #tpu.memory_space<vmem>>, vector<280x128xf32>
    %c256 = arith.constant 256 : index
    %c0_16 = arith.constant 0 : index
    %16 = vector.load %arg1[%c256, %c0_16] : memref<2176x64xf32, #tpu.memory_space<vmem>>, vector<128x64xf32>
    %cst_17 = arith.constant dense<0.000000e+00> : vector<280x64xf32>
    %17 = tpu.matmul %15, %16, %cst_17 {dimension_numbers = #tpu.dot_dimension_numbers<[1], [0], [0], [1], [0, 0, 1, 1], [], []>} : vector<280x128xf32>, vector<128x64xf32>, vector<280x64xf32> -> vector<280x64xf32>
    %18 = arith.addf %14, %17 : vector<280x64xf32>
    %c56 = arith.constant 56 : index
    %c0_18 = arith.constant 0 : index
    %19 = vector.load %arg0[%c56, %c0_18] : memref<408x128xf32, #tpu.memory_space<vmem>>, vector<280x128xf32>
    %c384 = arith.constant 384 : index
    %c0_19 = arith.constant 0 : index
    %20 = vector.load %arg1[%c384, %c0_19] : memref<2176x64xf32, #tpu.memory_space<vmem>>, vector<128x64xf32>
    %cst_20 = arith.constant dense<0.000000e+00> : vector<280x64xf32>
    %21 = tpu.matmul %19, %20, %cst_20 {dimension_numbers = #tpu.dot_dimension_numbers<[1], [0], [0], [1], [0, 0, 1, 1], [], []>} : vector<280x128xf32>, vector<128x64xf32>, vector<280x64xf32> -> vector<280x64xf32>
    %22 = arith.addf %18, %21 : vector<280x64xf32>
    %c64 = arith.constant 64 : index
    %c0_21 = arith.constant 0 : index
    %23 = vector.load %arg0[%c64, %c0_21] : memref<408x128xf32, #tpu.memory_space<vmem>>, vector<280x128xf32>
    %c512 = arith.constant 512 : index
    %c0_22 = arith.constant 0 : index
    %24 = vector.load %arg1[%c512, %c0_22] : memref<2176x64xf32, #tpu.memory_space<vmem>>, vector<128x64xf32>
    %cst_23 = arith.constant dense<0.000000e+00> : vector<280x64xf32>
    %25 = tpu.matmul %23, %24, %cst_23 {dimension_numbers = #tpu.dot_dimension_numbers<[1], [0], [0], [1], [0, 0, 1, 1], [], []>} : vector<280x128xf32>, vector<128x64xf32>, vector<280x64xf32> -> vector<280x64xf32>
    %26 = arith.addf %22, %25 : vector<280x64xf32>
    %c72 = arith.constant 72 : index
    %c0_24 = arith.constant 0 : index
    %27 = vector.load %arg0[%c72, %c0_24] : memref<408x128xf32, #tpu.memory_space<vmem>>, vector<280x128xf32>
    %c640 = arith.constant 640 : index
    %c0_25 = arith.constant 0 : index
    %28 = vector.load %arg1[%c640, %c0_25] : memref<2176x64xf32, #tpu.memory_space<vmem>>, vector<128x64xf32>
    %cst_26 = arith.constant dense<0.000000e+00> : vector<280x64xf32>
    %29 = tpu.matmul %27, %28, %cst_26 {dimension_numbers = #tpu.dot_dimension_numbers<[1], [0], [0], [1], [0, 0, 1, 1], [], []>} : vector<280x128xf32>, vector<128x64xf32>, vector<280x64xf32> -> vector<280x64xf32>
    %30 = arith.addf %26, %29 : vector<280x64xf32>
    %c112 = arith.constant 112 : index
    %c0_27 = arith.constant 0 : index
    %31 = vector.load %arg0[%c112, %c0_27] : memref<408x128xf32, #tpu.memory_space<vmem>>, vector<280x128xf32>
    %c768 = arith.constant 768 : index
    %c0_28 = arith.constant 0 : index
    %32 = vector.load %arg1[%c768, %c0_28] : memref<2176x64xf32, #tpu.memory_space<vmem>>, vector<128x64xf32>
    %cst_29 = arith.constant dense<0.000000e+00> : vector<280x64xf32>
    %33 = tpu.matmul %31, %32, %cst_29 {dimension_numbers = #tpu.dot_dimension_numbers<[1], [0], [0], [1], [0, 0, 1, 1], [], []>} : vector<280x128xf32>, vector<128x64xf32>, vector<280x64xf32> -> vector<280x64xf32>
    %34 = arith.addf %30, %33 : vector<280x64xf32>
    %c120 = arith.constant 120 : index
    %c0_30 = arith.constant 0 : index
    %35 = vector.load %arg0[%c120, %c0_30] : memref<408x128xf32, #tpu.memory_space<vmem>>, vector<280x128xf32>
    %c896 = arith.constant 896 : index
    %c0_31 = arith.constant 0 : index
    %36 = vector.load %arg1[%c896, %c0_31] : memref<2176x64xf32, #tpu.memory_space<vmem>>, vector<128x64xf32>
    %cst_32 = arith.constant dense<0.000000e+00> : vector<280x64xf32>
    %37 = tpu.matmul %35, %36, %cst_32 {dimension_numbers = #tpu.dot_dimension_numbers<[1], [0], [0], [1], [0, 0, 1, 1], [], []>} : vector<280x128xf32>, vector<128x64xf32>, vector<280x64xf32> -> vector<280x64xf32>
    %38 = arith.addf %34, %37 : vector<280x64xf32>
    %c128_33 = arith.constant 128 : index
    %c0_34 = arith.constant 0 : index
    %39 = vector.load %arg0[%c128_33, %c0_34] : memref<408x128xf32, #tpu.memory_space<vmem>>, vector<280x128xf32>
    %c1024 = arith.constant 1024 : index
    %c0_35 = arith.constant 0 : index
    %40 = vector.load %arg1[%c1024, %c0_35] : memref<2176x64xf32, #tpu.memory_space<vmem>>, vector<128x64xf32>
    %cst_36 = arith.constant dense<0.000000e+00> : vector<280x64xf32>
    %41 = tpu.matmul %39, %40, %cst_36 {dimension_numbers = #tpu.dot_dimension_numbers<[1], [0], [0], [1], [0, 0, 1, 1], [], []>} : vector<280x128xf32>, vector<128x64xf32>, vector<280x64xf32> -> vector<280x64xf32>
    %42 = arith.addf %38, %41 : vector<280x64xf32>
    %43 = vector.broadcast %0 : vector<1x64xf32> to vector<280x64xf32>
    %44 = arith.addf %42, %43 : vector<280x64xf32>
    %45 = vector.extract_strided_slice %44 {offsets = [0, 0], sizes = [40, 64], strides = [1, 1]} : vector<280x64xf32> to vector<40x64xf32>
    %cst_37 = arith.constant dense<0.000000e+00> : vector<64xf32>
    %46 = vector.multi_reduction <add>, %45, %cst_37 [0] : vector<40x64xf32> to vector<64xf32>
    %47 = vector.shape_cast %46 : vector<64xf32> to vector<1x64xf32>
    %48 = vector.extract_strided_slice %44 {offsets = [56, 0], sizes = [40, 64], strides = [1, 1]} : vector<280x64xf32> to vector<40x64xf32>
    %cst_38 = arith.constant dense<0.000000e+00> : vector<64xf32>
    %49 = vector.multi_reduction <add>, %48, %cst_38 [0] : vector<40x64xf32> to vector<64xf32>
    %50 = vector.shape_cast %49 : vector<64xf32> to vector<1x64xf32>
    %51 = arith.addf %47, %50 : vector<1x64xf32>
    %52 = vector.extract_strided_slice %44 {offsets = [112, 0], sizes = [40, 64], strides = [1, 1]} : vector<280x64xf32> to vector<40x64xf32>
    %cst_39 = arith.constant dense<0.000000e+00> : vector<64xf32>
    %53 = vector.multi_reduction <add>, %52, %cst_39 [0] : vector<40x64xf32> to vector<64xf32>
    %54 = vector.shape_cast %53 : vector<64xf32> to vector<1x64xf32>
    %55 = arith.addf %51, %54 : vector<1x64xf32>
    %56 = vector.extract_strided_slice %44 {offsets = [168, 0], sizes = [40, 64], strides = [1, 1]} : vector<280x64xf32> to vector<40x64xf32>
    %cst_40 = arith.constant dense<0.000000e+00> : vector<64xf32>
    %57 = vector.multi_reduction <add>, %56, %cst_40 [0] : vector<40x64xf32> to vector<64xf32>
    %58 = vector.shape_cast %57 : vector<64xf32> to vector<1x64xf32>
    %59 = arith.addf %55, %58 : vector<1x64xf32>
    %60 = vector.extract_strided_slice %44 {offsets = [224, 0], sizes = [40, 64], strides = [1, 1]} : vector<280x64xf32> to vector<40x64xf32>
    %cst_41 = arith.constant dense<0.000000e+00> : vector<64xf32>
    %61 = vector.multi_reduction <add>, %60, %cst_41 [0] : vector<40x64xf32> to vector<64xf32>
    %62 = vector.shape_cast %61 : vector<64xf32> to vector<1x64xf32>
    %63 = arith.addf %59, %62 : vector<1x64xf32>
    %cst_42 = arith.constant 5.000000e-03 : f32
    %64 = vector.broadcast %cst_42 : f32 to vector<1x64xf32>
    %65 = arith.mulf %63, %64 : vector<1x64xf32>
    %66 = vector.broadcast %65 : vector<1x64xf32> to vector<280x64xf32>
    %67 = arith.subf %44, %66 : vector<280x64xf32>
    %68 = vector.extract_strided_slice %67 {offsets = [0, 0], sizes = [40, 64], strides = [1, 1]} : vector<280x64xf32> to vector<40x64xf32>
    %69 = arith.mulf %68, %68 : vector<40x64xf32>
    %cst_43 = arith.constant dense<0.000000e+00> : vector<64xf32>
    %70 = vector.multi_reduction <add>, %69, %cst_43 [0] : vector<40x64xf32> to vector<64xf32>
    %71 = vector.shape_cast %70 : vector<64xf32> to vector<1x64xf32>
    %72 = vector.extract_strided_slice %67 {offsets = [56, 0], sizes = [40, 64], strides = [1, 1]} : vector<280x64xf32> to vector<40x64xf32>
    %73 = arith.mulf %72, %72 : vector<40x64xf32>
    %cst_44 = arith.constant dense<0.000000e+00> : vector<64xf32>
    %74 = vector.multi_reduction <add>, %73, %cst_44 [0] : vector<40x64xf32> to vector<64xf32>
    %75 = vector.shape_cast %74 : vector<64xf32> to vector<1x64xf32>
    %76 = arith.addf %71, %75 : vector<1x64xf32>
    %77 = vector.extract_strided_slice %67 {offsets = [112, 0], sizes = [40, 64], strides = [1, 1]} : vector<280x64xf32> to vector<40x64xf32>
    %78 = arith.mulf %77, %77 : vector<40x64xf32>
    %cst_45 = arith.constant dense<0.000000e+00> : vector<64xf32>
    %79 = vector.multi_reduction <add>, %78, %cst_45 [0] : vector<40x64xf32> to vector<64xf32>
    %80 = vector.shape_cast %79 : vector<64xf32> to vector<1x64xf32>
    %81 = arith.addf %76, %80 : vector<1x64xf32>
    %82 = vector.extract_strided_slice %67 {offsets = [168, 0], sizes = [40, 64], strides = [1, 1]} : vector<280x64xf32> to vector<40x64xf32>
    %83 = arith.mulf %82, %82 : vector<40x64xf32>
    %cst_46 = arith.constant dense<0.000000e+00> : vector<64xf32>
    %84 = vector.multi_reduction <add>, %83, %cst_46 [0] : vector<40x64xf32> to vector<64xf32>
    %85 = vector.shape_cast %84 : vector<64xf32> to vector<1x64xf32>
    %86 = arith.addf %81, %85 : vector<1x64xf32>
    %87 = vector.extract_strided_slice %67 {offsets = [224, 0], sizes = [40, 64], strides = [1, 1]} : vector<280x64xf32> to vector<40x64xf32>
    %88 = arith.mulf %87, %87 : vector<40x64xf32>
    %cst_47 = arith.constant dense<0.000000e+00> : vector<64xf32>
    %89 = vector.multi_reduction <add>, %88, %cst_47 [0] : vector<40x64xf32> to vector<64xf32>
    %90 = vector.shape_cast %89 : vector<64xf32> to vector<1x64xf32>
    %91 = arith.addf %86, %90 : vector<1x64xf32>
    %cst_48 = arith.constant 5.000000e-03 : f32
    %92 = vector.broadcast %cst_48 : f32 to vector<1x64xf32>
    %93 = arith.mulf %91, %92 : vector<1x64xf32>
    %cst_49 = arith.constant 9.99999974E-6 : f32
    %94 = vector.broadcast %cst_49 : f32 to vector<1x64xf32>
    %95 = arith.addf %93, %94 : vector<1x64xf32>
    %96 = math.rsqrt %95 : vector<1x64xf32>
    %97 = vector.broadcast %96 : vector<1x64xf32> to vector<280x64xf32>
    %98 = arith.mulf %67, %97 : vector<280x64xf32>
    %99 = vector.broadcast %1 : vector<1x64xf32> to vector<280x64xf32>
    %100 = arith.mulf %98, %99 : vector<280x64xf32>
    %101 = vector.broadcast %2 : vector<1x64xf32> to vector<280x64xf32>
    %102 = arith.addf %100, %101 : vector<280x64xf32>
    %cst_50 = arith.constant 0.000000e+00 : f32
    %103 = vector.broadcast %cst_50 : f32 to vector<280x64xf32>
    %104 = arith.maximumf %102, %103 : vector<280x64xf32>
    %105 = vector.extract_strided_slice %104 {offsets = [0, 0], sizes = [8, 64], strides = [1, 1]} : vector<280x64xf32> to vector<8x64xf32>
    %106 = vector.extract_strided_slice %104 {offsets = [8, 0], sizes = [8, 64], strides = [1, 1]} : vector<280x64xf32> to vector<8x64xf32>
    %107 = arith.maximumf %105, %106 : vector<8x64xf32>
    %108 = vector.extract_strided_slice %104 {offsets = [56, 0], sizes = [8, 64], strides = [1, 1]} : vector<280x64xf32> to vector<8x64xf32>
    %109 = vector.extract_strided_slice %104 {offsets = [64, 0], sizes = [8, 64], strides = [1, 1]} : vector<280x64xf32> to vector<8x64xf32>
    %110 = arith.maximumf %108, %109 : vector<8x64xf32>
    %111 = arith.maximumf %107, %110 : vector<8x64xf32>
    %112 = vector.extract_strided_slice %104 {offsets = [16, 0], sizes = [8, 64], strides = [1, 1]} : vector<280x64xf32> to vector<8x64xf32>
    %113 = vector.extract_strided_slice %104 {offsets = [24, 0], sizes = [8, 64], strides = [1, 1]} : vector<280x64xf32> to vector<8x64xf32>
    %114 = arith.maximumf %112, %113 : vector<8x64xf32>
    %115 = vector.extract_strided_slice %104 {offsets = [72, 0], sizes = [8, 64], strides = [1, 1]} : vector<280x64xf32> to vector<8x64xf32>
    %116 = vector.extract_strided_slice %104 {offsets = [80, 0], sizes = [8, 64], strides = [1, 1]} : vector<280x64xf32> to vector<8x64xf32>
    %117 = arith.maximumf %115, %116 : vector<8x64xf32>
    %118 = arith.maximumf %114, %117 : vector<8x64xf32>
    %119 = vector.extract_strided_slice %104 {offsets = [112, 0], sizes = [8, 64], strides = [1, 1]} : vector<280x64xf32> to vector<8x64xf32>
    %120 = vector.extract_strided_slice %104 {offsets = [120, 0], sizes = [8, 64], strides = [1, 1]} : vector<280x64xf32> to vector<8x64xf32>
    %121 = arith.maximumf %119, %120 : vector<8x64xf32>
    %122 = vector.extract_strided_slice %104 {offsets = [168, 0], sizes = [8, 64], strides = [1, 1]} : vector<280x64xf32> to vector<8x64xf32>
    %123 = vector.extract_strided_slice %104 {offsets = [176, 0], sizes = [8, 64], strides = [1, 1]} : vector<280x64xf32> to vector<8x64xf32>
    %124 = arith.maximumf %122, %123 : vector<8x64xf32>
    %125 = arith.maximumf %121, %124 : vector<8x64xf32>
    %126 = vector.extract_strided_slice %104 {offsets = [128, 0], sizes = [8, 64], strides = [1, 1]} : vector<280x64xf32> to vector<8x64xf32>
    %127 = vector.extract_strided_slice %104 {offsets = [136, 0], sizes = [8, 64], strides = [1, 1]} : vector<280x64xf32> to vector<8x64xf32>
    %128 = arith.maximumf %126, %127 : vector<8x64xf32>
    %129 = vector.extract_strided_slice %104 {offsets = [184, 0], sizes = [8, 64], strides = [1, 1]} : vector<280x64xf32> to vector<8x64xf32>
    %130 = vector.extract_strided_slice %104 {offsets = [192, 0], sizes = [8, 64], strides = [1, 1]} : vector<280x64xf32> to vector<8x64xf32>
    %131 = arith.maximumf %129, %130 : vector<8x64xf32>
    %132 = arith.maximumf %128, %131 : vector<8x64xf32>
    %133 = tpu.concatenate %111, %118, %125, %132 in 1 : vector<8x64xf32>, vector<8x64xf32>, vector<8x64xf32>, vector<8x64xf32> -> vector<8x256xf32>
    %c1152 = arith.constant 1152 : index
    %c0_51 = arith.constant 0 : index
    %134 = vector.load %arg1[%c1152, %c0_51] : memref<2176x64xf32, #tpu.memory_space<vmem>>, vector<256x64xf32>
    %cst_52 = arith.constant dense<0.000000e+00> : vector<8x64xf32>
    %135 = tpu.matmul %133, %134, %cst_52 {dimension_numbers = #tpu.dot_dimension_numbers<[1], [0], [0], [1], [0, 0, 1, 1], [], []>} : vector<8x256xf32>, vector<256x64xf32>, vector<8x64xf32> -> vector<8x64xf32>
    %136 = vector.broadcast %3 : vector<1x64xf32> to vector<8x64xf32>
    %137 = arith.addf %135, %136 : vector<8x64xf32>
    %c1408 = arith.constant 1408 : index
    %c0_53 = arith.constant 0 : index
    %138 = vector.load %arg1[%c1408, %c0_53] : memref<2176x64xf32, #tpu.memory_space<vmem>>, vector<256x64xf32>
    %cst_54 = arith.constant dense<0.000000e+00> : vector<8x64xf32>
    %139 = tpu.matmul %133, %138, %cst_54 {dimension_numbers = #tpu.dot_dimension_numbers<[1], [0], [0], [1], [0, 0, 1, 1], [], []>} : vector<8x256xf32>, vector<256x64xf32>, vector<8x64xf32> -> vector<8x64xf32>
    %140 = vector.broadcast %3 : vector<1x64xf32> to vector<8x64xf32>
    %141 = arith.addf %139, %140 : vector<8x64xf32>
    %c1664 = arith.constant 1664 : index
    %c0_55 = arith.constant 0 : index
    %142 = vector.load %arg1[%c1664, %c0_55] : memref<2176x64xf32, #tpu.memory_space<vmem>>, vector<256x64xf32>
    %cst_56 = arith.constant dense<0.000000e+00> : vector<8x64xf32>
    %143 = tpu.matmul %133, %142, %cst_56 {dimension_numbers = #tpu.dot_dimension_numbers<[1], [0], [0], [1], [0, 0, 1, 1], [], []>} : vector<8x256xf32>, vector<256x64xf32>, vector<8x64xf32> -> vector<8x64xf32>
    %144 = vector.broadcast %3 : vector<1x64xf32> to vector<8x64xf32>
    %145 = arith.addf %143, %144 : vector<8x64xf32>
    %c1920 = arith.constant 1920 : index
    %c0_57 = arith.constant 0 : index
    %146 = vector.load %arg1[%c1920, %c0_57] : memref<2176x64xf32, #tpu.memory_space<vmem>>, vector<256x64xf32>
    %cst_58 = arith.constant dense<0.000000e+00> : vector<8x64xf32>
    %147 = tpu.matmul %133, %146, %cst_58 {dimension_numbers = #tpu.dot_dimension_numbers<[1], [0], [0], [1], [0, 0, 1, 1], [], []>} : vector<8x256xf32>, vector<256x64xf32>, vector<8x64xf32> -> vector<8x64xf32>
    %148 = vector.broadcast %3 : vector<1x64xf32> to vector<8x64xf32>
    %149 = arith.addf %147, %148 : vector<8x64xf32>
    %150 = arith.addf %137, %141 : vector<8x64xf32>
    %151 = arith.addf %150, %145 : vector<8x64xf32>
    %152 = arith.addf %151, %149 : vector<8x64xf32>
    %cst_59 = arith.constant dense<0.000000e+00> : vector<64xf32>
    %153 = vector.multi_reduction <add>, %152, %cst_59 [0] : vector<8x64xf32> to vector<64xf32>
    %154 = vector.shape_cast %153 : vector<64xf32> to vector<1x64xf32>
    %cst_60 = arith.constant 3.125000e-02 : f32
    %155 = vector.broadcast %cst_60 : f32 to vector<1x64xf32>
    %156 = arith.mulf %154, %155 : vector<1x64xf32>
    %157 = vector.broadcast %156 : vector<1x64xf32> to vector<8x64xf32>
    %158 = arith.subf %137, %157 : vector<8x64xf32>
    %159 = vector.broadcast %156 : vector<1x64xf32> to vector<8x64xf32>
    %160 = arith.subf %141, %159 : vector<8x64xf32>
    %161 = vector.broadcast %156 : vector<1x64xf32> to vector<8x64xf32>
    %162 = arith.subf %145, %161 : vector<8x64xf32>
    %163 = vector.broadcast %156 : vector<1x64xf32> to vector<8x64xf32>
    %164 = arith.subf %149, %163 : vector<8x64xf32>
    %165 = arith.mulf %158, %158 : vector<8x64xf32>
    %166 = arith.mulf %160, %160 : vector<8x64xf32>
    %167 = arith.addf %165, %166 : vector<8x64xf32>
    %168 = arith.mulf %162, %162 : vector<8x64xf32>
    %169 = arith.addf %167, %168 : vector<8x64xf32>
    %170 = arith.mulf %164, %164 : vector<8x64xf32>
    %171 = arith.addf %169, %170 : vector<8x64xf32>
    %cst_61 = arith.constant dense<0.000000e+00> : vector<64xf32>
    %172 = vector.multi_reduction <add>, %171, %cst_61 [0] : vector<8x64xf32> to vector<64xf32>
    %173 = vector.shape_cast %172 : vector<64xf32> to vector<1x64xf32>
    %cst_62 = arith.constant 3.125000e-02 : f32
    %174 = vector.broadcast %cst_62 : f32 to vector<1x64xf32>
    %175 = arith.mulf %173, %174 : vector<1x64xf32>
    %cst_63 = arith.constant 9.99999974E-6 : f32
    %176 = vector.broadcast %cst_63 : f32 to vector<1x64xf32>
    %177 = arith.addf %175, %176 : vector<1x64xf32>
    %178 = math.rsqrt %177 : vector<1x64xf32>
    %179 = vector.broadcast %178 : vector<1x64xf32> to vector<8x64xf32>
    %180 = arith.mulf %158, %179 : vector<8x64xf32>
    %181 = vector.broadcast %4 : vector<1x64xf32> to vector<8x64xf32>
    %182 = arith.mulf %180, %181 : vector<8x64xf32>
    %183 = vector.broadcast %5 : vector<1x64xf32> to vector<8x64xf32>
    %184 = arith.addf %182, %183 : vector<8x64xf32>
    %cst_64 = arith.constant 0.000000e+00 : f32
    %185 = vector.broadcast %cst_64 : f32 to vector<8x64xf32>
    %186 = arith.maximumf %184, %185 : vector<8x64xf32>
    %187 = vector.broadcast %178 : vector<1x64xf32> to vector<8x64xf32>
    %188 = arith.mulf %160, %187 : vector<8x64xf32>
    %189 = vector.broadcast %4 : vector<1x64xf32> to vector<8x64xf32>
    %190 = arith.mulf %188, %189 : vector<8x64xf32>
    %191 = vector.broadcast %5 : vector<1x64xf32> to vector<8x64xf32>
    %192 = arith.addf %190, %191 : vector<8x64xf32>
    %cst_65 = arith.constant 0.000000e+00 : f32
    %193 = vector.broadcast %cst_65 : f32 to vector<8x64xf32>
    %194 = arith.maximumf %192, %193 : vector<8x64xf32>
    %195 = vector.broadcast %178 : vector<1x64xf32> to vector<8x64xf32>
    %196 = arith.mulf %162, %195 : vector<8x64xf32>
    %197 = vector.broadcast %4 : vector<1x64xf32> to vector<8x64xf32>
    %198 = arith.mulf %196, %197 : vector<8x64xf32>
    %199 = vector.broadcast %5 : vector<1x64xf32> to vector<8x64xf32>
    %200 = arith.addf %198, %199 : vector<8x64xf32>
    %cst_66 = arith.constant 0.000000e+00 : f32
    %201 = vector.broadcast %cst_66 : f32 to vector<8x64xf32>
    %202 = arith.maximumf %200, %201 : vector<8x64xf32>
    %203 = vector.broadcast %178 : vector<1x64xf32> to vector<8x64xf32>
    %204 = arith.mulf %164, %203 : vector<8x64xf32>
    %205 = vector.broadcast %4 : vector<1x64xf32> to vector<8x64xf32>
    %206 = arith.mulf %204, %205 : vector<8x64xf32>
    %207 = vector.broadcast %5 : vector<1x64xf32> to vector<8x64xf32>
    %208 = arith.addf %206, %207 : vector<8x64xf32>
    %cst_67 = arith.constant 0.000000e+00 : f32
    %209 = vector.broadcast %cst_67 : f32 to vector<8x64xf32>
    %210 = arith.maximumf %208, %209 : vector<8x64xf32>
    %211 = arith.maximumf %186, %194 : vector<8x64xf32>
    %212 = arith.maximumf %202, %210 : vector<8x64xf32>
    %213 = arith.maximumf %211, %212 : vector<8x64xf32>
    %c0_68 = arith.constant 0 : index
    %c0_69 = arith.constant 0 : index
    %214 = vector.load %arg3[%c0_68, %c0_69] : memref<72x8xf32, #tpu.memory_space<vmem>>, vector<64x8xf32>
    %c64_70 = arith.constant 64 : index
    %c0_71 = arith.constant 0 : index
    %215 = vector.load %arg3[%c64_70, %c0_71] : memref<72x8xf32, #tpu.memory_space<vmem>>, vector<8x1xf32>
    %cst_72 = arith.constant dense<0.000000e+00> : vector<8x8xf32>
    %216 = tpu.matmul %213, %214, %cst_72 {dimension_numbers = #tpu.dot_dimension_numbers<[1], [0], [0], [1], [0, 0, 1, 1], [], []>} : vector<8x64xf32>, vector<64x8xf32>, vector<8x8xf32> -> vector<8x8xf32>
    %217 = vector.broadcast %6 : vector<1x8xf32> to vector<8x8xf32>
    %218 = arith.addf %216, %217 : vector<8x8xf32>
    %cst_73 = arith.constant 0.000000e+00 : f32
    %219 = vector.broadcast %cst_73 : f32 to vector<8x8xf32>
    %220 = arith.maximumf %218, %219 : vector<8x8xf32>
    %cst_74 = arith.constant dense<0.000000e+00> : vector<8x1xf32>
    %221 = tpu.matmul %220, %215, %cst_74 {dimension_numbers = #tpu.dot_dimension_numbers<[1], [0], [0], [1], [0, 0, 1, 1], [], []>} : vector<8x8xf32>, vector<8x1xf32>, vector<8x1xf32> -> vector<8x1xf32>
    %222 = vector.broadcast %7 : vector<1x1xf32> to vector<8x1xf32>
    %223 = arith.addf %221, %222 : vector<8x1xf32>
    %cst_75 = arith.constant 0.000000e+00 : f32
    %224 = vector.broadcast %cst_75 : f32 to vector<8x1xf32>
    %225 = arith.subf %224, %223 : vector<8x1xf32>
    %226 = math.exp %225 : vector<8x1xf32>
    %cst_76 = arith.constant 1.000000e+00 : f32
    %227 = vector.broadcast %cst_76 : f32 to vector<8x1xf32>
    %228 = arith.addf %227, %226 : vector<8x1xf32>
    %cst_77 = arith.constant 1.000000e+00 : f32
    %229 = vector.broadcast %cst_77 : f32 to vector<8x1xf32>
    %230 = arith.divf %229, %228 : vector<8x1xf32>
    %c0_78 = arith.constant 0 : index
    %c0_79 = arith.constant 0 : index
    %231 = vector.load %arg4[%c0_78, %c0_79] : memref<8x1xf32, #tpu.memory_space<vmem>>, vector<8x1xf32>
    tpu.vector_store %arg4[%c0_78, %c0_79], %230 {strides = array<i32>} : memref<8x1xf32, #tpu.memory_space<vmem>>, vector<8x1xf32>,
    return
  }
}

</mosaic_0001>

<llo_original>
// kernel: relation_net_forward.1
$region0: #{relation_net_forward.1}
  #allocation0 [shape = 'u32[]', space=smem, size = 0x4, offset = 0x4, fixed_abs, tag = 'smem constant byte address 0x4 - core index']
  #allocation1 [shape = 'u32[144,128]{1,0:T(1,128)}', space=vmem, size = 0x12000, scoped, tag = 'internal scratch']
  %s0 = inlined_call_operand.vmem [shape: f32[408,128], index: 0, kind: input, shape index: {}]
  %s1 = inlined_call_operand.vmem [shape: f32[2176,64], index: 1, kind: input, shape index: {}]
  %s2 = inlined_call_operand.vmem [shape: f32[8,64], index: 2, kind: input, shape index: {}]
  %s3 = inlined_call_operand.vmem [shape: f32[72,8], index: 3, kind: input, shape index: {}]
  %s4 = inlined_call_operand.vmem [shape: f32[8,1], index: 4, kind: output, shape index: {}]
  %s5 = sld [smem:[#allocation0]]
  $region26: #{relation_net_forward.1} parent=0
    _
  %s7 = ssub.s32 1, %s5
  %s8 = scalar_select 0, %s7, %s5
  // Predicated region
  $region2: #{relation_net_forward.1} parent=0 // pred_check
    _
  $region3: #{relation_net_forward.1} parent=0 // pred_check_branch
    %10 = sbr.rel (0) target = $region5
  $region4: #{relation_net_forward.1} parent=0 // pred_region
    _
  $region5: #{relation_net_forward.1} parent=0 // pred_fallthru
    _
  // Predicated region
  $region6: #{relation_net_forward.1} parent=0 // pred_check
    _
  $region7: #{relation_net_forward.1} parent=0 // pred_check_branch
    %12 = sbr.rel (0) target = $region9
  $region8: #{relation_net_forward.1} parent=0 // pred_region
    _
  $region9: #{relation_net_forward.1} parent=0 // pred_fallthru
    _
  // Predicated region
  $region10: #{relation_net_forward.1} parent=0 // pred_check
    _
  $region11: #{relation_net_forward.1} parent=0 // pred_check_branch
    %14 = sbr.rel (0) target = $region13
  $region12: #{relation_net_forward.1} parent=0 // pred_region
    _
  $region13: #{relation_net_forward.1} parent=0 // pred_fallthru
    _
  // Predicated region
  $region14: #{relation_net_forward.1} parent=0 // pred_check
    _
  $region15: #{relation_net_forward.1} parent=0 // pred_check_branch
    %16 = sbr.rel (0) target = $region17
  $region16: #{relation_net_forward.1} parent=0 // pred_region
    _
  $region17: #{relation_net_forward.1} parent=0 // pred_fallthru
    _
  %v17 = vld [vmem:[%s2] sm:$0x1]
  %v18 = vld [vmem:[%s2 + $0x1] sm:$0x1]
  %v19 = vld [vmem:[%s2 + $0x2] sm:$0x1]
  %v20 = vld [vmem:[%s2 + $0x3] sm:$0x1]
  %v21 = vld [vmem:[%s2 + $0x4] sm:$0x1]
  %v22 = vld [vmem:[%s2 + $0x5] sm:$0x1]
  %v23 = vld [vmem:[%s2 + $0x6] sm:$0x1]
  %v24 = vld [vmem:[%s2 + $0x7] sm:$0x1]
  %v25 = vld [vmem:[%s0] sm:$0xff]
  %v26 = vld [vmem:[%s0 + $0x8] sm:$0xff]
  %v27 = vld [vmem:[%s0 + $0x10] sm:$0xff]
  %v28 = vld [vmem:[%s0 + $0x18] sm:$0xff]
  %v29 = vld [vmem:[%s0 + $0x20] sm:$0xff]
  %v30 = vld [vmem:[%s0 + $0x28] sm:$0xff]
  %v31 = vld [vmem:[%s0 + $0x30] sm:$0xff]
  %v32 = vld [vmem:[%s0 + $0x38] sm:$0xff]
  %v33 = vld [vmem:[%s0 + $0x40] sm:$0xff]
  %v34 = vld [vmem:[%s0 + $0x48] sm:$0xff]
  %v35 = vld [vmem:[%s0 + $0x50] sm:$0xff]
  %v36 = vld [vmem:[%s0 + $0x58] sm:$0xff]
  %v37 = vld [vmem:[%s0 + $0x60] sm:$0xff]
  %v38 = vld [vmem:[%s0 + $0x68] sm:$0xff]
  %v39 = vld [vmem:[%s0 + $0x70] sm:$0xff]
  %v40 = vld [vmem:[%s0 + $0x78] sm:$0xff]
  %v41 = vld [vmem:[%s0 + $0x80] sm:$0xff]
  %v42 = vld [vmem:[%s0 + $0x88] sm:$0xff]
  %v43 = vld [vmem:[%s0 + $0x90] sm:$0xff]
  %v44 = vld [vmem:[%s0 + $0x98] sm:$0xff]
  %v45 = vld [vmem:[%s0 + $0xa0] sm:$0xff]
  %v46 = vld [vmem:[%s0 + $0xa8] sm:$0xff]
  %v47 = vld [vmem:[%s0 + $0xb0] sm:$0xff]
  %v48 = vld [vmem:[%s0 + $0xb8] sm:$0xff]
  %v49 = vld [vmem:[%s0 + $0xc0] sm:$0xff]
  %v50 = vld [vmem:[%s0 + $0xc8] sm:$0xff]
  %v51 = vld [vmem:[%s0 + $0xd0] sm:$0xff]
  %v52 = vld [vmem:[%s0 + $0xd8] sm:$0xff]
  %v53 = vld [vmem:[%s0 + $0xe0] sm:$0xff]
  %v54 = vld [vmem:[%s0 + $0xe8] sm:$0xff]
  %v55 = vld [vmem:[%s0 + $0xf0] sm:$0xff]
  %v56 = vld [vmem:[%s0 + $0xf8] sm:$0xff]
  %v57 = vld [vmem:[%s0 + $0x100] sm:$0xff]
  %v58 = vld [vmem:[%s0 + $0x108] sm:$0xff]
  %v59 = vld [vmem:[%s0 + $0x110] sm:$0xff]
  %v60 = vld [vmem:[%s1] sm:$0xff]
  %v61 = vld [vmem:[%s1 + $0x8] sm:$0xff]
  %v62 = vld [vmem:[%s1 + $0x10] sm:$0xff]
  %v63 = vld [vmem:[%s1 + $0x18] sm:$0xff]
  %v64 = vld [vmem:[%s1 + $0x20] sm:$0xff]
  %v65 = vld [vmem:[%s1 + $0x28] sm:$0xff]
  %v66 = vld [vmem:[%s1 + $0x30] sm:$0xff]
  %v67 = vld [vmem:[%s1 + $0x38] sm:$0xff]
  %v68 = vld [vmem:[%s1 + $0x40] sm:$0xff]
  %v69 = vld [vmem:[%s1 + $0x48] sm:$0xff]
  %v70 = vld [vmem:[%s1 + $0x50] sm:$0xff]
  %v71 = vld [vmem:[%s1 + $0x58] sm:$0xff]
  %v72 = vld [vmem:[%s1 + $0x60] sm:$0xff]
  %v73 = vld [vmem:[%s1 + $0x68] sm:$0xff]
  %v74 = vld [vmem:[%s1 + $0x70] sm:$0xff]
  %v75 = vld [vmem:[%s1 + $0x78] sm:$0xff]
  %v76 = vld [vmem:[%s0 + $0x118] sm:$0xff]
  %v77 = vld [vmem:[%s1 + $0x80] sm:$0xff]
  %v78 = vld [vmem:[%s1 + $0x88] sm:$0xff]
  %v79 = vld [vmem:[%s1 + $0x90] sm:$0xff]
  %v80 = vld [vmem:[%s1 + $0x98] sm:$0xff]
  %v81 = vld [vmem:[%s1 + $0xa0] sm:$0xff]
  %v82 = vld [vmem:[%s1 + $0xa8] sm:$0xff]
  %v83 = vld [vmem:[%s1 + $0xb0] sm:$0xff]
  %v84 = vld [vmem:[%s1 + $0xb8] sm:$0xff]
  %v85 = vld [vmem:[%s1 + $0xc0] sm:$0xff]
  %v86 = vld [vmem:[%s1 + $0xc8] sm:$0xff]
  %v87 = vld [vmem:[%s1 + $0xd0] sm:$0xff]
  %v88 = vld [vmem:[%s1 + $0xd8] sm:$0xff]
  %v89 = vld [vmem:[%s1 + $0xe0] sm:$0xff]
  %v90 = vld [vmem:[%s1 + $0xe8] sm:$0xff]
  %v91 = vld [vmem:[%s1 + $0xf0] sm:$0xff]
  %v92 = vld [vmem:[%s1 + $0xf8] sm:$0xff]
  %93 = vmatprep.subr.mxu0 0.0
  %94 = vmatpush1.msra.mxu0 %v77
  %95 = vmatprep.subr.mxu0 0.0
  %96 = vmatpush1.msra.mxu0 %v78
  %97 = vmatprep.subr.mxu0 0.0
  %98 = vmatpush1.msra.mxu0 %v79
  %99 = vmatprep.subr.mxu0 0.0
  %100 = vmatpush1.msra.mxu0 %v80
  %101 = vmatprep.subr.mxu0 0.0
  %102 = vmatpush1.msra.mxu0 %v81
  %103 = vmatprep.subr.mxu0 0.0
  %104 = vmatpush1.msra.mxu0 %v82
  %105 = vmatprep.subr.mxu0 0.0
  %106 = vmatpush1.msra.mxu0 %v83
  %107 = vmatprep.subr.mxu0 0.0
  %108 = vmatpush1.msra.mxu0 %v84
  %109 = vmatprep.subr.mxu0 0.0
  %110 = vmatpush1.msra.mxu0 %v85
  %111 = vmatprep.subr.mxu0 0.0
  %112 = vmatpush1.msra.mxu0 %v86
  %113 = vmatprep.subr.mxu0 0.0
  %114 = vmatpush1.msra.mxu0 %v87
  %115 = vmatprep.subr.mxu0 0.0
  %116 = vmatpush1.msra.mxu0 %v88
  %117 = vmatprep.subr.mxu0 0.0
  %118 = vmatpush1.msra.mxu0 %v89
  %119 = vmatprep.subr.mxu0 0.0
  %120 = vmatpush1.msra.mxu0 %v90
  %121 = vmatprep.subr.mxu0 0.0
  %122 = vmatpush1.msra.mxu0 %v91
  %123 = vmatprep.subr.mxu0 0.0
  %124 = vmatpush1.msra.mxu0 %v92
  %125 = vmatprep.subr.mxu0 0.0
  %126 = vmatpush1.msra.mxu0 0.0
  %127 = vmatprep.subr.mxu0 0.0
  %128 = vmatpush1.msra.mxu0 0.0
  %129 = vmatprep.subr.mxu0 0.0
  %130 = vmatpush1.msra.mxu0 0.0
  %131 = vmatprep.subr.mxu0 0.0
  %132 = vmatpush1.msra.mxu0 0.0
  %133 = vmatprep.subr.mxu0 0.0
  %134 = vmatpush1.msra.mxu0 0.0
  %135 = vmatprep.subr.mxu0 0.0
  %136 = vmatpush1.msra.mxu0 0.0
  %137 = vmatprep.subr.mxu0 0.0
  %138 = vmatpush1.msra.mxu0 0.0
  %139 = vmatprep.subr.mxu0 0.0
  %140 = vmatpush1.msra.mxu0 0.0
  %141 = vmatprep.subr.mxu0 0.0
  %142 = vmatpush1.msra.mxu0 0.0
  %143 = vmatprep.subr.mxu0 0.0
  %144 = vmatpush1.msra.mxu0 0.0
  %145 = vmatprep.subr.mxu0 0.0
  %146 = vmatpush1.msra.mxu0 0.0
  %147 = vmatprep.subr.mxu0 0.0
  %148 = vmatpush1.msra.mxu0 0.0
  %149 = vmatprep.subr.mxu0 0.0
  %150 = vmatpush1.msra.mxu0 0.0
  %151 = vmatprep.subr.mxu0 0.0
  %152 = vmatpush1.msra.mxu0 0.0
  %153 = vmatprep.subr.mxu0 0.0
  %154 = vmatpush1.msra.mxu0 0.0
  %155 = vmatprep.subr.mxu0 0.0
  %156 = vmatpush1.msra.mxu0 0.0
  %157 = vmatprep.mubr.f32.mxu0 0.0
  %158 = vmatmul.mubr.f32.gmra.mrb[0].mxu0 %v26
  %v159 = vpop.f32.mrb[0].mxu0
  %v160 = vadd.f32 0.0, %v159
  %v161 = vpop.f32.mrb[0].mxu0
  %162 = vmatprep.mubr.f32.mxu0 0.0
  %163 = vmatmul.mubr.f32.gmra.mrb[0].mxu0 %v27
  %v164 = vpop.f32.mrb[0].mxu0
  %v165 = vadd.f32 0.0, %v164
  %v166 = vpop.f32.mrb[0].mxu0
  %167 = vmatprep.mubr.f32.mxu0 0.0
  %168 = vmatmul.mubr.f32.gmra.mrb[0].mxu0 %v28
  %v169 = vpop.f32.mrb[0].mxu0
  %v170 = vadd.f32 0.0, %v169
  %v171 = vpop.f32.mrb[0].mxu0
  %172 = vmatprep.mubr.f32.mxu0 0.0
  %173 = vmatmul.mubr.f32.gmra.mrb[0].mxu0 %v29
  %v174 = vpop.f32.mrb[0].mxu0
  %v175 = vadd.f32 0.0, %v174
  %v176 = vpop.f32.mrb[0].mxu0
  %177 = vmatprep.mubr.f32.mxu0 0.0
  %178 = vmatmul.mubr.f32.gmra.mrb[0].mxu0 %v30
  %v179 = vpop.f32.mrb[0].mxu0
  %v180 = vadd.f32 0.0, %v179
  %v181 = vpop.f32.mrb[0].mxu0
  %182 = vmatprep.mubr.f32.mxu0 0.0
  %183 = vmatmul.mubr.f32.gmra.mrb[0].mxu0 %v31
  %v184 = vpop.f32.mrb[0].mxu0
  %v185 = vpop.f32.mrb[0].mxu0
  %186 = vmatprep.mubr.f32.mxu0 0.0
  %187 = vmatmul.mubr.f32.gmra.mrb[0].mxu0 %v32
  %v188 = vpop.f32.mrb[0].mxu0
  %v189 = vpop.f32.mrb[0].mxu0
  %190 = vmatprep.mubr.f32.mxu0 0.0
  %191 = vmatmul.mubr.f32.gmra.mrb[0].mxu0 %v33
  %v192 = vpop.f32.mrb[0].mxu0
  %v193 = vadd.f32 0.0, %v192
  %v194 = vpop.f32.mrb[0].mxu0
  %195 = vmatprep.mubr.f32.mxu0 0.0
  %196 = vmatmul.mubr.f32.gmra.mrb[0].mxu0 %v34
  %v197 = vpop.f32.mrb[0].mxu0
  %v198 = vadd.f32 0.0, %v197
  %v199 = vpop.f32.mrb[0].mxu0
  %200 = vmatprep.mubr.f32.mxu0 0.0
  %201 = vmatmul.mubr.f32.gmra.mrb[0].mxu0 %v35
  %v202 = vpop.f32.mrb[0].mxu0
  %v203 = vadd.f32 0.0, %v202
  %v204 = vpop.f32.mrb[0].mxu0
  %205 = vmatprep.mubr.f32.mxu0 0.0
  %206 = vmatmul.mubr.f32.gmra.mrb[0].mxu0 %v36
  %v207 = vpop.f32.mrb[0].mxu0
  %v208 = vadd.f32 0.0, %v207
  %v209 = vpop.f32.mrb[0].mxu0
  %210 = vmatprep.mubr.f32.mxu0 0.0
  %211 = vmatmul.mubr.f32.gmra.mrb[0].mxu0 %v37
  %v212 = vpop.f32.mrb[0].mxu0
  %v213 = vadd.f32 0.0, %v212
  %v214 = vpop.f32.mrb[0].mxu0
  %215 = vmatprep.mubr.f32.mxu0 0.0
  %216 = vmatmul.mubr.f32.gmra.mrb[0].mxu0 %v38
  %v217 = vpop.f32.mrb[0].mxu0
  %v218 = vpop.f32.mrb[0].mxu0
  %219 = vmatprep.mubr.f32.mxu0 0.0
  %220 = vmatmul.mubr.f32.gmra.mrb[0].mxu0 %v39
  %v221 = vpop.f32.mrb[0].mxu0
  %v222 = vpop.f32.mrb[0].mxu0
  %223 = vmatprep.mubr.f32.mxu0 0.0
  %224 = vmatmul.mubr.f32.gmra.mrb[0].mxu0 %v40
  %v225 = vpop.f32.mrb[0].mxu0
  %v226 = vadd.f32 0.0, %v225
  %v227 = vpop.f32.mrb[0].mxu0
  %228 = vmatprep.mubr.f32.mxu0 0.0
  %229 = vmatmul.mubr.f32.gmra.mrb[0].mxu0 %v41
  %v230 = vpop.f32.mrb[0].mxu0
  %v231 = vadd.f32 0.0, %v230
  %v232 = vpop.f32.mrb[0].mxu0
  %233 = vmatprep.mubr.f32.mxu0 0.0
  %234 = vmatmul.mubr.f32.gmra.mrb[0].mxu0 %v42
  %v235 = vpop.f32.mrb[0].mxu0
  %v236 = vadd.f32 0.0, %v235
  %v237 = vpop.f32.mrb[0].mxu0
  %238 = vmatprep.mubr.f32.mxu0 0.0
  %239 = vmatmul.mubr.f32.gmra.mrb[0].mxu0 %v43
  %v240 = vpop.f32.mrb[0].mxu0
  %v241 = vadd.f32 0.0, %v240
  %v242 = vpop.f32.mrb[0].mxu0
  %243 = vmatprep.mubr.f32.mxu0 0.0
  %244 = vmatmul.mubr.f32.gmra.mrb[0].mxu0 %v44
  %v245 = vpop.f32.mrb[0].mxu0
  %v246 = vadd.f32 0.0, %v245
  %v247 = vpop.f32.mrb[0].mxu0
  %248 = vmatprep.mubr.f32.mxu0 0.0
  %249 = vmatmul.mubr.f32.gmra.mrb[0].mxu0 %v45
  %v250 = vpop.f32.mrb[0].mxu0
  %v251 = vpop.f32.mrb[0].mxu0
  %252 = vmatprep.mubr.f32.mxu0 0.0
  %253 = vmatmul.mubr.f32.gmra.mrb[0].mxu0 %v46
  %v254 = vpop.f32.mrb[0].mxu0
  %v255 = vpop.f32.mrb[0].mxu0
  %256 = vmatprep.mubr.f32.mxu0 0.0
  %257 = vmatmul.mubr.f32.gmra.mrb[0].mxu0 %v47
  %v258 = vpop.f32.mrb[0].mxu0
  %v259 = vadd.f32 0.0, %v258
  %v260 = vpop.f32.mrb[0].mxu0
  %261 = vmatprep.mubr.f32.mxu0 0.0
  %262 = vmatmul.mubr.f32.gmra.mrb[0].mxu0 %v48
  %v263 = vpop.f32.mrb[0].mxu0
  %v264 = vadd.f32 0.0, %v263
  %v265 = vpop.f32.mrb[0].mxu0
  %266 = vmatprep.mubr.f32.mxu0 0.0
  %267 = vmatmul.mubr.f32.gmra.mrb[0].mxu0 %v49
  %v268 = vpop.f32.mrb[0].mxu0
  %v269 = vadd.f32 0.0, %v268
  %v270 = vpop.f32.mrb[0].mxu0
  %271 = vmatprep.mubr.f32.mxu0 0.0
  %272 = vmatmul.mubr.f32.gmra.mrb[0].mxu0 %v50
  %v273 = vpop.f32.mrb[0].mxu0
  %v274 = vadd.f32 0.0, %v273
  %v275 = vpop.f32.mrb[0].mxu0
  %276 = vmatprep.mubr.f32.mxu0 0.0
  %277 = vmatmul.mubr.f32.gmra.mrb[0].mxu0 %v51
  %v278 = vpop.f32.mrb[0].mxu0
  %v279 = vadd.f32 0.0, %v278
  %v280 = vpop.f32.mrb[0].mxu0
  %281 = vmatprep.mubr.f32.mxu0 0.0
  %282 = vmatmul.mubr.f32.gmra.mrb[0].mxu0 %v52
  %v283 = vpop.f32.mrb[0].mxu0
  %v284 = vpop.f32.mrb[0].mxu0
  %285 = vmatprep.mubr.f32.mxu0 0.0
  %286 = vmatmul.mubr.f32.gmra.mrb[0].mxu0 %v53
  %v287 = vpop.f32.mrb[0].mxu0
  %v288 = vpop.f32.mrb[0].mxu0
  %289 = vmatprep.mubr.f32.mxu0 0.0
  %290 = vmatmul.mubr.f32.gmra.mrb[0].mxu0 %v54
  %v291 = vpop.f32.mrb[0].mxu0
  %v292 = vadd.f32 0.0, %v291
  %v293 = vpop.f32.mrb[0].mxu0
  %294 = vmatprep.mubr.f32.mxu0 0.0
  %295 = vmatmul.mubr.f32.gmra.mrb[0].mxu0 %v55
  %v296 = vpop.f32.mrb[0].mxu0
  %v297 = vadd.f32 0.0, %v296
  %v298 = vpop.f32.mrb[0].mxu0
  %299 = vmatprep.mubr.f32.mxu0 0.0
  %300 = vmatmul.mubr.f32.gmra.mrb[0].mxu0 %v56
  %v301 = vpop.f32.mrb[0].mxu0
  %v302 = vadd.f32 0.0, %v301
  %v303 = vpop.f32.mrb[0].mxu0
  %304 = vmatprep.mubr.f32.mxu0 0.0
  %305 = vmatmul.mubr.f32.gmra.mrb[0].mxu0 %v57
  %v306 = vpop.f32.mrb[0].mxu0
  %v307 = vadd.f32 0.0, %v306
  %v308 = vpop.f32.mrb[0].mxu0
  %309 = vmatprep.mubr.f32.mxu0 0.0
  %310 = vmatmul.mubr.f32.gmra.mrb[0].mxu0 %v58
  %v311 = vpop.f32.mrb[0].mxu0
  %v312 = vadd.f32 0.0, %v311
  %v313 = vpop.f32.mrb[0].mxu0
  %314 = vmatprep.mubr.f32.mxu0 0.0
  %315 = vmatmul.mubr.f32.gmra.mrb[0].mxu0 %v59
  %v316 = vpop.f32.mrb[0].mxu0
  %v317 = vpop.f32.mrb[0].mxu0
  %318 = vmatprep.mubr.f32.mxu0 0.0
  %319 = vmatmul.mubr.f32.gmra.mrb[0].mxu0 %v76
  %v320 = vpop.f32.mrb[0].mxu0
  %v321 = vpop.f32.mrb[0].mxu0
  %322 = vdwg.mxu0
  %323 = vmatprep.subr.mxu0 0.0
  %324 = vmatpush1.msra.mxu0 %v60
  %325 = vmatprep.subr.mxu0 0.0
  %326 = vmatpush1.msra.mxu0 %v61
  %327 = vmatprep.subr.mxu0 0.0
  %328 = vmatpush1.msra.mxu0 %v62
  %329 = vmatprep.subr.mxu0 0.0
  %330 = vmatpush1.msra.mxu0 %v63
  %331 = vmatprep.subr.mxu0 0.0
  %332 = vmatpush1.msra.mxu0 %v64
  %333 = vmatprep.subr.mxu0 0.0
  %334 = vmatpush1.msra.mxu0 %v65
  %335 = vmatprep.subr.mxu0 0.0
  %336 = vmatpush1.msra.mxu0 %v66
  %337 = vmatprep.subr.mxu0 0.0
  %338 = vmatpush1.msra.mxu0 %v67
  %339 = vmatprep.subr.mxu0 0.0
  %340 = vmatpush1.msra.mxu0 %v68
  %341 = vmatprep.subr.mxu0 0.0
  %342 = vmatpush1.msra.mxu0 %v69
  %343 = vmatprep.subr.mxu0 0.0
  %344 = vmatpush1.msra.mxu0 %v70
  %345 = vmatprep.subr.mxu0 0.0
  %346 = vmatpush1.msra.mxu0 %v71
  %347 = vmatprep.subr.mxu0 0.0
  %348 = vmatpush1.msra.mxu0 %v72
  %349 = vmatprep.subr.mxu0 0.0
  %350 = vmatpush1.msra.mxu0 %v73
  %351 = vmatprep.subr.mxu0 0.0
  %352 = vmatpush1.msra.mxu0 %v74
  %353 = vmatprep.subr.mxu0 0.0
  %354 = vmatpush1.msra.mxu0 %v75
  %355 = vmatprep.subr.mxu0 0.0
  %356 = vmatpush1.msra.mxu0 0.0
  %357 = vmatprep.subr.mxu0 0.0
  %358 = vmatpush1.msra.mxu0 0.0
  %359 = vmatprep.subr.mxu0 0.0
  %360 = vmatpush1.msra.mxu0 0.0
  %361 = vmatprep.subr.mxu0 0.0
  %362 = vmatpush1.msra.mxu0 0.0
  %363 = vmatprep.subr.mxu0 0.0
  %364 = vmatpush1.msra.mxu0 0.0
  %365 = vmatprep.subr.mxu0 0.0
  %366 = vmatpush1.msra.mxu0 0.0
  %367 = vmatprep.subr.mxu0 0.0
  %368 = vmatpush1.msra.mxu0 0.0
  %369 = vmatprep.subr.mxu0 0.0
  %370 = vmatpush1.msra.mxu0 0.0
  %371 = vmatprep.subr.mxu0 0.0
  %372 = vmatpush1.msra.mxu0 0.0
  %373 = vmatprep.subr.mxu0 0.0
  %374 = vmatpush1.msra.mxu0 0.0
  %375 = vmatprep.subr.mxu0 0.0
  %376 = vmatpush1.msra.mxu0 0.0
  %377 = vmatprep.subr.mxu0 0.0
  %378 = vmatpush1.msra.mxu0 0.0
  %379 = vmatprep.subr.mxu0 0.0
  %380 = vmatpush1.msra.mxu0 0.0
  %381 = vmatprep.subr.mxu0 0.0
  %382 = vmatpush1.msra.mxu0 0.0
  %383 = vmatprep.subr.mxu0 0.0
  %384 = vmatpush1.msra.mxu0 0.0
  %385 = vmatprep.subr.mxu0 0.0
  %386 = vmatpush1.msra.mxu0 0.0
  %387 = vmatprep.mubr.f32.mxu0 0.0
  %388 = vmatmul.mubr.f32.gmra.mrb[0].mxu0 %v25
  %v389 = vpop.f32.mrb[0].mxu0
  %v390 = vadd.f32 %v160, %v389
  %v391 = vpop.f32.mrb[0].mxu0
  %392 = vmatprep.mubr.f32.mxu0 0.0
  %393 = vmatmul.mubr.f32.gmra.mrb[0].mxu0 %v26
  %v394 = vpop.f32.mrb[0].mxu0
  %v395 = vadd.f32 %v165, %v394
  %v396 = vpop.f32.mrb[0].mxu0
  %397 = vmatprep.mubr.f32.mxu0 0.0
  %398 = vmatmul.mubr.f32.gmra.mrb[0].mxu0 %v27
  %v399 = vpop.f32.mrb[0].mxu0
  %v400 = vadd.f32 %v170, %v399
  %v401 = vpop.f32.mrb[0].mxu0
  %402 = vmatprep.mubr.f32.mxu0 0.0
  %403 = vmatmul.mubr.f32.gmra.mrb[0].mxu0 %v28
  %v404 = vpop.f32.mrb[0].mxu0
  %v405 = vadd.f32 %v175, %v404
  %v406 = vpop.f32.mrb[0].mxu0
  %407 = vmatprep.mubr.f32.mxu0 0.0
  %408 = vmatmul.mubr.f32.gmra.mrb[0].mxu0 %v29
  %v409 = vpop.f32.mrb[0].mxu0
  %v410 = vadd.f32 %v180, %v409
  %v411 = vpop.f32.mrb[0].mxu0
  %412 = vmatprep.mubr.f32.mxu0 0.0
  %413 = vmatmul.mubr.f32.gmra.mrb[0].mxu0 %v30
  %v414 = vpop.f32.mrb[0].mxu0
  %v415 = vpop.f32.mrb[0].mxu0
  %416 = vmatprep.mubr.f32.mxu0 0.0
  %417 = vmatmul.mubr.f32.gmra.mrb[0].mxu0 %v31
  %v418 = vpop.f32.mrb[0].mxu0
  %v419 = vpop.f32.mrb[0].mxu0
  %420 = vmatprep.mubr.f32.mxu0 0.0
  %421 = vmatmul.mubr.f32.gmra.mrb[0].mxu0 %v32
  %v422 = vpop.f32.mrb[0].mxu0
  %v423 = vadd.f32 %v193, %v422
  %v424 = vpop.f32.mrb[0].mxu0
  %425 = vmatprep.mubr.f32.mxu0 0.0
  %426 = vmatmul.mubr.f32.gmra.mrb[0].mxu0 %v33
  %v427 = vpop.f32.mrb[0].mxu0
  %v428 = vadd.f32 %v198, %v427
  %v429 = vpop.f32.mrb[0].mxu0
  %430 = vmatprep.mubr.f32.mxu0 0.0
  %431 = vmatmul.mubr.f32.gmra.mrb[0].mxu0 %v34
  %v432 = vpop.f32.mrb[0].mxu0
  %v433 = vadd.f32 %v203, %v432
  %v434 = vpop.f32.mrb[0].mxu0
  %435 = vmatprep.mubr.f32.mxu0 0.0
  %436 = vmatmul.mubr.f32.gmra.mrb[0].mxu0 %v35
  %v437 = vpop.f32.mrb[0].mxu0
  %v438 = vadd.f32 %v208, %v437
  %v439 = vpop.f32.mrb[0].mxu0
  %440 = vmatprep.mubr.f32.mxu0 0.0
  %441 = vmatmul.mubr.f32.gmra.mrb[0].mxu0 %v36
  %v442 = vpop.f32.mrb[0].mxu0
  %v443 = vadd.f32 %v213, %v442
  %v444 = vpop.f32.mrb[0].mxu0
  %445 = vmatprep.mubr.f32.mxu0 0.0
  %446 = vmatmul.mubr.f32.gmra.mrb[0].mxu0 %v37
  %v447 = vpop.f32.mrb[0].mxu0
  %v448 = vpop.f32.mrb[0].mxu0
  %449 = vmatprep.mubr.f32.mxu0 0.0
  %450 = vmatmul.mubr.f32.gmra.mrb[0].mxu0 %v38
  %v451 = vpop.f32.mrb[0].mxu0
  %v452 = vpop.f32.mrb[0].mxu0
  %453 = vmatprep.mubr.f32.mxu0 0.0
  %454 = vmatmul.mubr.f32.gmra.mrb[0].mxu0 %v39
  %v455 = vpop.f32.mrb[0].mxu0
  %v456 = vadd.f32 %v226, %v455
  %v457 = vpop.f32.mrb[0].mxu0
  %458 = vmatprep.mubr.f32.mxu0 0.0
  %459 = vmatmul.mubr.f32.gmra.mrb[0].mxu0 %v40
  %v460 = vpop.f32.mrb[0].mxu0
  %v461 = vadd.f32 %v231, %v460
  %v462 = vpop.f32.mrb[0].mxu0
  %463 = vmatprep.mubr.f32.mxu0 0.0
  %464 = vmatmul.mubr.f32.gmra.mrb[0].mxu0 %v41
  %v465 = vpop.f32.mrb[0].mxu0
  %v466 = vadd.f32 %v236, %v465
  %v467 = vpop.f32.mrb[0].mxu0
  %468 = vmatprep.mubr.f32.mxu0 0.0
  %469 = vmatmul.mubr.f32.gmra.mrb[0].mxu0 %v42
  %v470 = vpop.f32.mrb[0].mxu0
  %v471 = vadd.f32 %v241, %v470
  %v472 = vpop.f32.mrb[0].mxu0
  %473 = vmatprep.mubr.f32.mxu0 0.0
  %474 = vmatmul.mubr.f32.gmra.mrb[0].mxu0 %v43
  %v475 = vpop.f32.mrb[0].mxu0
  %v476 = vadd.f32 %v246, %v475
  %v477 = vpop.f32.mrb[0].mxu0
  %478 = vmatprep.mubr.f32.mxu0 0.0
  %479 = vmatmul.mubr.f32.gmra.mrb[0].mxu0 %v44
  %v480 = vpop.f32.mrb[0].mxu0
  %v481 = vpop.f32.mrb[0].mxu0
  %482 = vmatprep.mubr.f32.mxu0 0.0
  %483 = vmatmul.mubr.f32.gmra.mrb[0].mxu0 %v45
  %v484 = vpop.f32.mrb[0].mxu0
  %v485 = vpop.f32.mrb[0].mxu0
  %486 = vmatprep.mubr.f32.mxu0 0.0
  %487 = vmatmul.mubr.f32.gmra.mrb[0].mxu0 %v46
  %v488 = vpop.f32.mrb[0].mxu0
  %v489 = vadd.f32 %v259, %v488
  %v490 = vpop.f32.mrb[0].mxu0
  %491 = vmatprep.mubr.f32.mxu0 0.0
  %492 = vmatmul.mubr.f32.gmra.mrb[0].mxu0 %v47
  %v493 = vpop.f32.mrb[0].mxu0
  %v494 = vadd.f32 %v264, %v493
  %v495 = vpop.f32.mrb[0].mxu0
  %496 = vmatprep.mubr.f32.mxu0 0.0
  %497 = vmatmul.mubr.f32.gmra.mrb[0].mxu0 %v48
  %v498 = vpop.f32.mrb[0].mxu0
  %v499 = vadd.f32 %v269, %v498
  %v500 = vpop.f32.mrb[0].mxu0
  %501 = vmatprep.mubr.f32.mxu0 0.0
  %502 = vmatmul.mubr.f32.gmra.mrb[0].mxu0 %v49
  %v503 = vpop.f32.mrb[0].mxu0
  %v504 = vadd.f32 %v274, %v503
  %v505 = vpop.f32.mrb[0].mxu0
  %506 = vmatprep.mubr.f32.mxu0 0.0
  %507 = vmatmul.mubr.f32.gmra.mrb[0].mxu0 %v50
  %v508 = vpop.f32.mrb[0].mxu0
  %v509 = vadd.f32 %v279, %v508
  %v510 = vpop.f32.mrb[0].mxu0
  %511 = vmatprep.mubr.f32.mxu0 0.0
  %512 = vmatmul.mubr.f32.gmra.mrb[0].mxu0 %v51
  %v513 = vpop.f32.mrb[0].mxu0
  %v514 = vpop.f32.mrb[0].mxu0
  %515 = vmatprep.mubr.f32.mxu0 0.0
  %516 = vmatmul.mubr.f32.gmra.mrb[0].mxu0 %v52
  %v517 = vpop.f32.mrb[0].mxu0
  %v518 = vpop.f32.mrb[0].mxu0
  %519 = vmatprep.mubr.f32.mxu0 0.0
  %520 = vmatmul.mubr.f32.gmra.mrb[0].mxu0 %v53
  %v521 = vpop.f32.mrb[0].mxu0
  %v522 = vadd.f32 %v292, %v521
  %v523 = vpop.f32.mrb[0].mxu0
  %524 = vmatprep.mubr.f32.mxu0 0.0
  %525 = vmatmul.mubr.f32.gmra.mrb[0].mxu0 %v54
  %v526 = vpop.f32.mrb[0].mxu0
  %v527 = vadd.f32 %v297, %v526
  %v528 = vpop.f32.mrb[0].mxu0
  %529 = vmatprep.mubr.f32.mxu0 0.0
  %530 = vmatmul.mubr.f32.gmra.mrb[0].mxu0 %v55
  %v531 = vpop.f32.mrb[0].mxu0
  %v532 = vadd.f32 %v302, %v531
  %v533 = vpop.f32.mrb[0].mxu0
  %534 = vmatprep.mubr.f32.mxu0 0.0
  %535 = vmatmul.mubr.f32.gmra.mrb[0].mxu0 %v56
  %v536 = vpop.f32.mrb[0].mxu0
  %v537 = vadd.f32 %v307, %v536
  %v538 = vpop.f32.mrb[0].mxu0
  %539 = vmatprep.mubr.f32.mxu0 0.0
  %540 = vmatmul.mubr.f32.gmra.mrb[0].mxu0 %v57
  %v541 = vpop.f32.mrb[0].mxu0
  %v542 = vadd.f32 %v312, %v541
  %v543 = vpop.f32.mrb[0].mxu0
  %544 = vmatprep.mubr.f32.mxu0 0.0
  %545 = vmatmul.mubr.f32.gmra.mrb[0].mxu0 %v58
  %v546 = vpop.f32.mrb[0].mxu0
  %v547 = vpop.f32.mrb[0].mxu0
  %548 = vmatprep.mubr.f32.mxu0 0.0
  %549 = vmatmul.mubr.f32.gmra.mrb[0].mxu0 %v59
  %v550 = vpop.f32.mrb[0].mxu0
  %v551 = vpop.f32.mrb[0].mxu0
  %552 = vdwg.mxu0
  %v553 = vld [vmem:[%s0 + $0x10] sm:$0xff]
  %v554 = vld [vmem:[%s0 + $0x18] sm:$0xff]
  %v555 = vld [vmem:[%s0 + $0x20] sm:$0xff]
  %v556 = vld [vmem:[%s0 + $0x28] sm:$0xff]
  %v557 = vld [vmem:[%s0 + $0x30] sm:$0xff]
  %v558 = vld [vmem:[%s0 + $0x38] sm:$0xff]
  %v559 = vld [vmem:[%s0 + $0x40] sm:$0xff]
  %v560 = vld [vmem:[%s0 + $0x48] sm:$0xff]
  %v561 = vld [vmem:[%s0 + $0x50] sm:$0xff]
  %v562 = vld [vmem:[%s0 + $0x58] sm:$0xff]
  %v563 = vld [vmem:[%s0 + $0x60] sm:$0xff]
  %v564 = vld [vmem:[%s0 + $0x68] sm:$0xff]
  %v565 = vld [vmem:[%s0 + $0x70] sm:$0xff]
  %v566 = vld [vmem:[%s0 + $0x78] sm:$0xff]
  %v567 = vld [vmem:[%s0 + $0x80] sm:$0xff]
  %v568 = vld [vmem:[%s0 + $0x88] sm:$0xff]
  %v569 = vld [vmem:[%s0 + $0x90] sm:$0xff]
  %v570 = vld [vmem:[%s0 + $0x98] sm:$0xff]
  %v571 = vld [vmem:[%s0 + $0xa0] sm:$0xff]
  %v572 = vld [vmem:[%s0 + $0xa8] sm:$0xff]
  %v573 = vld [vmem:[%s0 + $0xb0] sm:$0xff]
  %v574 = vld [vmem:[%s0 + $0xb8] sm:$0xff]
  %v575 = vld [vmem:[%s0 + $0xc0] sm:$0xff]
  %v576 = vld [vmem:[%s0 + $0xc8] sm:$0xff]
  %v577 = vld [vmem:[%s0 + $0xd0] sm:$0xff]
  %v578 = vld [vmem:[%s0 + $0xd8] sm:$0xff]
  %v579 = vld [vmem:[%s0 + $0xe0] sm:$0xff]
  %v580 = vld [vmem:[%s0 + $0xe8] sm:$0xff]
  %v581 = vld [vmem:[%s0 + $0xf0] sm:$0xff]
  %v582 = vld [vmem:[%s0 + $0xf8] sm:$0xff]
  %v583 = vld [vmem:[%s0 + $0x100] sm:$0xff]
  %v584 = vld [vmem:[%s0 + $0x108] sm:$0xff]
  %v585 = vld [vmem:[%s0 + $0x110] sm:$0xff]
  %v586 = vld [vmem:[%s0 + $0x118] sm:$0xff]
  %v587 = vld [vmem:[%s0 + $0x120] sm:$0xff]
  %v588 = vld [vmem:[%s1 + $0x100] sm:$0xff]
  %v589 = vld [vmem:[%s1 + $0x108] sm:$0xff]
  %v590 = vld [vmem:[%s1 + $0x110] sm:$0xff]
  %v591 = vld [vmem:[%s1 + $0x118] sm:$0xff]
  %v592 = vld [vmem:[%s1 + $0x120] sm:$0xff]
  %v593 = vld [vmem:[%s1 + $0x128] sm:$0xff]
  %v594 = vld [vmem:[%s1 + $0x130] sm:$0xff]
  %v595 = vld [vmem:[%s1 + $0x138] sm:$0xff]
  %v596 = vld [vmem:[%s1 + $0x140] sm:$0xff]
  %v597 = vld [vmem:[%s1 + $0x148] sm:$0xff]
  %v598 = vld [vmem:[%s1 + $0x150] sm:$0xff]
  %v599 = vld [vmem:[%s1 + $0x158] sm:$0xff]
  %v600 = vld [vmem:[%s1 + $0x160] sm:$0xff]
  %v601 = vld [vmem:[%s1 + $0x168] sm:$0xff]
  %v602 = vld [vmem:[%s1 + $0x170] sm:$0xff]
  %v603 = vld [vmem:[%s1 + $0x178] sm:$0xff]
  %604 = vmatprep.subr.mxu0 0.0
  %605 = vmatpush1.msra.mxu0 %v588
  %606 = vmatprep.subr.mxu0 0.0
  %607 = vmatpush1.msra.mxu0 %v589
  %608 = vmatprep.subr.mxu0 0.0
  %609 = vmatpush1.msra.mxu0 %v590
  %610 = vmatprep.subr.mxu0 0.0
  %611 = vmatpush1.msra.mxu0 %v591
  %612 = vmatprep.subr.mxu0 0.0
  %613 = vmatpush1.msra.mxu0 %v592
  %614 = vmatprep.subr.mxu0 0.0
  %615 = vmatpush1.msra.mxu0 %v593
  %616 = vmatprep.subr.mxu0 0.0
  %617 = vmatpush1.msra.mxu0 %v594
  %618 = vmatprep.subr.mxu0 0.0
  %619 = vmatpush1.msra.mxu0 %v595
  %620 = vmatprep.subr.mxu0 0.0
  %621 = vmatpush1.msra.mxu0 %v596
  %622 = vmatprep.subr.mxu0 0.0
  %623 = vmatpush1.msra.mxu0 %v597
  %624 = vmatprep.subr.mxu0 0.0
  %625 = vmatpush1.msra.mxu0 %v598
  %626 = vmatprep.subr.mxu0 0.0
  %627 = vmatpush1.msra.mxu0 %v599
  %628 = vmatprep.subr.mxu0 0.0
  %629 = vmatpush1.msra.mxu0 %v600
  %630 = vmatprep.subr.mxu0 0.0
  %631 = vmatpush1.msra.mxu0 %v601
  %632 = vmatprep.subr.mxu0 0.0
  %633 = vmatpush1.msra.mxu0 %v602
  %634 = vmatprep.subr.mxu0 0.0
  %635 = vmatpush1.msra.mxu0 %v603
  %636 = vmatprep.subr.mxu0 0.0
  %637 = vmatpush1.msra.mxu0 0.0
  %638 = vmatprep.subr.mxu0 0.0
  %639 = vmatpush1.msra.mxu0 0.0
  %640 = vmatprep.subr.mxu0 0.0
  %641 = vmatpush1.msra.mxu0 0.0
  %642 = vmatprep.subr.mxu0 0.0
  %643 = vmatpush1.msra.mxu0 0.0
  %644 = vmatprep.subr.mxu0 0.0
  %645 = vmatpush1.msra.mxu0 0.0
  %646 = vmatprep.subr.mxu0 0.0
  %647 = vmatpush1.msra.mxu0 0.0
  %648 = vmatprep.subr.mxu0 0.0
  %649 = vmatpush1.msra.mxu0 0.0
  %650 = vmatprep.subr.mxu0 0.0
  %651 = vmatpush1.msra.mxu0 0.0
  %652 = vmatprep.subr.mxu0 0.0
  %653 = vmatpush1.msra.mxu0 0.0
  %654 = vmatprep.subr.mxu0 0.0
  %655 = vmatpush1.msra.mxu0 0.0
  %656 = vmatprep.subr.mxu0 0.0
  %657 = vmatpush1.msra.mxu0 0.0
  %658 = vmatprep.subr.mxu0 0.0
  %659 = vmatpush1.msra.mxu0 0.0
  %660 = vmatprep.subr.mxu0 0.0
  %661 = vmatpush1.msra.mxu0 0.0
  %662 = vmatprep.subr.mxu0 0.0
  %663 = vmatpush1.msra.mxu0 0.0
  %664 = vmatprep.subr.mxu0 0.0
  %665 = vmatpush1.msra.mxu0 0.0
  %666 = vmatprep.subr.mxu0 0.0
  %667 = vmatpush1.msra.mxu0 0.0
  %668 = vmatprep.mubr.f32.mxu0 0.0
  %669 = vmatmul.mubr.f32.gmra.mrb[0].mxu0 %v553
  %v670 = vpop.f32.mrb[0].mxu0
  %v671 = vadd.f32 0.0, %v670
  %v672 = vpop.f32.mrb[0].mxu0
  %673 = vmatprep.mubr.f32.mxu0 0.0
  %674 = vmatmul.mubr.f32.gmra.mrb[0].mxu0 %v554
  %v675 = vpop.f32.mrb[0].mxu0
  %v676 = vadd.f32 0.0, %v675
  %v677 = vpop.f32.mrb[0].mxu0
  %678 = vmatprep.mubr.f32.mxu0 0.0
  %679 = vmatmul.mubr.f32.gmra.mrb[0].mxu0 %v555
  %v680 = vpop.f32.mrb[0].mxu0
  %v681 = vadd.f32 0.0, %v680
  %v682 = vpop.f32.mrb[0].mxu0
  %683 = vmatprep.mubr.f32.mxu0 0.0
  %684 = vmatmul.mubr.f32.gmra.mrb[0].mxu0 %v556
  %v685 = vpop.f32.mrb[0].mxu0
  %v686 = vadd.f32 0.0, %v685
  %v687 = vpop.f32.mrb[0].mxu0
  %688 = vmatprep.mubr.f32.mxu0 0.0
  %689 = vmatmul.mubr.f32.gmra.mrb[0].mxu0 %v557
  %v690 = vpop.f32.mrb[0].mxu0
  %v691 = vadd.f32 0.0, %v690
  %v692 = vpop.f32.mrb[0].mxu0
  %693 = vmatprep.mubr.f32.mxu0 0.0
  %694 = vmatmul.mubr.f32.gmra.mrb[0].mxu0 %v558
  %v695 = vpop.f32.mrb[0].mxu0
  %v696 = vpop.f32.mrb[0].mxu0
  %697 = vmatprep.mubr.f32.mxu0 0.0
  %698 = vmatmul.mubr.f32.gmra.mrb[0].mxu0 %v559
  %v699 = vpop.f32.mrb[0].mxu0
  %v700 = vpop.f32.mrb[0].mxu0
  %701 = vmatprep.mubr.f32.mxu0 0.0
  %702 = vmatmul.mubr.f32.gmra.mrb[0].mxu0 %v560
  %v703 = vpop.f32.mrb[0].mxu0
  %v704 = vadd.f32 0.0, %v703
  %v705 = vpop.f32.mrb[0].mxu0
  %706 = vmatprep.mubr.f32.mxu0 0.0
  %707 = vmatmul.mubr.f32.gmra.mrb[0].mxu0 %v561
  %v708 = vpop.f32.mrb[0].mxu0
  %v709 = vadd.f32 0.0, %v708
  %v710 = vpop.f32.mrb[0].mxu0
  %711 = vmatprep.mubr.f32.mxu0 0.0
  %712 = vmatmul.mubr.f32.gmra.mrb[0].mxu0 %v562
  %v713 = vpop.f32.mrb[0].mxu0
  %v714 = vadd.f32 0.0, %v713
  %v715 = vpop.f32.mrb[0].mxu0
  %716 = vmatprep.mubr.f32.mxu0 0.0
  %717 = vmatmul.mubr.f32.gmra.mrb[0].mxu0 %v563
  %v718 = vpop.f32.mrb[0].mxu0
  %v719 = vadd.f32 0.0, %v718
  %v720 = vpop.f32.mrb[0].mxu0
  %721 = vmatprep.mubr.f32.mxu0 0.0
  %722 = vmatmul.mubr.f32.gmra.mrb[0].mxu0 %v564
  %v723 = vpop.f32.mrb[0].mxu0
  %v724 = vadd.f32 0.0, %v723
  %v725 = vpop.f32.mrb[0].mxu0
  %726 = vmatprep.mubr.f32.mxu0 0.0
  %727 = vmatmul.mubr.f32.gmra.mrb[0].mxu0 %v565
  %v728 = vpop.f32.mrb[0].mxu0
  %v729 = vpop.f32.mrb[0].mxu0
  %730 = vmatprep.mubr.f32.mxu0 0.0
  %731 = vmatmul.mubr.f32.gmra.mrb[0].mxu0 %v566
  %v732 = vpop.f32.mrb[0].mxu0
  %v733 = vpop.f32.mrb[0].mxu0
  %734 = vmatprep.mubr.f32.mxu0 0.0
  %735 = vmatmul.mubr.f32.gmra.mrb[0].mxu0 %v567
  %v736 = vpop.f32.mrb[0].mxu0
  %v737 = vadd.f32 0.0, %v736
  %v738 = vpop.f32.mrb[0].mxu0
  %739 = vmatprep.mubr.f32.mxu0 0.0
  %740 = vmatmul.mubr.f32.gmra.mrb[0].mxu0 %v568
  %v741 = vpop.f32.mrb[0].mxu0
  %v742 = vadd.f32 0.0, %v741
  %v743 = vpop.f32.mrb[0].mxu0
  %744 = vmatprep.mubr.f32.mxu0 0.0
  %745 = vmatmul.mubr.f32.gmra.mrb[0].mxu0 %v569
  %v746 = vpop.f32.mrb[0].mxu0
  %v747 = vadd.f32 0.0, %v746
  %v748 = vpop.f32.mrb[0].mxu0
  %749 = vmatprep.mubr.f32.mxu0 0.0
  %750 = vmatmul.mubr.f32.gmra.mrb[0].mxu0 %v570
  %v751 = vpop.f32.mrb[0].mxu0
  %v752 = vadd.f32 0.0, %v751
  %v753 = vpop.f32.mrb[0].mxu0
  %754 = vmatprep.mubr.f32.mxu0 0.0
  %755 = vmatmul.mubr.f32.gmra.mrb[0].mxu0 %v571
  %v756 = vpop.f32.mrb[0].mxu0
  %v757 = vadd.f32 0.0, %v756
  %v758 = vpop.f32.mrb[0].mxu0
  %759 = vmatprep.mubr.f32.mxu0 0.0
  %760 = vmatmul.mubr.f32.gmra.mrb[0].mxu0 %v572
  %v761 = vpop.f32.mrb[0].mxu0
  %v762 = vpop.f32.mrb[0].mxu0
  %763 = vmatprep.mubr.f32.mxu0 0.0
  %764 = vmatmul.mubr.f32.gmra.mrb[0].mxu0 %v573
  %v765 = vpop.f32.mrb[0].mxu0
  %v766 = vpop.f32.mrb[0].mxu0
  %767 = vmatprep.mubr.f32.mxu0 0.0
  %768 = vmatmul.mubr.f32.gmra.mrb[0].mxu0 %v574
  %v769 = vpop.f32.mrb[0].mxu0
  %v770 = vadd.f32 0.0, %v769
  %v771 = vpop.f32.mrb[0].mxu0
  %772 = vmatprep.mubr.f32.mxu0 0.0
  %773 = vmatmul.mubr.f32.gmra.mrb[0].mxu0 %v575
  %v774 = vpop.f32.mrb[0].mxu0
  %v775 = vadd.f32 0.0, %v774
  %v776 = vpop.f32.mrb[0].mxu0
  %777 = vmatprep.mubr.f32.mxu0 0.0
  %778 = vmatmul.mubr.f32.gmra.mrb[0].mxu0 %v576
  %v779 = vpop.f32.mrb[0].mxu0
  %v780 = vadd.f32 0.0, %v779
  %v781 = vpop.f32.mrb[0].mxu0
  %782 = vmatprep.mubr.f32.mxu0 0.0
  %783 = vmatmul.mubr.f32.gmra.mrb[0].mxu0 %v577
  %v784 = vpop.f32.mrb[0].mxu0
  %v785 = vadd.f32 0.0, %v784
  %v786 = vpop.f32.mrb[0].mxu0
  %787 = vmatprep.mubr.f32.mxu0 0.0
  %788 = vmatmul.mubr.f32.gmra.mrb[0].mxu0 %v578
  %v789 = vpop.f32.mrb[0].mxu0
  %v790 = vadd.f32 0.0, %v789
  %v791 = vpop.f32.mrb[0].mxu0
  %792 = vmatprep.mubr.f32.mxu0 0.0
  %793 = vmatmul.mubr.f32.gmra.mrb[0].mxu0 %v579
  %v794 = vpop.f32.mrb[0].mxu0
  %v795 = vpop.f32.mrb[0].mxu0
  %796 = vmatprep.mubr.f32.mxu0 0.0
  %797 = vmatmul.mubr.f32.gmra.mrb[0].mxu0 %v580
  %v798 = vpop.f32.mrb[0].mxu0
  %v799 = vpop.f32.mrb[0].mxu0
  %800 = vmatprep.mubr.f32.mxu0 0.0
  %801 = vmatmul.mubr.f32.gmra.mrb[0].mxu0 %v581
  %v802 = vpop.f32.mrb[0].mxu0
  %v803 = vadd.f32 0.0, %v802
  %v804 = vpop.f32.mrb[0].mxu0
  %805 = vmatprep.mubr.f32.mxu0 0.0
  %806 = vmatmul.mubr.f32.gmra.mrb[0].mxu0 %v582
  %v807 = vpop.f32.mrb[0].mxu0
  %v808 = vadd.f32 0.0, %v807
  %v809 = vpop.f32.mrb[0].mxu0
  %810 = vmatprep.mubr.f32.mxu0 0.0
  %811 = vmatmul.mubr.f32.gmra.mrb[0].mxu0 %v583
  %v812 = vpop.f32.mrb[0].mxu0
  %v813 = vadd.f32 0.0, %v812
  %v814 = vpop.f32.mrb[0].mxu0
  %815 = vmatprep.mubr.f32.mxu0 0.0
  %816 = vmatmul.mubr.f32.gmra.mrb[0].mxu0 %v584
  %v817 = vpop.f32.mrb[0].mxu0
  %v818 = vadd.f32 0.0, %v817
  %v819 = vpop.f32.mrb[0].mxu0
  %820 = vmatprep.mubr.f32.mxu0 0.0
  %821 = vmatmul.mubr.f32.gmra.mrb[0].mxu0 %v585
  %v822 = vpop.f32.mrb[0].mxu0
  %v823 = vadd.f32 0.0, %v822
  %v824 = vpop.f32.mrb[0].mxu0
  %825 = vmatprep.mubr.f32.mxu0 0.0
  %826 = vmatmul.mubr.f32.gmra.mrb[0].mxu0 %v586
  %v827 = vpop.f32.mrb[0].mxu0
  %v828 = vpop.f32.mrb[0].mxu0
  %829 = vmatprep.mubr.f32.mxu0 0.0
  %830 = vmatmul.mubr.f32.gmra.mrb[0].mxu0 %v587
  %v831 = vpop.f32.mrb[0].mxu0
  %v832 = vpop.f32.mrb[0].mxu0
  %833 = vdwg.mxu0
  %v834 = vadd.f32 %v390, %v671
  %v835 = vadd.f32 %v395, %v676
  %v836 = vadd.f32 %v400, %v681
  %v837 = vadd.f32 %v405, %v686
  %v838 = vadd.f32 %v410, %v691
  %v839 = vadd.f32 %v423, %v704
  %v840 = vadd.f32 %v428, %v709
  %v841 = vadd.f32 %v433, %v714
  %v842 = vadd.f32 %v438, %v719
  %v843 = vadd.f32 %v443, %v724
  %v844 = vadd.f32 %v456, %v737
  %v845 = vadd.f32 %v461, %v742
  %v846 = vadd.f32 %v466, %v747
  %v847 = vadd.f32 %v471, %v752
  %v848 = vadd.f32 %v476, %v757
  %v849 = vadd.f32 %v489, %v770
  %v850 = vadd.f32 %v494, %v775
  %v851 = vadd.f32 %v499, %v780
  %v852 = vadd.f32 %v504, %v785
  %v853 = vadd.f32 %v509, %v790
  %v854 = vadd.f32 %v522, %v803
  %v855 = vadd.f32 %v527, %v808
  %v856 = vadd.f32 %v532, %v813
  %v857 = vadd.f32 %v537, %v818
  %v858 = vadd.f32 %v542, %v823
  %v859 = vld [vmem:[%s0 + $0x38] sm:$0xff]
  %v860 = vld [vmem:[%s0 + $0x40] sm:$0xff]
  %v861 = vld [vmem:[%s0 + $0x48] sm:$0xff]
  %v862 = vld [vmem:[%s0 + $0x50] sm:$0xff]
  %v863 = vld [vmem:[%s0 + $0x58] sm:$0xff]
  %v864 = vld [vmem:[%s0 + $0x60] sm:$0xff]
  %v865 = vld [vmem:[%s0 + $0x68] sm:$0xff]
  %v866 = vld [vmem:[%s0 + $0x70] sm:$0xff]
  %v867 = vld [vmem:[%s0 + $0x78] sm:$0xff]
  %v868 = vld [vmem:[%s0 + $0x80] sm:$0xff]
  %v869 = vld [vmem:[%s0 + $0x88] sm:$0xff]
  %v870 = vld [vmem:[%s0 + $0x90] sm:$0xff]
  %v871 = vld [vmem:[%s0 + $0x98] sm:$0xff]
  %v872 = vld [vmem:[%s0 + $0xa0] sm:$0xff]
  %v873 = vld [vmem:[%s0 + $0xa8] sm:$0xff]
  %v874 = vld [vmem:[%s0 + $0xb0] sm:$0xff]
  %v875 = vld [vmem:[%s0 + $0xb8] sm:$0xff]
  %v876 = vld [vmem:[%s0 + $0xc0] sm:$0xff]
  %v877 = vld [vmem:[%s0 + $0xc8] sm:$0xff]
  %v878 = vld [vmem:[%s0 + $0xd0] sm:$0xff]
  %v879 = vld [vmem:[%s0 + $0xd8] sm:$0xff]
  %v880 = vld [vmem:[%s0 + $0xe0] sm:$0xff]
  %v881 = vld [vmem:[%s0 + $0xe8] sm:$0xff]
  %v882 = vld [vmem:[%s0 + $0xf0] sm:$0xff]
  %v883 = vld [vmem:[%s0 + $0xf8] sm:$0xff]
  %v884 = vld [vmem:[%s0 + $0x100] sm:$0xff]
  %v885 = vld [vmem:[%s0 + $0x108] sm:$0xff]
  %v886 = vld [vmem:[%s0 + $0x110] sm:$0xff]
  %v887 = vld [vmem:[%s0 + $0x118] sm:$0xff]
  %v888 = vld [vmem:[%s0 + $0x120] sm:$0xff]
  %v889 = vld [vmem:[%s0 + $0x128] sm:$0xff]
  %v890 = vld [vmem:[%s0 + $0x130] sm:$0xff]
  %v891 = vld [vmem:[%s0 + $0x138] sm:$0xff]
  %v892 = vld [vmem:[%s0 + $0x140] sm:$0xff]
  %v893 = vld [vmem:[%s0 + $0x148] sm:$0xff]
  %v894 = vld [vmem:[%s1 + $0x180] sm:$0xff]
  %v895 = vld [vmem:[%s1 + $0x188] sm:$0xff]
  %v896 = vld [vmem:[%s1 + $0x190] sm:$0xff]
  %v897 = vld [vmem:[%s1 + $0x198] sm:$0xff]
  %v898 = vld [vmem:[%s1 + $0x1a0] sm:$0xff]
  %v899 = vld [vmem:[%s1 + $0x1a8] sm:$0xff]
  %v900 = vld [vmem:[%s1 + $0x1b0] sm:$0xff]
  %v901 = vld [vmem:[%s1 + $0x1b8] sm:$0xff]
  %v902 = vld [vmem:[%s1 + $0x1c0] sm:$0xff]
  %v903 = vld [vmem:[%s1 + $0x1c8] sm:$0xff]
  %v904 = vld [vmem:[%s1 + $0x1d0] sm:$0xff]
  %v905 = vld [vmem:[%s1 + $0x1d8] sm:$0xff]
  %v906 = vld [vmem:[%s1 + $0x1e0] sm:$0xff]
  %v907 = vld [vmem:[%s1 + $0x1e8] sm:$0xff]
  %v908 = vld [vmem:[%s1 + $0x1f0] sm:$0xff]
  %v909 = vld [vmem:[%s1 + $0x1f8] sm:$0xff]
  %910 = vmatprep.subr.mxu0 0.0
  %911 = vmatpush1.msra.mxu0 %v894
  %912 = vmatprep.subr.mxu0 0.0
  %913 = vmatpush1.msra.mxu0 %v895
  %914 = vmatprep.subr.mxu0 0.0
  %915 = vmatpush1.msra.mxu0 %v896
  %916 = vmatprep.subr.mxu0 0.0
  %917 = vmatpush1.msra.mxu0 %v897
  %918 = vmatprep.subr.mxu0 0.0
  %919 = vmatpush1.msra.mxu0 %v898
  %920 = vmatprep.subr.mxu0 0.0
  %921 = vmatpush1.msra.mxu0 %v899
  %922 = vmatprep.subr.mxu0 0.0
  %923 = vmatpush1.msra.mxu0 %v900
  %924 = vmatprep.subr.mxu0 0.0
  %925 = vmatpush1.msra.mxu0 %v901
  %926 = vmatprep.subr.mxu0 0.0
  %927 = vmatpush1.msra.mxu0 %v902
  %928 = vmatprep.subr.mxu0 0.0
  %929 = vmatpush1.msra.mxu0 %v903
  %930 = vmatprep.subr.mxu0 0.0
  %931 = vmatpush1.msra.mxu0 %v904
  %932 = vmatprep.subr.mxu0 0.0
  %933 = vmatpush1.msra.mxu0 %v905
  %934 = vmatprep.subr.mxu0 0.0
  %935 = vmatpush1.msra.mxu0 %v906
  %936 = vmatprep.subr.mxu0 0.0
  %937 = vmatpush1.msra.mxu0 %v907
  %938 = vmatprep.subr.mxu0 0.0
  %939 = vmatpush1.msra.mxu0 %v908
  %940 = vmatprep.subr.mxu0 0.0
  %941 = vmatpush1.msra.mxu0 %v909
  %942 = vmatprep.subr.mxu0 0.0
  %943 = vmatpush1.msra.mxu0 0.0
  %944 = vmatprep.subr.mxu0 0.0
  %945 = vmatpush1.msra.mxu0 0.0
  %946 = vmatprep.subr.mxu0 0.0
  %947 = vmatpush1.msra.mxu0 0.0
  %948 = vmatprep.subr.mxu0 0.0
  %949 = vmatpush1.msra.mxu0 0.0
  %950 = vmatprep.subr.mxu0 0.0
  %951 = vmatpush1.msra.mxu0 0.0
  %952 = vmatprep.subr.mxu0 0.0
  %953 = vmatpush1.msra.mxu0 0.0
  %954 = vmatprep.subr.mxu0 0.0
  %955 = vmatpush1.msra.mxu0 0.0
  %956 = vmatprep.subr.mxu0 0.0
  %957 = vmatpush1.msra.mxu0 0.0
  %958 = vmatprep.subr.mxu0 0.0
  %959 = vmatpush1.msra.mxu0 0.0
  %960 = vmatprep.subr.mxu0 0.0
  %961 = vmatpush1.msra.mxu0 0.0
  %962 = vmatprep.subr.mxu0 0.0
  %963 = vmatpush1.msra.mxu0 0.0
  %964 = vmatprep.subr.mxu0 0.0
  %965 = vmatpush1.msra.mxu0 0.0
  %966 = vmatprep.subr.mxu0 0.0
  %967 = vmatpush1.msra.mxu0 0.0
  %968 = vmatprep.subr.mxu0 0.0
  %969 = vmatpush1.msra.mxu0 0.0
  %970 = vmatprep.subr.mxu0 0.0
  %971 = vmatpush1.msra.mxu0 0.0
  %972 = vmatprep.subr.mxu0 0.0
  %973 = vmatpush1.msra.mxu0 0.0
  %974 = vmatprep.mubr.f32.mxu0 0.0
  %975 = vmatmul.mubr.f32.gmra.mrb[0].mxu0 %v859
  %v976 = vpop.f32.mrb[0].mxu0
  %v977 = vadd.f32 0.0, %v976
  %v978 = vpop.f32.mrb[0].mxu0
  %979 = vmatprep.mubr.f32.mxu0 0.0
  %980 = vmatmul.mubr.f32.gmra.mrb[0].mxu0 %v860
  %v981 = vpop.f32.mrb[0].mxu0
  %v982 = vadd.f32 0.0, %v981
  %v983 = vpop.f32.mrb[0].mxu0
  %984 = vmatprep.mubr.f32.mxu0 0.0
  %985 = vmatmul.mubr.f32.gmra.mrb[0].mxu0 %v861
  %v986 = vpop.f32.mrb[0].mxu0
  %v987 = vadd.f32 0.0, %v986
  %v988 = vpop.f32.mrb[0].mxu0
  %989 = vmatprep.mubr.f32.mxu0 0.0
  %990 = vmatmul.mubr.f32.gmra.mrb[0].mxu0 %v862
  %v991 = vpop.f32.mrb[0].mxu0
  %v992 = vadd.f32 0.0, %v991
  %v993 = vpop.f32.mrb[0].mxu0
  %994 = vmatprep.mubr.f32.mxu0 0.0
  %995 = vmatmul.mubr.f32.gmra.mrb[0].mxu0 %v863
  %v996 = vpop.f32.mrb[0].mxu0
  %v997 = vadd.f32 0.0, %v996
  %v998 = vpop.f32.mrb[0].mxu0
  %999 = vmatprep.mubr.f32.mxu0 0.0
  %1000 = vmatmul.mubr.f32.gmra.mrb[0].mxu0 %v864
  %v1001 = vpop.f32.mrb[0].mxu0
  %v1002 = vpop.f32.mrb[0].mxu0
  %1003 = vmatprep.mubr.f32.mxu0 0.0
  %1004 = vmatmul.mubr.f32.gmra.mrb[0].mxu0 %v865
  %v1005 = vpop.f32.mrb[0].mxu0
  %v1006 = vpop.f32.mrb[0].mxu0
  %1007 = vmatprep.mubr.f32.mxu0 0.0
  %1008 = vmatmul.mubr.f32.gmra.mrb[0].mxu0 %v866
  %v1009 = vpop.f32.mrb[0].mxu0
  %v1010 = vadd.f32 0.0, %v1009
  %v1011 = vpop.f32.mrb[0].mxu0
  %1012 = vmatprep.mubr.f32.mxu0 0.0
  %1013 = vmatmul.mubr.f32.gmra.mrb[0].mxu0 %v867
  %v1014 = vpop.f32.mrb[0].mxu0
  %v1015 = vadd.f32 0.0, %v1014
  %v1016 = vpop.f32.mrb[0].mxu0
  %1017 = vmatprep.mubr.f32.mxu0 0.0
  %1018 = vmatmul.mubr.f32.gmra.mrb[0].mxu0 %v868
  %v1019 = vpop.f32.mrb[0].mxu0
  %v1020 = vadd.f32 0.0, %v1019
  %v1021 = vpop.f32.mrb[0].mxu0
  %1022 = vmatprep.mubr.f32.mxu0 0.0
  %1023 = vmatmul.mubr.f32.gmra.mrb[0].mxu0 %v869
  %v1024 = vpop.f32.mrb[0].mxu0
  %v1025 = vadd.f32 0.0, %v1024
  %v1026 = vpop.f32.mrb[0].mxu0
  %1027 = vmatprep.mubr.f32.mxu0 0.0
  %1028 = vmatmul.mubr.f32.gmra.mrb[0].mxu0 %v870
  %v1029 = vpop.f32.mrb[0].mxu0
  %v1030 = vadd.f32 0.0, %v1029
  %v1031 = vpop.f32.mrb[0].mxu0
  %1032 = vmatprep.mubr.f32.mxu0 0.0
  %1033 = vmatmul.mubr.f32.gmra.mrb[0].mxu0 %v871
  %v1034 = vpop.f32.mrb[0].mxu0
  %v1035 = vpop.f32.mrb[0].mxu0
  %1036 = vmatprep.mubr.f32.mxu0 0.0
  %1037 = vmatmul.mubr.f32.gmra.mrb[0].mxu0 %v872
  %v1038 = vpop.f32.mrb[0].mxu0
  %v1039 = vpop.f32.mrb[0].mxu0
  %1040 = vmatprep.mubr.f32.mxu0 0.0
  %1041 = vmatmul.mubr.f32.gmra.mrb[0].mxu0 %v873
  %v1042 = vpop.f32.mrb[0].mxu0
  %v1043 = vadd.f32 0.0, %v1042
  %v1044 = vpop.f32.mrb[0].mxu0
  %1045 = vmatprep.mubr.f32.mxu0 0.0
  %1046 = vmatmul.mubr.f32.gmra.mrb[0].mxu0 %v874
  %v1047 = vpop.f32.mrb[0].mxu0
  %v1048 = vadd.f32 0.0, %v1047
  %v1049 = vpop.f32.mrb[0].mxu0
  %1050 = vmatprep.mubr.f32.mxu0 0.0
  %1051 = vmatmul.mubr.f32.gmra.mrb[0].mxu0 %v875
  %v1052 = vpop.f32.mrb[0].mxu0
  %v1053 = vadd.f32 0.0, %v1052
  %v1054 = vpop.f32.mrb[0].mxu0
  %1055 = vmatprep.mubr.f32.mxu0 0.0
  %1056 = vmatmul.mubr.f32.gmra.mrb[0].mxu0 %v876
  %v1057 = vpop.f32.mrb[0].mxu0
  %v1058 = vadd.f32 0.0, %v1057
  %v1059 = vpop.f32.mrb[0].mxu0
  %1060 = vmatprep.mubr.f32.mxu0 0.0
  %1061 = vmatmul.mubr.f32.gmra.mrb[0].mxu0 %v877
  %v1062 = vpop.f32.mrb[0].mxu0
  %v1063 = vadd.f32 0.0, %v1062
  %v1064 = vpop.f32.mrb[0].mxu0
  %1065 = vmatprep.mubr.f32.mxu0 0.0
  %1066 = vmatmul.mubr.f32.gmra.mrb[0].mxu0 %v878
  %v1067 = vpop.f32.mrb[0].mxu0
  %v1068 = vpop.f32.mrb[0].mxu0
  %1069 = vmatprep.mubr.f32.mxu0 0.0
  %1070 = vmatmul.mubr.f32.gmra.mrb[0].mxu0 %v879
  %v1071 = vpop.f32.mrb[0].mxu0
  %v1072 = vpop.f32.mrb[0].mxu0
  %1073 = vmatprep.mubr.f32.mxu0 0.0
  %1074 = vmatmul.mubr.f32.gmra.mrb[0].mxu0 %v880
  %v1075 = vpop.f32.mrb[0].mxu0
  %v1076 = vadd.f32 0.0, %v1075
  %v1077 = vpop.f32.mrb[0].mxu0
  %1078 = vmatprep.mubr.f32.mxu0 0.0
  %1079 = vmatmul.mubr.f32.gmra.mrb[0].mxu0 %v881
  %v1080 = vpop.f32.mrb[0].mxu0
  %v1081 = vadd.f32 0.0, %v1080
  %v1082 = vpop.f32.mrb[0].mxu0
  %1083 = vmatprep.mubr.f32.mxu0 0.0
  %1084 = vmatmul.mubr.f32.gmra.mrb[0].mxu0 %v882
  %v1085 = vpop.f32.mrb[0].mxu0
  %v1086 = vadd.f32 0.0, %v1085
  %v1087 = vpop.f32.mrb[0].mxu0
  %1088 = vmatprep.mubr.f32.mxu0 0.0
  %1089 = vmatmul.mubr.f32.gmra.mrb[0].mxu0 %v883
  %v1090 = vpop.f32.mrb[0].mxu0
  %v1091 = vadd.f32 0.0, %v1090
  %v1092 = vpop.f32.mrb[0].mxu0
  %1093 = vmatprep.mubr.f32.mxu0 0.0
  %1094 = vmatmul.mubr.f32.gmra.mrb[0].mxu0 %v884
  %v1095 = vpop.f32.mrb[0].mxu0
  %v1096 = vadd.f32 0.0, %v1095
  %v1097 = vpop.f32.mrb[0].mxu0
  %1098 = vmatprep.mubr.f32.mxu0 0.0
  %1099 = vmatmul.mubr.f32.gmra.mrb[0].mxu0 %v885
  %v1100 = vpop.f32.mrb[0].mxu0
  %v1101 = vpop.f32.mrb[0].mxu0
  %1102 = vmatprep.mubr.f32.mxu0 0.0
  %1103 = vmatmul.mubr.f32.gmra.mrb[0].mxu0 %v886
  %v1104 = vpop.f32.mrb[0].mxu0
  %v1105 = vpop.f32.mrb[0].mxu0
  %1106 = vmatprep.mubr.f32.mxu0 0.0
  %1107 = vmatmul.mubr.f32.gmra.mrb[0].mxu0 %v887
  %v1108 = vpop.f32.mrb[0].mxu0
  %v1109 = vadd.f32 0.0, %v1108
  %v1110 = vpop.f32.mrb[0].mxu0
  %1111 = vmatprep.mubr.f32.mxu0 0.0
  %1112 = vmatmul.mubr.f32.gmra.mrb[0].mxu0 %v888
  %v1113 = vpop.f32.mrb[0].mxu0
  %v1114 = vadd.f32 0.0, %v1113
  %v1115 = vpop.f32.mrb[0].mxu0
  %1116 = vmatprep.mubr.f32.mxu0 0.0
  %1117 = vmatmul.mubr.f32.gmra.mrb[0].mxu0 %v889
  %v1118 = vpop.f32.mrb[0].mxu0
  %v1119 = vadd.f32 0.0, %v1118
  %v1120 = vpop.f32.mrb[0].mxu0
  %1121 = vmatprep.mubr.f32.mxu0 0.0
  %1122 = vmatmul.mubr.f32.gmra.mrb[0].mxu0 %v890
  %v1123 = vpop.f32.mrb[0].mxu0
  %v1124 = vadd.f32 0.0, %v1123
  %v1125 = vpop.f32.mrb[0].mxu0
  %1126 = vmatprep.mubr.f32.mxu0 0.0
  %1127 = vmatmul.mubr.f32.gmra.mrb[0].mxu0 %v891
  %v1128 = vpop.f32.mrb[0].mxu0
  %v1129 = vadd.f32 0.0, %v1128
  %v1130 = vpop.f32.mrb[0].mxu0
  %1131 = vmatprep.mubr.f32.mxu0 0.0
  %1132 = vmatmul.mubr.f32.gmra.mrb[0].mxu0 %v892
  %v1133 = vpop.f32.mrb[0].mxu0
  %v1134 = vpop.f32.mrb[0].mxu0
  %1135 = vmatprep.mubr.f32.mxu0 0.0
  %1136 = vmatmul.mubr.f32.gmra.mrb[0].mxu0 %v893
  %v1137 = vpop.f32.mrb[0].mxu0
  %v1138 = vpop.f32.mrb[0].mxu0
  %1139 = vdwg.mxu0
  %v1140 = vadd.f32 %v834, %v977
  %v1141 = vadd.f32 %v835, %v982
  %v1142 = vadd.f32 %v836, %v987
  %v1143 = vadd.f32 %v837, %v992
  %v1144 = vadd.f32 %v838, %v997
  %v1145 = vadd.f32 %v839, %v1010
  %v1146 = vadd.f32 %v840, %v1015
  %v1147 = vadd.f32 %v841, %v1020
  %v1148 = vadd.f32 %v842, %v1025
  %v1149 = vadd.f32 %v843, %v1030
  %v1150 = vadd.f32 %v844, %v1043
  %v1151 = vadd.f32 %v845, %v1048
  %v1152 = vadd.f32 %v846, %v1053
  %v1153 = vadd.f32 %v847, %v1058
  %v1154 = vadd.f32 %v848, %v1063
  %v1155 = vadd.f32 %v849, %v1076
  %v1156 = vadd.f32 %v850, %v1081
  %v1157 = vadd.f32 %v851, %v1086
  %v1158 = vadd.f32 %v852, %v1091
  %v1159 = vadd.f32 %v853, %v1096
  %v1160 = vadd.f32 %v854, %v1109
  %v1161 = vadd.f32 %v855, %v1114
  %v1162 = vadd.f32 %v856, %v1119
  %v1163 = vadd.f32 %v857, %v1124
  %v1164 = vadd.f32 %v858, %v1129
  %v1165 = vld [vmem:[%s0 + $0x40] sm:$0xff]
  %v1166 = vld [vmem:[%s0 + $0x48] sm:$0xff]
  %v1167 = vld [vmem:[%s0 + $0x50] sm:$0xff]
  %v1168 = vld [vmem:[%s0 + $0x58] sm:$0xff]
  %v1169 = vld [vmem:[%s0 + $0x60] sm:$0xff]
  %v1170 = vld [vmem:[%s0 + $0x68] sm:$0xff]
  %v1171 = vld [vmem:[%s0 + $0x70] sm:$0xff]
  %v1172 = vld [vmem:[%s0 + $0x78] sm:$0xff]
  %v1173 = vld [vmem:[%s0 + $0x80] sm:$0xff]
  %v1174 = vld [vmem:[%s0 + $0x88] sm:$0xff]
  %v1175 = vld [vmem:[%s0 + $0x90] sm:$0xff]
  %v1176 = vld [vmem:[%s0 + $0x98] sm:$0xff]
  %v1177 = vld [vmem:[%s0 + $0xa0] sm:$0xff]
  %v1178 = vld [vmem:[%s0 + $0xa8] sm:$0xff]
  %v1179 = vld [vmem:[%s0 + $0xb0] sm:$0xff]
  %v1180 = vld [vmem:[%s0 + $0xb8] sm:$0xff]
  %v1181 = vld [vmem:[%s0 + $0xc0] sm:$0xff]
  %v1182 = vld [vmem:[%s0 + $0xc8] sm:$0xff]
  %v1183 = vld [vmem:[%s0 + $0xd0] sm:$0xff]
  %v1184 = vld [vmem:[%s0 + $0xd8] sm:$0xff]
  %v1185 = vld [vmem:[%s0 + $0xe0] sm:$0xff]
  %v1186 = vld [vmem:[%s0 + $0xe8] sm:$0xff]
  %v1187 = vld [vmem:[%s0 + $0xf0] sm:$0xff]
  %v1188 = vld [vmem:[%s0 + $0xf8] sm:$0xff]
  %v1189 = vld [vmem:[%s0 + $0x100] sm:$0xff]
  %v1190 = vld [vmem:[%s0 + $0x108] sm:$0xff]
  %v1191 = vld [vmem:[%s0 + $0x110] sm:$0xff]
  %v1192 = vld [vmem:[%s0 + $0x118] sm:$0xff]
  %v1193 = vld [vmem:[%s0 + $0x120] sm:$0xff]
  %v1194 = vld [vmem:[%s0 + $0x128] sm:$0xff]
  %v1195 = vld [vmem:[%s0 + $0x130] sm:$0xff]
  %v1196 = vld [vmem:[%s0 + $0x138] sm:$0xff]
  %v1197 = vld [vmem:[%s0 + $0x140] sm:$0xff]
  %v1198 = vld [vmem:[%s0 + $0x148] sm:$0xff]
  %v1199 = vld [vmem:[%s0 + $0x150] sm:$0xff]
  %v1200 = vld [vmem:[%s1 + $0x200] sm:$0xff]
  %v1201 = vld [vmem:[%s1 + $0x208] sm:$0xff]
  %v1202 = vld [vmem:[%s1 + $0x210] sm:$0xff]
  %v1203 = vld [vmem:[%s1 + $0x218] sm:$0xff]
  %v1204 = vld [vmem:[%s1 + $0x220] sm:$0xff]
  %v1205 = vld [vmem:[%s1 + $0x228] sm:$0xff]
  %v1206 = vld [vmem:[%s1 + $0x230] sm:$0xff]
  %v1207 = vld [vmem:[%s1 + $0x238] sm:$0xff]
  %v1208 = vld [vmem:[%s1 + $0x240] sm:$0xff]
  %v1209 = vld [vmem:[%s1 + $0x248] sm:$0xff]
  %v1210 = vld [vmem:[%s1 + $0x250] sm:$0xff]
  %v1211 = vld [vmem:[%s1 + $0x258] sm:$0xff]
  %v1212 = vld [vmem:[%s1 + $0x260] sm:$0xff]
  %v1213 = vld [vmem:[%s1 + $0x268] sm:$0xff]
  %v1214 = vld [vmem:[%s1 + $0x270] sm:$0xff]
  %v1215 = vld [vmem:[%s1 + $0x278] sm:$0xff]
  %1216 = vmatprep.subr.mxu0 0.0
  %1217 = vmatpush1.msra.mxu0 %v1200
  %1218 = vmatprep.subr.mxu0 0.0
  %1219 = vmatpush1.msra.mxu0 %v1201
  %1220 = vmatprep.subr.mxu0 0.0
  %1221 = vmatpush1.msra.mxu0 %v1202
  %1222 = vmatprep.subr.mxu0 0.0
  %1223 = vmatpush1.msra.mxu0 %v1203
  %1224 = vmatprep.subr.mxu0 0.0
  %1225 = vmatpush1.msra.mxu0 %v1204
  %1226 = vmatprep.subr.mxu0 0.0
  %1227 = vmatpush1.msra.mxu0 %v1205
  %1228 = vmatprep.subr.mxu0 0.0
  %1229 = vmatpush1.msra.mxu0 %v1206
  %1230 = vmatprep.subr.mxu0 0.0
  %1231 = vmatpush1.msra.mxu0 %v1207
  %1232 = vmatprep.subr.mxu0 0.0
  %1233 = vmatpush1.msra.mxu0 %v1208
  %1234 = vmatprep.subr.mxu0 0.0
  %1235 = vmatpush1.msra.mxu0 %v1209
  %1236 = vmatprep.subr.mxu0 0.0
  %1237 = vmatpush1.msra.mxu0 %v1210
  %1238 = vmatprep.subr.mxu0 0.0
  %1239 = vmatpush1.msra.mxu0 %v1211
  %1240 = vmatprep.subr.mxu0 0.0
  %1241 = vmatpush1.msra.mxu0 %v1212
  %1242 = vmatprep.subr.mxu0 0.0
  %1243 = vmatpush1.msra.mxu0 %v1213
  %1244 = vmatprep.subr.mxu0 0.0
  %1245 = vmatpush1.msra.mxu0 %v1214
  %1246 = vmatprep.subr.mxu0 0.0
  %1247 = vmatpush1.msra.mxu0 %v1215
  %1248 = vmatprep.subr.mxu0 0.0
  %1249 = vmatpush1.msra.mxu0 0.0
  %1250 = vmatprep.subr.mxu0 0.0
  %1251 = vmatpush1.msra.mxu0 0.0
  %1252 = vmatprep.subr.mxu0 0.0
  %1253 = vmatpush1.msra.mxu0 0.0
  %1254 = vmatprep.subr.mxu0 0.0
  %1255 = vmatpush1.msra.mxu0 0.0
  %1256 = vmatprep.subr.mxu0 0.0
  %1257 = vmatpush1.msra.mxu0 0.0
  %1258 = vmatprep.subr.mxu0 0.0
  %1259 = vmatpush1.msra.mxu0 0.0
  %1260 = vmatprep.subr.mxu0 0.0
  %1261 = vmatpush1.msra.mxu0 0.0
  %1262 = vmatprep.subr.mxu0 0.0
  %1263 = vmatpush1.msra.mxu0 0.0
  %1264 = vmatprep.subr.mxu0 0.0
  %1265 = vmatpush1.msra.mxu0 0.0
  %1266 = vmatprep.subr.mxu0 0.0
  %1267 = vmatpush1.msra.mxu0 0.0
  %1268 = vmatprep.subr.mxu0 0.0
  %1269 = vmatpush1.msra.mxu0 0.0
  %1270 = vmatprep.subr.mxu0 0.0
  %1271 = vmatpush1.msra.mxu0 0.0
  %1272 = vmatprep.subr.mxu0 0.0
  %1273 = vmatpush1.msra.mxu0 0.0
  %1274 = vmatprep.subr.mxu0 0.0
  %1275 = vmatpush1.msra.mxu0 0.0
  %1276 = vmatprep.subr.mxu0 0.0
  %1277 = vmatpush1.msra.mxu0 0.0
  %1278 = vmatprep.subr.mxu0 0.0
  %1279 = vmatpush1.msra.mxu0 0.0
  %1280 = vmatprep.mubr.f32.mxu0 0.0
  %1281 = vmatmul.mubr.f32.gmra.mrb[0].mxu0 %v1165
  %v1282 = vpop.f32.mrb[0].mxu0
  %v1283 = vadd.f32 0.0, %v1282
  %v1284 = vpop.f32.mrb[0].mxu0
  %1285 = vmatprep.mubr.f32.mxu0 0.0
  %1286 = vmatmul.mubr.f32.gmra.mrb[0].mxu0 %v1166
  %v1287 = vpop.f32.mrb[0].mxu0
  %v1288 = vadd.f32 0.0, %v1287
  %v1289 = vpop.f32.mrb[0].mxu0
  %1290 = vmatprep.mubr.f32.mxu0 0.0
  %1291 = vmatmul.mubr.f32.gmra.mrb[0].mxu0 %v1167
  %v1292 = vpop.f32.mrb[0].mxu0
  %v1293 = vadd.f32 0.0, %v1292
  %v1294 = vpop.f32.mrb[0].mxu0
  %1295 = vmatprep.mubr.f32.mxu0 0.0
  %1296 = vmatmul.mubr.f32.gmra.mrb[0].mxu0 %v1168
  %v1297 = vpop.f32.mrb[0].mxu0
  %v1298 = vadd.f32 0.0, %v1297
  %v1299 = vpop.f32.mrb[0].mxu0
  %1300 = vmatprep.mubr.f32.mxu0 0.0
  %1301 = vmatmul.mubr.f32.gmra.mrb[0].mxu0 %v1169
  %v1302 = vpop.f32.mrb[0].mxu0
  %v1303 = vadd.f32 0.0, %v1302
  %v1304 = vpop.f32.mrb[0].mxu0
  %1305 = vmatprep.mubr.f32.mxu0 0.0
  %1306 = vmatmul.mubr.f32.gmra.mrb[0].mxu0 %v1170
  %v1307 = vpop.f32.mrb[0].mxu0
  %v1308 = vpop.f32.mrb[0].mxu0
  %1309 = vmatprep.mubr.f32.mxu0 0.0
  %1310 = vmatmul.mubr.f32.gmra.mrb[0].mxu0 %v1171
  %v1311 = vpop.f32.mrb[0].mxu0
  %v1312 = vpop.f32.mrb[0].mxu0
  %1313 = vmatprep.mubr.f32.mxu0 0.0
  %1314 = vmatmul.mubr.f32.gmra.mrb[0].mxu0 %v1172
  %v1315 = vpop.f32.mrb[0].mxu0
  %v1316 = vadd.f32 0.0, %v1315
  %v1317 = vpop.f32.mrb[0].mxu0
  %1318 = vmatprep.mubr.f32.mxu0 0.0
  %1319 = vmatmul.mubr.f32.gmra.mrb[0].mxu0 %v1173
  %v1320 = vpop.f32.mrb[0].mxu0
  %v1321 = vadd.f32 0.0, %v1320
  %v1322 = vpop.f32.mrb[0].mxu0
  %1323 = vmatprep.mubr.f32.mxu0 0.0
  %1324 = vmatmul.mubr.f32.gmra.mrb[0].mxu0 %v1174
  %v1325 = vpop.f32.mrb[0].mxu0
  %v1326 = vadd.f32 0.0, %v1325
  %v1327 = vpop.f32.mrb[0].mxu0
  %1328 = vmatprep.mubr.f32.mxu0 0.0
  %1329 = vmatmul.mubr.f32.gmra.mrb[0].mxu0 %v1175
  %v1330 = vpop.f32.mrb[0].mxu0
  %v1331 = vadd.f32 0.0, %v1330
  %v1332 = vpop.f32.mrb[0].mxu0
  %1333 = vmatprep.mubr.f32.mxu0 0.0
  %1334 = vmatmul.mubr.f32.gmra.mrb[0].mxu0 %v1176
  %v1335 = vpop.f32.mrb[0].mxu0
  %v1336 = vadd.f32 0.0, %v1335
  %v1337 = vpop.f32.mrb[0].mxu0
  %1338 = vmatprep.mubr.f32.mxu0 0.0
  %1339 = vmatmul.mubr.f32.gmra.mrb[0].mxu0 %v1177
  %v1340 = vpop.f32.mrb[0].mxu0
  %v1341 = vpop.f32.mrb[0].mxu0
  %1342 = vmatprep.mubr.f32.mxu0 0.0
  %1343 = vmatmul.mubr.f32.gmra.mrb[0].mxu0 %v1178
  %v1344 = vpop.f32.mrb[0].mxu0
  %v1345 = vpop.f32.mrb[0].mxu0
  %1346 = vmatprep.mubr.f32.mxu0 0.0
  %1347 = vmatmul.mubr.f32.gmra.mrb[0].mxu0 %v1179
  %v1348 = vpop.f32.mrb[0].mxu0
  %v1349 = vadd.f32 0.0, %v1348
  %v1350 = vpop.f32.mrb[0].mxu0
  %1351 = vmatprep.mubr.f32.mxu0 0.0
  %1352 = vmatmul.mubr.f32.gmra.mrb[0].mxu0 %v1180
  %v1353 = vpop.f32.mrb[0].mxu0
  %v1354 = vadd.f32 0.0, %v1353
  %v1355 = vpop.f32.mrb[0].mxu0
  %1356 = vmatprep.mubr.f32.mxu0 0.0
  %1357 = vmatmul.mubr.f32.gmra.mrb[0].mxu0 %v1181
  %v1358 = vpop.f32.mrb[0].mxu0
  %v1359 = vadd.f32 0.0, %v1358
  %v1360 = vpop.f32.mrb[0].mxu0
  %1361 = vmatprep.mubr.f32.mxu0 0.0
  %1362 = vmatmul.mubr.f32.gmra.mrb[0].mxu0 %v1182
  %v1363 = vpop.f32.mrb[0].mxu0
  %v1364 = vadd.f32 0.0, %v1363
  %v1365 = vpop.f32.mrb[0].mxu0
  %1366 = vmatprep.mubr.f32.mxu0 0.0
  %1367 = vmatmul.mubr.f32.gmra.mrb[0].mxu0 %v1183
  %v1368 = vpop.f32.mrb[0].mxu0
  %v1369 = vadd.f32 0.0, %v1368
  %v1370 = vpop.f32.mrb[0].mxu0
  %1371 = vmatprep.mubr.f32.mxu0 0.0
  %1372 = vmatmul.mubr.f32.gmra.mrb[0].mxu0 %v1184
  %v1373 = vpop.f32.mrb[0].mxu0
  %v1374 = vpop.f32.mrb[0].mxu0
  %1375 = vmatprep.mubr.f32.mxu0 0.0
  %1376 = vmatmul.mubr.f32.gmra.mrb[0].mxu0 %v1185
  %v1377 = vpop.f32.mrb[0].mxu0
  %v1378 = vpop.f32.mrb[0].mxu0
  %1379 = vmatprep.mubr.f32.mxu0 0.0
  %1380 = vmatmul.mubr.f32.gmra.mrb[0].mxu0 %v1186
  %v1381 = vpop.f32.mrb[0].mxu0
  %v1382 = vadd.f32 0.0, %v1381
  %v1383 = vpop.f32.mrb[0].mxu0
  %1384 = vmatprep.mubr.f32.mxu0 0.0
  %1385 = vmatmul.mubr.f32.gmra.mrb[0].mxu0 %v1187
  %v1386 = vpop.f32.mrb[0].mxu0
  %v1387 = vadd.f32 0.0, %v1386
  %v1388 = vpop.f32.mrb[0].mxu0
  %1389 = vmatprep.mubr.f32.mxu0 0.0
  %1390 = vmatmul.mubr.f32.gmra.mrb[0].mxu0 %v1188
  %v1391 = vpop.f32.mrb[0].mxu0
  %v1392 = vadd.f32 0.0, %v1391
  %v1393 = vpop.f32.mrb[0].mxu0
  %1394 = vmatprep.mubr.f32.mxu0 0.0
  %1395 = vmatmul.mubr.f32.gmra.mrb[0].mxu0 %v1189
  %v1396 = vpop.f32.mrb[0].mxu0
  %v1397 = vadd.f32 0.0, %v1396
  %v1398 = vpop.f32.mrb[0].mxu0
  %1399 = vmatprep.mubr.f32.mxu0 0.0
  %1400 = vmatmul.mubr.f32.gmra.mrb[0].mxu0 %v1190
  %v1401 = vpop.f32.mrb[0].mxu0
  %v1402 = vadd.f32 0.0, %v1401
  %v1403 = vpop.f32.mrb[0].mxu0
  %1404 = vmatprep.mubr.f32.mxu0 0.0
  %1405 = vmatmul.mubr.f32.gmra.mrb[0].mxu0 %v1191
  %v1406 = vpop.f32.mrb[0].mxu0
  %v1407 = vpop.f32.mrb[0].mxu0
  %1408 = vmatprep.mubr.f32.mxu0 0.0
  %1409 = vmatmul.mubr.f32.gmra.mrb[0].mxu0 %v1192
  %v1410 = vpop.f32.mrb[0].mxu0
  %v1411 = vpop.f32.mrb[0].mxu0
  %1412 = vmatprep.mubr.f32.mxu0 0.0
  %1413 = vmatmul.mubr.f32.gmra.mrb[0].mxu0 %v1193
  %v1414 = vpop.f32.mrb[0].mxu0
  %v1415 = vadd.f32 0.0, %v1414
  %v1416 = vpop.f32.mrb[0].mxu0
  %1417 = vmatprep.mubr.f32.mxu0 0.0
  %1418 = vmatmul.mubr.f32.gmra.mrb[0].mxu0 %v1194
  %v1419 = vpop.f32.mrb[0].mxu0
  %v1420 = vadd.f32 0.0, %v1419
  %v1421 = vpop.f32.mrb[0].mxu0
  %1422 = vmatprep.mubr.f32.mxu0 0.0
  %1423 = vmatmul.mubr.f32.gmra.mrb[0].mxu0 %v1195
  %v1424 = vpop.f32.mrb[0].mxu0
  %v1425 = vadd.f32 0.0, %v1424
  %v1426 = vpop.f32.mrb[0].mxu0
  %1427 = vmatprep.mubr.f32.mxu0 0.0
  %1428 = vmatmul.mubr.f32.gmra.mrb[0].mxu0 %v1196
  %v1429 = vpop.f32.mrb[0].mxu0
  %v1430 = vadd.f32 0.0, %v1429
  %v1431 = vpop.f32.mrb[0].mxu0
  %1432 = vmatprep.mubr.f32.mxu0 0.0
  %1433 = vmatmul.mubr.f32.gmra.mrb[0].mxu0 %v1197
  %v1434 = vpop.f32.mrb[0].mxu0
  %v1435 = vadd.f32 0.0, %v1434
  %v1436 = vpop.f32.mrb[0].mxu0
  %1437 = vmatprep.mubr.f32.mxu0 0.0
  %1438 = vmatmul.mubr.f32.gmra.mrb[0].mxu0 %v1198
  %v1439 = vpop.f32.mrb[0].mxu0
  %v1440 = vpop.f32.mrb[0].mxu0
  %1441 = vmatprep.mubr.f32.mxu0 0.0
  %1442 = vmatmul.mubr.f32.gmra.mrb[0].mxu0 %v1199
  %v1443 = vpop.f32.mrb[0].mxu0
  %v1444 = vpop.f32.mrb[0].mxu0
  %1445 = vdwg.mxu0
  %v1446 = vadd.f32 %v1140, %v1283
  %v1447 = vadd.f32 %v1141, %v1288
  %v1448 = vadd.f32 %v1142, %v1293
  %v1449 = vadd.f32 %v1143, %v1298
  %v1450 = vadd.f32 %v1144, %v1303
  %v1451 = vadd.f32 %v1145, %v1316
  %v1452 = vadd.f32 %v1146, %v1321
  %v1453 = vadd.f32 %v1147, %v1326
  %v1454 = vadd.f32 %v1148, %v1331
  %v1455 = vadd.f32 %v1149, %v1336
  %v1456 = vadd.f32 %v1150, %v1349
  %v1457 = vadd.f32 %v1151, %v1354
  %v1458 = vadd.f32 %v1152, %v1359
  %v1459 = vadd.f32 %v1153, %v1364
  %v1460 = vadd.f32 %v1154, %v1369
  %v1461 = vadd.f32 %v1155, %v1382
  %v1462 = vadd.f32 %v1156, %v1387
  %v1463 = vadd.f32 %v1157, %v1392
  %v1464 = vadd.f32 %v1158, %v1397
  %v1465 = vadd.f32 %v1159, %v1402
  %v1466 = vadd.f32 %v1160, %v1415
  %v1467 = vadd.f32 %v1161, %v1420
  %v1468 = vadd.f32 %v1162, %v1425
  %v1469 = vadd.f32 %v1163, %v1430
  %v1470 = vadd.f32 %v1164, %v1435
  %v1471 = vld [vmem:[%s0 + $0x48] sm:$0xff]
  %v1472 = vld [vmem:[%s0 + $0x50] sm:$0xff]
  %v1473 = vld [vmem:[%s0 + $0x58] sm:$0xff]
  %v1474 = vld [vmem:[%s0 + $0x60] sm:$0xff]
  %v1475 = vld [vmem:[%s0 + $0x68] sm:$0xff]
  %v1476 = vld [vmem:[%s0 + $0x70] sm:$0xff]
  %v1477 = vld [vmem:[%s0 + $0x78] sm:$0xff]
  %v1478 = vld [vmem:[%s0 + $0x80] sm:$0xff]
  %v1479 = vld [vmem:[%s0 + $0x88] sm:$0xff]
  %v1480 = vld [vmem:[%s0 + $0x90] sm:$0xff]
  %v1481 = vld [vmem:[%s0 + $0x98] sm:$0xff]
  %v1482 = vld [vmem:[%s0 + $0xa0] sm:$0xff]
  %v1483 = vld [vmem:[%s0 + $0xa8] sm:$0xff]
  %v1484 = vld [vmem:[%s0 + $0xb0] sm:$0xff]
  %v1485 = vld [vmem:[%s0 + $0xb8] sm:$0xff]
  %v1486 = vld [vmem:[%s0 + $0xc0] sm:$0xff]
  %v1487 = vld [vmem:[%s0 + $0xc8] sm:$0xff]
  %v1488 = vld [vmem:[%s0 + $0xd0] sm:$0xff]
  %v1489 = vld [vmem:[%s0 + $0xd8] sm:$0xff]
  %v1490 = vld [vmem:[%s0 + $0xe0] sm:$0xff]
  %v1491 = vld [vmem:[%s0 + $0xe8] sm:$0xff]
  %v1492 = vld [vmem:[%s0 + $0xf0] sm:$0xff]
  %v1493 = vld [vmem:[%s0 + $0xf8] sm:$0xff]
  %v1494 = vld [vmem:[%s0 + $0x100] sm:$0xff]
  %v1495 = vld [vmem:[%s0 + $0x108] sm:$0xff]
  %v1496 = vld [vmem:[%s0 + $0x110] sm:$0xff]
  %v1497 = vld [vmem:[%s0 + $0x118] sm:$0xff]
  %v1498 = vld [vmem:[%s0 + $0x120] sm:$0xff]
  %v1499 = vld [vmem:[%s0 + $0x128] sm:$0xff]
  %v1500 = vld [vmem:[%s0 + $0x130] sm:$0xff]
  %v1501 = vld [vmem:[%s0 + $0x138] sm:$0xff]
  %v1502 = vld [vmem:[%s0 + $0x140] sm:$0xff]
  %v1503 = vld [vmem:[%s0 + $0x148] sm:$0xff]
  %v1504 = vld [vmem:[%s0 + $0x150] sm:$0xff]
  %v1505 = vld [vmem:[%s0 + $0x158] sm:$0xff]
  %v1506 = vld [vmem:[%s1 + $0x280] sm:$0xff]
  %v1507 = vld [vmem:[%s1 + $0x288] sm:$0xff]
  %v1508 = vld [vmem:[%s1 + $0x290] sm:$0xff]
  %v1509 = vld [vmem:[%s1 + $0x298] sm:$0xff]
  %v1510 = vld [vmem:[%s1 + $0x2a0] sm:$0xff]
  %v1511 = vld [vmem:[%s1 + $0x2a8] sm:$0xff]
  %v1512 = vld [vmem:[%s1 + $0x2b0] sm:$0xff]
  %v1513 = vld [vmem:[%s1 + $0x2b8] sm:$0xff]
  %v1514 = vld [vmem:[%s1 + $0x2c0] sm:$0xff]
  %v1515 = vld [vmem:[%s1 + $0x2c8] sm:$0xff]
  %v1516 = vld [vmem:[%s1 + $0x2d0] sm:$0xff]
  %v1517 = vld [vmem:[%s1 + $0x2d8] sm:$0xff]
  %v1518 = vld [vmem:[%s1 + $0x2e0] sm:$0xff]
  %v1519 = vld [vmem:[%s1 + $0x2e8] sm:$0xff]
  %v1520 = vld [vmem:[%s1 + $0x2f0] sm:$0xff]
  %v1521 = vld [vmem:[%s1 + $0x2f8] sm:$0xff]
  %1522 = vmatprep.subr.mxu0 0.0
  %1523 = vmatpush1.msra.mxu0 %v1506
  %1524 = vmatprep.subr.mxu0 0.0
  %1525 = vmatpush1.msra.mxu0 %v1507
  %1526 = vmatprep.subr.mxu0 0.0
  %1527 = vmatpush1.msra.mxu0 %v1508
  %1528 = vmatprep.subr.mxu0 0.0
  %1529 = vmatpush1.msra.mxu0 %v1509
  %1530 = vmatprep.subr.mxu0 0.0
  %1531 = vmatpush1.msra.mxu0 %v1510
  %1532 = vmatprep.subr.mxu0 0.0
  %1533 = vmatpush1.msra.mxu0 %v1511
  %1534 = vmatprep.subr.mxu0 0.0
  %1535 = vmatpush1.msra.mxu0 %v1512
  %1536 = vmatprep.subr.mxu0 0.0
  %1537 = vmatpush1.msra.mxu0 %v1513
  %1538 = vmatprep.subr.mxu0 0.0
  %1539 = vmatpush1.msra.mxu0 %v1514
  %1540 = vmatprep.subr.mxu0 0.0
  %1541 = vmatpush1.msra.mxu0 %v1515
  %1542 = vmatprep.subr.mxu0 0.0
  %1543 = vmatpush1.msra.mxu0 %v1516
  %1544 = vmatprep.subr.mxu0 0.0
  %1545 = vmatpush1.msra.mxu0 %v1517
  %1546 = vmatprep.subr.mxu0 0.0
  %1547 = vmatpush1.msra.mxu0 %v1518
  %1548 = vmatprep.subr.mxu0 0.0
  %1549 = vmatpush1.msra.mxu0 %v1519
  %1550 = vmatprep.subr.mxu0 0.0
  %1551 = vmatpush1.msra.mxu0 %v1520
  %1552 = vmatprep.subr.mxu0 0.0
  %1553 = vmatpush1.msra.mxu0 %v1521
  %1554 = vmatprep.subr.mxu0 0.0
  %1555 = vmatpush1.msra.mxu0 0.0
  %1556 = vmatprep.subr.mxu0 0.0
  %1557 = vmatpush1.msra.mxu0 0.0
  %1558 = vmatprep.subr.mxu0 0.0
  %1559 = vmatpush1.msra.mxu0 0.0
  %1560 = vmatprep.subr.mxu0 0.0
  %1561 = vmatpush1.msra.mxu0 0.0
  %1562 = vmatprep.subr.mxu0 0.0
  %1563 = vmatpush1.msra.mxu0 0.0
  %1564 = vmatprep.subr.mxu0 0.0
  %1565 = vmatpush1.msra.mxu0 0.0
  %1566 = vmatprep.subr.mxu0 0.0
  %1567 = vmatpush1.msra.mxu0 0.0
  %1568 = vmatprep.subr.mxu0 0.0
  %1569 = vmatpush1.msra.mxu0 0.0
  %1570 = vmatprep.subr.mxu0 0.0
  %1571 = vmatpush1.msra.mxu0 0.0
  %1572 = vmatprep.subr.mxu0 0.0
  %1573 = vmatpush1.msra.mxu0 0.0
  %1574 = vmatprep.subr.mxu0 0.0
  %1575 = vmatpush1.msra.mxu0 0.0
  %1576 = vmatprep.subr.mxu0 0.0
  %1577 = vmatpush1.msra.mxu0 0.0
  %1578 = vmatprep.subr.mxu0 0.0
  %1579 = vmatpush1.msra.mxu0 0.0
  %1580 = vmatprep.subr.mxu0 0.0
  %1581 = vmatpush1.msra.mxu0 0.0
  %1582 = vmatprep.subr.mxu0 0.0
  %1583 = vmatpush1.msra.mxu0 0.0
  %1584 = vmatprep.subr.mxu0 0.0
  %1585 = vmatpush1.msra.mxu0 0.0
  %1586 = vmatprep.mubr.f32.mxu0 0.0
  %1587 = vmatmul.mubr.f32.gmra.mrb[0].mxu0 %v1471
  %v1588 = vpop.f32.mrb[0].mxu0
  %v1589 = vadd.f32 0.0, %v1588
  %v1590 = vpop.f32.mrb[0].mxu0
  %1591 = vmatprep.mubr.f32.mxu0 0.0
  %1592 = vmatmul.mubr.f32.gmra.mrb[0].mxu0 %v1472
  %v1593 = vpop.f32.mrb[0].mxu0
  %v1594 = vadd.f32 0.0, %v1593
  %v1595 = vpop.f32.mrb[0].mxu0
  %1596 = vmatprep.mubr.f32.mxu0 0.0
  %1597 = vmatmul.mubr.f32.gmra.mrb[0].mxu0 %v1473
  %v1598 = vpop.f32.mrb[0].mxu0
  %v1599 = vadd.f32 0.0, %v1598
  %v1600 = vpop.f32.mrb[0].mxu0
  %1601 = vmatprep.mubr.f32.mxu0 0.0
  %1602 = vmatmul.mubr.f32.gmra.mrb[0].mxu0 %v1474
  %v1603 = vpop.f32.mrb[0].mxu0
  %v1604 = vadd.f32 0.0, %v1603
  %v1605 = vpop.f32.mrb[0].mxu0
  %1606 = vmatprep.mubr.f32.mxu0 0.0
  %1607 = vmatmul.mubr.f32.gmra.mrb[0].mxu0 %v1475
  %v1608 = vpop.f32.mrb[0].mxu0
  %v1609 = vadd.f32 0.0, %v1608
  %v1610 = vpop.f32.mrb[0].mxu0
  %1611 = vmatprep.mubr.f32.mxu0 0.0
  %1612 = vmatmul.mubr.f32.gmra.mrb[0].mxu0 %v1476
  %v1613 = vpop.f32.mrb[0].mxu0
  %v1614 = vpop.f32.mrb[0].mxu0
  %1615 = vmatprep.mubr.f32.mxu0 0.0
  %1616 = vmatmul.mubr.f32.gmra.mrb[0].mxu0 %v1477
  %v1617 = vpop.f32.mrb[0].mxu0
  %v1618 = vpop.f32.mrb[0].mxu0
  %1619 = vmatprep.mubr.f32.mxu0 0.0
  %1620 = vmatmul.mubr.f32.gmra.mrb[0].mxu0 %v1478
  %v1621 = vpop.f32.mrb[0].mxu0
  %v1622 = vadd.f32 0.0, %v1621
  %v1623 = vpop.f32.mrb[0].mxu0
  %1624 = vmatprep.mubr.f32.mxu0 0.0
  %1625 = vmatmul.mubr.f32.gmra.mrb[0].mxu0 %v1479
  %v1626 = vpop.f32.mrb[0].mxu0
  %v1627 = vadd.f32 0.0, %v1626
  %v1628 = vpop.f32.mrb[0].mxu0
  %1629 = vmatprep.mubr.f32.mxu0 0.0
  %1630 = vmatmul.mubr.f32.gmra.mrb[0].mxu0 %v1480
  %v1631 = vpop.f32.mrb[0].mxu0
  %v1632 = vadd.f32 0.0, %v1631
  %v1633 = vpop.f32.mrb[0].mxu0
  %1634 = vmatprep.mubr.f32.mxu0 0.0
  %1635 = vmatmul.mubr.f32.gmra.mrb[0].mxu0 %v1481
  %v1636 = vpop.f32.mrb[0].mxu0
  %v1637 = vadd.f32 0.0, %v1636
  %v1638 = vpop.f32.mrb[0].mxu0
  %1639 = vmatprep.mubr.f32.mxu0 0.0
  %1640 = vmatmul.mubr.f32.gmra.mrb[0].mxu0 %v1482
  %v1641 = vpop.f32.mrb[0].mxu0
  %v1642 = vadd.f32 0.0, %v1641
  %v1643 = vpop.f32.mrb[0].mxu0
  %1644 = vmatprep.mubr.f32.mxu0 0.0
  %1645 = vmatmul.mubr.f32.gmra.mrb[0].mxu0 %v1483
  %v1646 = vpop.f32.mrb[0].mxu0
  %v1647 = vpop.f32.mrb[0].mxu0
  %1648 = vmatprep.mubr.f32.mxu0 0.0
  %1649 = vmatmul.mubr.f32.gmra.mrb[0].mxu0 %v1484
  %v1650 = vpop.f32.mrb[0].mxu0
  %v1651 = vpop.f32.mrb[0].mxu0
  %1652 = vmatprep.mubr.f32.mxu0 0.0
  %1653 = vmatmul.mubr.f32.gmra.mrb[0].mxu0 %v1485
  %v1654 = vpop.f32.mrb[0].mxu0
  %v1655 = vadd.f32 0.0, %v1654
  %v1656 = vpop.f32.mrb[0].mxu0
  %1657 = vmatprep.mubr.f32.mxu0 0.0
  %1658 = vmatmul.mubr.f32.gmra.mrb[0].mxu0 %v1486
  %v1659 = vpop.f32.mrb[0].mxu0
  %v1660 = vadd.f32 0.0, %v1659
  %v1661 = vpop.f32.mrb[0].mxu0
  %1662 = vmatprep.mubr.f32.mxu0 0.0
  %1663 = vmatmul.mubr.f32.gmra.mrb[0].mxu0 %v1487
  %v1664 = vpop.f32.mrb[0].mxu0
  %v1665 = vadd.f32 0.0, %v1664
  %v1666 = vpop.f32.mrb[0].mxu0
  %1667 = vmatprep.mubr.f32.mxu0 0.0
  %1668 = vmatmul.mubr.f32.gmra.mrb[0].mxu0 %v1488
  %v1669 = vpop.f32.mrb[0].mxu0
  %v1670 = vadd.f32 0.0, %v1669
  %v1671 = vpop.f32.mrb[0].mxu0
  %1672 = vmatprep.mubr.f32.mxu0 0.0
  %1673 = vmatmul.mubr.f32.gmra.mrb[0].mxu0 %v1489
  %v1674 = vpop.f32.mrb[0].mxu0
  %v1675 = vadd.f32 0.0, %v1674
  %v1676 = vpop.f32.mrb[0].mxu0
  %1677 = vmatprep.mubr.f32.mxu0 0.0
  %1678 = vmatmul.mubr.f32.gmra.mrb[0].mxu0 %v1490
  %v1679 = vpop.f32.mrb[0].mxu0
  %v1680 = vpop.f32.mrb[0].mxu0
  %1681 = vmatprep.mubr.f32.mxu0 0.0
  %1682 = vmatmul.mubr.f32.gmra.mrb[0].mxu0 %v1491
  %v1683 = vpop.f32.mrb[0].mxu0
  %v1684 = vpop.f32.mrb[0].mxu0
  %1685 = vmatprep.mubr.f32.mxu0 0.0
  %1686 = vmatmul.mubr.f32.gmra.mrb[0].mxu0 %v1492
  %v1687 = vpop.f32.mrb[0].mxu0
  %v1688 = vadd.f32 0.0, %v1687
  %v1689 = vpop.f32.mrb[0].mxu0
  %1690 = vmatprep.mubr.f32.mxu0 0.0
  %1691 = vmatmul.mubr.f32.gmra.mrb[0].mxu0 %v1493
  %v1692 = vpop.f32.mrb[0].mxu0
  %v1693 = vadd.f32 0.0, %v1692
  %v1694 = vpop.f32.mrb[0].mxu0
  %1695 = vmatprep.mubr.f32.mxu0 0.0
  %1696 = vmatmul.mubr.f32.gmra.mrb[0].mxu0 %v1494
  %v1697 = vpop.f32.mrb[0].mxu0
  %v1698 = vadd.f32 0.0, %v1697
  %v1699 = vpop.f32.mrb[0].mxu0
  %1700 = vmatprep.mubr.f32.mxu0 0.0
  %1701 = vmatmul.mubr.f32.gmra.mrb[0].mxu0 %v1495
  %v1702 = vpop.f32.mrb[0].mxu0
  %v1703 = vadd.f32 0.0, %v1702
  %v1704 = vpop.f32.mrb[0].mxu0
  %1705 = vmatprep.mubr.f32.mxu0 0.0
  %1706 = vmatmul.mubr.f32.gmra.mrb[0].mxu0 %v1496
  %v1707 = vpop.f32.mrb[0].mxu0
  %v1708 = vadd.f32 0.0, %v1707
  %v1709 = vpop.f32.mrb[0].mxu0
  %1710 = vmatprep.mubr.f32.mxu0 0.0
  %1711 = vmatmul.mubr.f32.gmra.mrb[0].mxu0 %v1497
  %v1712 = vpop.f32.mrb[0].mxu0
  %v1713 = vpop.f32.mrb[0].mxu0
  %1714 = vmatprep.mubr.f32.mxu0 0.0
  %1715 = vmatmul.mubr.f32.gmra.mrb[0].mxu0 %v1498
  %v1716 = vpop.f32.mrb[0].mxu0
  %v1717 = vpop.f32.mrb[0].mxu0
  %1718 = vmatprep.mubr.f32.mxu0 0.0
  %1719 = vmatmul.mubr.f32.gmra.mrb[0].mxu0 %v1499
  %v1720 = vpop.f32.mrb[0].mxu0
  %v1721 = vadd.f32 0.0, %v1720
  %v1722 = vpop.f32.mrb[0].mxu0
  %1723 = vmatprep.mubr.f32.mxu0 0.0
  %1724 = vmatmul.mubr.f32.gmra.mrb[0].mxu0 %v1500
  %v1725 = vpop.f32.mrb[0].mxu0
  %v1726 = vadd.f32 0.0, %v1725
  %v1727 = vpop.f32.mrb[0].mxu0
  %1728 = vmatprep.mubr.f32.mxu0 0.0
  %1729 = vmatmul.mubr.f32.gmra.mrb[0].mxu0 %v1501
  %v1730 = vpop.f32.mrb[0].mxu0
  %v1731 = vadd.f32 0.0, %v1730
  %v1732 = vpop.f32.mrb[0].mxu0
  %1733 = vmatprep.mubr.f32.mxu0 0.0
  %1734 = vmatmul.mubr.f32.gmra.mrb[0].mxu0 %v1502
  %v1735 = vpop.f32.mrb[0].mxu0
  %v1736 = vadd.f32 0.0, %v1735
  %v1737 = vpop.f32.mrb[0].mxu0
  %1738 = vmatprep.mubr.f32.mxu0 0.0
  %1739 = vmatmul.mubr.f32.gmra.mrb[0].mxu0 %v1503
  %v1740 = vpop.f32.mrb[0].mxu0
  %v1741 = vadd.f32 0.0, %v1740
  %v1742 = vpop.f32.mrb[0].mxu0
  %1743 = vmatprep.mubr.f32.mxu0 0.0
  %1744 = vmatmul.mubr.f32.gmra.mrb[0].mxu0 %v1504
  %v1745 = vpop.f32.mrb[0].mxu0
  %v1746 = vpop.f32.mrb[0].mxu0
  %1747 = vmatprep.mubr.f32.mxu0 0.0
  %1748 = vmatmul.mubr.f32.gmra.mrb[0].mxu0 %v1505
  %v1749 = vpop.f32.mrb[0].mxu0
  %v1750 = vpop.f32.mrb[0].mxu0
  %1751 = vdwg.mxu0
  %v1752 = vadd.f32 %v1446, %v1589
  %v1753 = vadd.f32 %v1447, %v1594
  %v1754 = vadd.f32 %v1448, %v1599
  %v1755 = vadd.f32 %v1449, %v1604
  %v1756 = vadd.f32 %v1450, %v1609
  %v1757 = vadd.f32 %v1451, %v1622
  %v1758 = vadd.f32 %v1452, %v1627
  %v1759 = vadd.f32 %v1453, %v1632
  %v1760 = vadd.f32 %v1454, %v1637
  %v1761 = vadd.f32 %v1455, %v1642
  %v1762 = vadd.f32 %v1456, %v1655
  %v1763 = vadd.f32 %v1457, %v1660
  %v1764 = vadd.f32 %v1458, %v1665
  %v1765 = vadd.f32 %v1459, %v1670
  %v1766 = vadd.f32 %v1460, %v1675
  %v1767 = vadd.f32 %v1461, %v1688
  %v1768 = vadd.f32 %v1462, %v1693
  %v1769 = vadd.f32 %v1463, %v1698
  %v1770 = vadd.f32 %v1464, %v1703
  %v1771 = vadd.f32 %v1465, %v1708
  %v1772 = vadd.f32 %v1466, %v1721
  %v1773 = vadd.f32 %v1467, %v1726
  %v1774 = vadd.f32 %v1468, %v1731
  %v1775 = vadd.f32 %v1469, %v1736
  %v1776 = vadd.f32 %v1470, %v1741
  %v1777 = vld [vmem:[%s0 + $0x70] sm:$0xff]
  %v1778 = vld [vmem:[%s0 + $0x78] sm:$0xff]
  %v1779 = vld [vmem:[%s0 + $0x80] sm:$0xff]
  %v1780 = vld [vmem:[%s0 + $0x88] sm:$0xff]
  %v1781 = vld [vmem:[%s0 + $0x90] sm:$0xff]
  %v1782 = vld [vmem:[%s0 + $0x98] sm:$0xff]
  %v1783 = vld [vmem:[%s0 + $0xa0] sm:$0xff]
  %v1784 = vld [vmem:[%s0 + $0xa8] sm:$0xff]
  %v1785 = vld [vmem:[%s0 + $0xb0] sm:$0xff]
  %v1786 = vld [vmem:[%s0 + $0xb8] sm:$0xff]
  %v1787 = vld [vmem:[%s0 + $0xc0] sm:$0xff]
  %v1788 = vld [vmem:[%s0 + $0xc8] sm:$0xff]
  %v1789 = vld [vmem:[%s0 + $0xd0] sm:$0xff]
  %v1790 = vld [vmem:[%s0 + $0xd8] sm:$0xff]
  %v1791 = vld [vmem:[%s0 + $0xe0] sm:$0xff]
  %v1792 = vld [vmem:[%s0 + $0xe8] sm:$0xff]
  %v1793 = vld [vmem:[%s0 + $0xf0] sm:$0xff]
  %v1794 = vld [vmem:[%s0 + $0xf8] sm:$0xff]
  %v1795 = vld [vmem:[%s0 + $0x100] sm:$0xff]
  %v1796 = vld [vmem:[%s0 + $0x108] sm:$0xff]
  %v1797 = vld [vmem:[%s0 + $0x110] sm:$0xff]
  %v1798 = vld [vmem:[%s0 + $0x118] sm:$0xff]
  %v1799 = vld [vmem:[%s0 + $0x120] sm:$0xff]
  %v1800 = vld [vmem:[%s0 + $0x128] sm:$0xff]
  %v1801 = vld [vmem:[%s0 + $0x130] sm:$0xff]
  %v1802 = vld [vmem:[%s0 + $0x138] sm:$0xff]
  %v1803 = vld [vmem:[%s0 + $0x140] sm:$0xff]
  %v1804 = vld [vmem:[%s0 + $0x148] sm:$0xff]
  %v1805 = vld [vmem:[%s0 + $0x150] sm:$0xff]
  %v1806 = vld [vmem:[%s0 + $0x158] sm:$0xff]
  %v1807 = vld [vmem:[%s0 + $0x160] sm:$0xff]
  %v1808 = vld [vmem:[%s0 + $0x168] sm:$0xff]
  %v1809 = vld [vmem:[%s0 + $0x170] sm:$0xff]
  %v1810 = vld [vmem:[%s0 + $0x178] sm:$0xff]
  %v1811 = vld [vmem:[%s0 + $0x180] sm:$0xff]
  %v1812 = vld [vmem:[%s1 + $0x300] sm:$0xff]
  %v1813 = vld [vmem:[%s1 + $0x308] sm:$0xff]
  %v1814 = vld [vmem:[%s1 + $0x310] sm:$0xff]
  %v1815 = vld [vmem:[%s1 + $0x318] sm:$0xff]
  %v1816 = vld [vmem:[%s1 + $0x320] sm:$0xff]
  %v1817 = vld [vmem:[%s1 + $0x328] sm:$0xff]
  %v1818 = vld [vmem:[%s1 + $0x330] sm:$0xff]
  %v1819 = vld [vmem:[%s1 + $0x338] sm:$0xff]
  %v1820 = vld [vmem:[%s1 + $0x340] sm:$0xff]
  %v1821 = vld [vmem:[%s1 + $0x348] sm:$0xff]
  %v1822 = vld [vmem:[%s1 + $0x350] sm:$0xff]
  %v1823 = vld [vmem:[%s1 + $0x358] sm:$0xff]
  %v1824 = vld [vmem:[%s1 + $0x360] sm:$0xff]
  %v1825 = vld [vmem:[%s1 + $0x368] sm:$0xff]
  %v1826 = vld [vmem:[%s1 + $0x370] sm:$0xff]
  %v1827 = vld [vmem:[%s1 + $0x378] sm:$0xff]
  %1828 = vmatprep.subr.mxu0 0.0
  %1829 = vmatpush1.msra.mxu0 %v1812
  %1830 = vmatprep.subr.mxu0 0.0
  %1831 = vmatpush1.msra.mxu0 %v1813
  %1832 = vmatprep.subr.mxu0 0.0
  %1833 = vmatpush1.msra.mxu0 %v1814
  %1834 = vmatprep.subr.mxu0 0.0
  %1835 = vmatpush1.msra.mxu0 %v1815
  %1836 = vmatprep.subr.mxu0 0.0
  %1837 = vmatpush1.msra.mxu0 %v1816
  %1838 = vmatprep.subr.mxu0 0.0
  %1839 = vmatpush1.msra.mxu0 %v1817
  %1840 = vmatprep.subr.mxu0 0.0
  %1841 = vmatpush1.msra.mxu0 %v1818
  %1842 = vmatprep.subr.mxu0 0.0
  %1843 = vmatpush1.msra.mxu0 %v1819
  %1844 = vmatprep.subr.mxu0 0.0
  %1845 = vmatpush1.msra.mxu0 %v1820
  %1846 = vmatprep.subr.mxu0 0.0
  %1847 = vmatpush1.msra.mxu0 %v1821
  %1848 = vmatprep.subr.mxu0 0.0
  %1849 = vmatpush1.msra.mxu0 %v1822
  %1850 = vmatprep.subr.mxu0 0.0
  %1851 = vmatpush1.msra.mxu0 %v1823
  %1852 = vmatprep.subr.mxu0 0.0
  %1853 = vmatpush1.msra.mxu0 %v1824
  %1854 = vmatprep.subr.mxu0 0.0
  %1855 = vmatpush1.msra.mxu0 %v1825
  %1856 = vmatprep.subr.mxu0 0.0
  %1857 = vmatpush1.msra.mxu0 %v1826
  %1858 = vmatprep.subr.mxu0 0.0
  %1859 = vmatpush1.msra.mxu0 %v1827
  %1860 = vmatprep.subr.mxu0 0.0
  %1861 = vmatpush1.msra.mxu0 0.0
  %1862 = vmatprep.subr.mxu0 0.0
  %1863 = vmatpush1.msra.mxu0 0.0
  %1864 = vmatprep.subr.mxu0 0.0
  %1865 = vmatpush1.msra.mxu0 0.0
  %1866 = vmatprep.subr.mxu0 0.0
  %1867 = vmatpush1.msra.mxu0 0.0
  %1868 = vmatprep.subr.mxu0 0.0
  %1869 = vmatpush1.msra.mxu0 0.0
  %1870 = vmatprep.subr.mxu0 0.0
  %1871 = vmatpush1.msra.mxu0 0.0
  %1872 = vmatprep.subr.mxu0 0.0
  %1873 = vmatpush1.msra.mxu0 0.0
  %1874 = vmatprep.subr.mxu0 0.0
  %1875 = vmatpush1.msra.mxu0 0.0
  %1876 = vmatprep.subr.mxu0 0.0
  %1877 = vmatpush1.msra.mxu0 0.0
  %1878 = vmatprep.subr.mxu0 0.0
  %1879 = vmatpush1.msra.mxu0 0.0
  %1880 = vmatprep.subr.mxu0 0.0
  %1881 = vmatpush1.msra.mxu0 0.0
  %1882 = vmatprep.subr.mxu0 0.0
  %1883 = vmatpush1.msra.mxu0 0.0
  %1884 = vmatprep.subr.mxu0 0.0
  %1885 = vmatpush1.msra.mxu0 0.0
  %1886 = vmatprep.subr.mxu0 0.0
  %1887 = vmatpush1.msra.mxu0 0.0
  %1888 = vmatprep.subr.mxu0 0.0
  %1889 = vmatpush1.msra.mxu0 0.0
  %1890 = vmatprep.subr.mxu0 0.0
  %1891 = vmatpush1.msra.mxu0 0.0
  %1892 = vmatprep.mubr.f32.mxu0 0.0
  %1893 = vmatmul.mubr.f32.gmra.mrb[0].mxu0 %v1777
  %v1894 = vpop.f32.mrb[0].mxu0
  %v1895 = vadd.f32 0.0, %v1894
  %v1896 = vpop.f32.mrb[0].mxu0
  %1897 = vmatprep.mubr.f32.mxu0 0.0
  %1898 = vmatmul.mubr.f32.gmra.mrb[0].mxu0 %v1778
  %v1899 = vpop.f32.mrb[0].mxu0
  %v1900 = vadd.f32 0.0, %v1899
  %v1901 = vpop.f32.mrb[0].mxu0
  %1902 = vmatprep.mubr.f32.mxu0 0.0
  %1903 = vmatmul.mubr.f32.gmra.mrb[0].mxu0 %v1779
  %v1904 = vpop.f32.mrb[0].mxu0
  %v1905 = vadd.f32 0.0, %v1904
  %v1906 = vpop.f32.mrb[0].mxu0
  %1907 = vmatprep.mubr.f32.mxu0 0.0
  %1908 = vmatmul.mubr.f32.gmra.mrb[0].mxu0 %v1780
  %v1909 = vpop.f32.mrb[0].mxu0
  %v1910 = vadd.f32 0.0, %v1909
  %v1911 = vpop.f32.mrb[0].mxu0
  %1912 = vmatprep.mubr.f32.mxu0 0.0
  %1913 = vmatmul.mubr.f32.gmra.mrb[0].mxu0 %v1781
  %v1914 = vpop.f32.mrb[0].mxu0
  %v1915 = vadd.f32 0.0, %v1914
  %v1916 = vpop.f32.mrb[0].mxu0
  %1917 = vmatprep.mubr.f32.mxu0 0.0
  %1918 = vmatmul.mubr.f32.gmra.mrb[0].mxu0 %v1782
  %v1919 = vpop.f32.mrb[0].mxu0
  %v1920 = vpop.f32.mrb[0].mxu0
  %1921 = vmatprep.mubr.f32.mxu0 0.0
  %1922 = vmatmul.mubr.f32.gmra.mrb[0].mxu0 %v1783
  %v1923 = vpop.f32.mrb[0].mxu0
  %v1924 = vpop.f32.mrb[0].mxu0
  %1925 = vmatprep.mubr.f32.mxu0 0.0
  %1926 = vmatmul.mubr.f32.gmra.mrb[0].mxu0 %v1784
  %v1927 = vpop.f32.mrb[0].mxu0
  %v1928 = vadd.f32 0.0, %v1927
  %v1929 = vpop.f32.mrb[0].mxu0
  %1930 = vmatprep.mubr.f32.mxu0 0.0
  %1931 = vmatmul.mubr.f32.gmra.mrb[0].mxu0 %v1785
  %v1932 = vpop.f32.mrb[0].mxu0
  %v1933 = vadd.f32 0.0, %v1932
  %v1934 = vpop.f32.mrb[0].mxu0
  %1935 = vmatprep.mubr.f32.mxu0 0.0
  %1936 = vmatmul.mubr.f32.gmra.mrb[0].mxu0 %v1786
  %v1937 = vpop.f32.mrb[0].mxu0
  %v1938 = vadd.f32 0.0, %v1937
  %v1939 = vpop.f32.mrb[0].mxu0
  %1940 = vmatprep.mubr.f32.mxu0 0.0
  %1941 = vmatmul.mubr.f32.gmra.mrb[0].mxu0 %v1787
  %v1942 = vpop.f32.mrb[0].mxu0
  %v1943 = vadd.f32 0.0, %v1942
  %v1944 = vpop.f32.mrb[0].mxu0
  %1945 = vmatprep.mubr.f32.mxu0 0.0
  %1946 = vmatmul.mubr.f32.gmra.mrb[0].mxu0 %v1788
  %v1947 = vpop.f32.mrb[0].mxu0
  %v1948 = vadd.f32 0.0, %v1947
  %v1949 = vpop.f32.mrb[0].mxu0
  %1950 = vmatprep.mubr.f32.mxu0 0.0
  %1951 = vmatmul.mubr.f32.gmra.mrb[0].mxu0 %v1789
  %v1952 = vpop.f32.mrb[0].mxu0
  %v1953 = vpop.f32.mrb[0].mxu0
  %1954 = vmatprep.mubr.f32.mxu0 0.0
  %1955 = vmatmul.mubr.f32.gmra.mrb[0].mxu0 %v1790
  %v1956 = vpop.f32.mrb[0].mxu0
  %v1957 = vpop.f32.mrb[0].mxu0
  %1958 = vmatprep.mubr.f32.mxu0 0.0
  %1959 = vmatmul.mubr.f32.gmra.mrb[0].mxu0 %v1791
  %v1960 = vpop.f32.mrb[0].mxu0
  %v1961 = vadd.f32 0.0, %v1960
  %v1962 = vpop.f32.mrb[0].mxu0
  %1963 = vmatprep.mubr.f32.mxu0 0.0
  %1964 = vmatmul.mubr.f32.gmra.mrb[0].mxu0 %v1792
  %v1965 = vpop.f32.mrb[0].mxu0
  %v1966 = vadd.f32 0.0, %v1965
  %v1967 = vpop.f32.mrb[0].mxu0
  %1968 = vmatprep.mubr.f32.mxu0 0.0
  %1969 = vmatmul.mubr.f32.gmra.mrb[0].mxu0 %v1793
  %v1970 = vpop.f32.mrb[0].mxu0
  %v1971 = vadd.f32 0.0, %v1970
  %v1972 = vpop.f32.mrb[0].mxu0
  %1973 = vmatprep.mubr.f32.mxu0 0.0
  %1974 = vmatmul.mubr.f32.gmra.mrb[0].mxu0 %v1794
  %v1975 = vpop.f32.mrb[0].mxu0
  %v1976 = vadd.f32 0.0, %v1975
  %v1977 = vpop.f32.mrb[0].mxu0
  %1978 = vmatprep.mubr.f32.mxu0 0.0
  %1979 = vmatmul.mubr.f32.gmra.mrb[0].mxu0 %v1795
  %v1980 = vpop.f32.mrb[0].mxu0
  %v1981 = vadd.f32 0.0, %v1980
  %v1982 = vpop.f32.mrb[0].mxu0
  %1983 = vmatprep.mubr.f32.mxu0 0.0
  %1984 = vmatmul.mubr.f32.gmra.mrb[0].mxu0 %v1796
  %v1985 = vpop.f32.mrb[0].mxu0
  %v1986 = vpop.f32.mrb[0].mxu0
  %1987 = vmatprep.mubr.f32.mxu0 0.0
  %1988 = vmatmul.mubr.f32.gmra.mrb[0].mxu0 %v1797
  %v1989 = vpop.f32.mrb[0].mxu0
  %v1990 = vpop.f32.mrb[0].mxu0
  %1991 = vmatprep.mubr.f32.mxu0 0.0
  %1992 = vmatmul.mubr.f32.gmra.mrb[0].mxu0 %v1798
  %v1993 = vpop.f32.mrb[0].mxu0
  %v1994 = vadd.f32 0.0, %v1993
  %v1995 = vpop.f32.mrb[0].mxu0
  %1996 = vmatprep.mubr.f32.mxu0 0.0
  %1997 = vmatmul.mubr.f32.gmra.mrb[0].mxu0 %v1799
  %v1998 = vpop.f32.mrb[0].mxu0
  %v1999 = vadd.f32 0.0, %v1998
  %v2000 = vpop.f32.mrb[0].mxu0
  %2001 = vmatprep.mubr.f32.mxu0 0.0
  %2002 = vmatmul.mubr.f32.gmra.mrb[0].mxu0 %v1800
  %v2003 = vpop.f32.mrb[0].mxu0
  %v2004 = vadd.f32 0.0, %v2003
  %v2005 = vpop.f32.mrb[0].mxu0
  %2006 = vmatprep.mubr.f32.mxu0 0.0
  %2007 = vmatmul.mubr.f32.gmra.mrb[0].mxu0 %v1801
  %v2008 = vpop.f32.mrb[0].mxu0
  %v2009 = vadd.f32 0.0, %v2008
  %v2010 = vpop.f32.mrb[0].mxu0
  %2011 = vmatprep.mubr.f32.mxu0 0.0
  %2012 = vmatmul.mubr.f32.gmra.mrb[0].mxu0 %v1802
  %v2013 = vpop.f32.mrb[0].mxu0
  %v2014 = vadd.f32 0.0, %v2013
  %v2015 = vpop.f32.mrb[0].mxu0
  %2016 = vmatprep.mubr.f32.mxu0 0.0
  %2017 = vmatmul.mubr.f32.gmra.mrb[0].mxu0 %v1803
  %v2018 = vpop.f32.mrb[0].mxu0
  %v2019 = vpop.f32.mrb[0].mxu0
  %2020 = vmatprep.mubr.f32.mxu0 0.0
  %2021 = vmatmul.mubr.f32.gmra.mrb[0].mxu0 %v1804
  %v2022 = vpop.f32.mrb[0].mxu0
  %v2023 = vpop.f32.mrb[0].mxu0
  %2024 = vmatprep.mubr.f32.mxu0 0.0
  %2025 = vmatmul.mubr.f32.gmra.mrb[0].mxu0 %v1805
  %v2026 = vpop.f32.mrb[0].mxu0
  %v2027 = vadd.f32 0.0, %v2026
  %v2028 = vpop.f32.mrb[0].mxu0
  %2029 = vmatprep.mubr.f32.mxu0 0.0
  %2030 = vmatmul.mubr.f32.gmra.mrb[0].mxu0 %v1806
  %v2031 = vpop.f32.mrb[0].mxu0
  %v2032 = vadd.f32 0.0, %v2031
  %v2033 = vpop.f32.mrb[0].mxu0
  %2034 = vmatprep.mubr.f32.mxu0 0.0
  %2035 = vmatmul.mubr.f32.gmra.mrb[0].mxu0 %v1807
  %v2036 = vpop.f32.mrb[0].mxu0
  %v2037 = vadd.f32 0.0, %v2036
  %v2038 = vpop.f32.mrb[0].mxu0
  %2039 = vmatprep.mubr.f32.mxu0 0.0
  %2040 = vmatmul.mubr.f32.gmra.mrb[0].mxu0 %v1808
  %v2041 = vpop.f32.mrb[0].mxu0
  %v2042 = vadd.f32 0.0, %v2041
  %v2043 = vpop.f32.mrb[0].mxu0
  %2044 = vmatprep.mubr.f32.mxu0 0.0
  %2045 = vmatmul.mubr.f32.gmra.mrb[0].mxu0 %v1809
  %v2046 = vpop.f32.mrb[0].mxu0
  %v2047 = vadd.f32 0.0, %v2046
  %v2048 = vpop.f32.mrb[0].mxu0
  %2049 = vmatprep.mubr.f32.mxu0 0.0
  %2050 = vmatmul.mubr.f32.gmra.mrb[0].mxu0 %v1810
  %v2051 = vpop.f32.mrb[0].mxu0
  %v2052 = vpop.f32.mrb[0].mxu0
  %2053 = vmatprep.mubr.f32.mxu0 0.0
  %2054 = vmatmul.mubr.f32.gmra.mrb[0].mxu0 %v1811
  %v2055 = vpop.f32.mrb[0].mxu0
  %v2056 = vpop.f32.mrb[0].mxu0
  %2057 = vdwg.mxu0
  %v2058 = vadd.f32 %v1752, %v1895
  %v2059 = vadd.f32 %v1753, %v1900
  %v2060 = vadd.f32 %v1754, %v1905
  %v2061 = vadd.f32 %v1755, %v1910
  %v2062 = vadd.f32 %v1756, %v1915
  %v2063 = vadd.f32 %v1757, %v1928
  %v2064 = vadd.f32 %v1758, %v1933
  %v2065 = vadd.f32 %v1759, %v1938
  %v2066 = vadd.f32 %v1760, %v1943
  %v2067 = vadd.f32 %v1761, %v1948
  %v2068 = vadd.f32 %v1762, %v1961
  %v2069 = vadd.f32 %v1763, %v1966
  %v2070 = vadd.f32 %v1764, %v1971
  %v2071 = vadd.f32 %v1765, %v1976
  %v2072 = vadd.f32 %v1766, %v1981
  %v2073 = vadd.f32 %v1767, %v1994
  %v2074 = vadd.f32 %v1768, %v1999
  %v2075 = vadd.f32 %v1769, %v2004
  %v2076 = vadd.f32 %v1770, %v2009
  %v2077 = vadd.f32 %v1771, %v2014
  %v2078 = vadd.f32 %v1772, %v2027
  %v2079 = vadd.f32 %v1773, %v2032
  %v2080 = vadd.f32 %v1774, %v2037
  %v2081 = vadd.f32 %v1775, %v2042
  %v2082 = vadd.f32 %v1776, %v2047
  %v2083 = vld [vmem:[%s0 + $0x78] sm:$0xff]
  %v2084 = vld [vmem:[%s0 + $0x80] sm:$0xff]
  %v2085 = vld [vmem:[%s0 + $0x88] sm:$0xff]
  %v2086 = vld [vmem:[%s0 + $0x90] sm:$0xff]
  %v2087 = vld [vmem:[%s0 + $0x98] sm:$0xff]
  %v2088 = vld [vmem:[%s0 + $0xa0] sm:$0xff]
  %v2089 = vld [vmem:[%s0 + $0xa8] sm:$0xff]
  %v2090 = vld [vmem:[%s0 + $0xb0] sm:$0xff]
  %v2091 = vld [vmem:[%s0 + $0xb8] sm:$0xff]
  %v2092 = vld [vmem:[%s0 + $0xc0] sm:$0xff]
  %v2093 = vld [vmem:[%s0 + $0xc8] sm:$0xff]
  %v2094 = vld [vmem:[%s0 + $0xd0] sm:$0xff]
  %v2095 = vld [vmem:[%s0 + $0xd8] sm:$0xff]
  %v2096 = vld [vmem:[%s0 + $0xe0] sm:$0xff]
  %v2097 = vld [vmem:[%s0 + $0xe8] sm:$0xff]
  %v2098 = vld [vmem:[%s0 + $0xf0] sm:$0xff]
  %v2099 = vld [vmem:[%s0 + $0xf8] sm:$0xff]
  %v2100 = vld [vmem:[%s0 + $0x100] sm:$0xff]
  %v2101 = vld [vmem:[%s0 + $0x108] sm:$0xff]
  %v2102 = vld [vmem:[%s0 + $0x110] sm:$0xff]
  %v2103 = vld [vmem:[%s0 + $0x118] sm:$0xff]
  %v2104 = vld [vmem:[%s0 + $0x120] sm:$0xff]
  %v2105 = vld [vmem:[%s0 + $0x128] sm:$0xff]
  %v2106 = vld [vmem:[%s0 + $0x130] sm:$0xff]
  %v2107 = vld [vmem:[%s0 + $0x138] sm:$0xff]
  %v2108 = vld [vmem:[%s0 + $0x140] sm:$0xff]
  %v2109 = vld [vmem:[%s0 + $0x148] sm:$0xff]
  %v2110 = vld [vmem:[%s0 + $0x150] sm:$0xff]
  %v2111 = vld [vmem:[%s0 + $0x158] sm:$0xff]
  %v2112 = vld [vmem:[%s0 + $0x160] sm:$0xff]
  %v2113 = vld [vmem:[%s0 + $0x168] sm:$0xff]
  %v2114 = vld [vmem:[%s0 + $0x170] sm:$0xff]
  %v2115 = vld [vmem:[%s0 + $0x178] sm:$0xff]
  %v2116 = vld [vmem:[%s0 + $0x180] sm:$0xff]
  %v2117 = vld [vmem:[%s0 + $0x188] sm:$0xff]
  %v2118 = vld [vmem:[%s1 + $0x380] sm:$0xff]
  %v2119 = vld [vmem:[%s1 + $0x388] sm:$0xff]
  %v2120 = vld [vmem:[%s1 + $0x390] sm:$0xff]
  %v2121 = vld [vmem:[%s1 + $0x398] sm:$0xff]
  %v2122 = vld [vmem:[%s1 + $0x3a0] sm:$0xff]
  %v2123 = vld [vmem:[%s1 + $0x3a8] sm:$0xff]
  %v2124 = vld [vmem:[%s1 + $0x3b0] sm:$0xff]
  %v2125 = vld [vmem:[%s1 + $0x3b8] sm:$0xff]
  %v2126 = vld [vmem:[%s1 + $0x3c0] sm:$0xff]
  %v2127 = vld [vmem:[%s1 + $0x3c8] sm:$0xff]
  %v2128 = vld [vmem:[%s1 + $0x3d0] sm:$0xff]
  %v2129 = vld [vmem:[%s1 + $0x3d8] sm:$0xff]
  %v2130 = vld [vmem:[%s1 + $0x3e0] sm:$0xff]
  %v2131 = vld [vmem:[%s1 + $0x3e8] sm:$0xff]
  %v2132 = vld [vmem:[%s1 + $0x3f0] sm:$0xff]
  %v2133 = vld [vmem:[%s1 + $0x3f8] sm:$0xff]
  %2134 = vmatprep.subr.mxu0 0.0
  %2135 = vmatpush1.msra.mxu0 %v2118
  %2136 = vmatprep.subr.mxu0 0.0
  %2137 = vmatpush1.msra.mxu0 %v2119
  %2138 = vmatprep.subr.mxu0 0.0
  %2139 = vmatpush1.msra.mxu0 %v2120
  %2140 = vmatprep.subr.mxu0 0.0
  %2141 = vmatpush1.msra.mxu0 %v2121
  %2142 = vmatprep.subr.mxu0 0.0
  %2143 = vmatpush1.msra.mxu0 %v2122
  %2144 = vmatprep.subr.mxu0 0.0
  %2145 = vmatpush1.msra.mxu0 %v2123
  %2146 = vmatprep.subr.mxu0 0.0
  %2147 = vmatpush1.msra.mxu0 %v2124
  %2148 = vmatprep.subr.mxu0 0.0
  %2149 = vmatpush1.msra.mxu0 %v2125
  %2150 = vmatprep.subr.mxu0 0.0
  %2151 = vmatpush1.msra.mxu0 %v2126
  %2152 = vmatprep.subr.mxu0 0.0
  %2153 = vmatpush1.msra.mxu0 %v2127
  %2154 = vmatprep.subr.mxu0 0.0
  %2155 = vmatpush1.msra.mxu0 %v2128
  %2156 = vmatprep.subr.mxu0 0.0
  %2157 = vmatpush1.msra.mxu0 %v2129
  %2158 = vmatprep.subr.mxu0 0.0
  %2159 = vmatpush1.msra.mxu0 %v2130
  %2160 = vmatprep.subr.mxu0 0.0
  %2161 = vmatpush1.msra.mxu0 %v2131
  %2162 = vmatprep.subr.mxu0 0.0
  %2163 = vmatpush1.msra.mxu0 %v2132
  %2164 = vmatprep.subr.mxu0 0.0
  %2165 = vmatpush1.msra.mxu0 %v2133
  %2166 = vmatprep.subr.mxu0 0.0
  %2167 = vmatpush1.msra.mxu0 0.0
  %2168 = vmatprep.subr.mxu0 0.0
  %2169 = vmatpush1.msra.mxu0 0.0
  %2170 = vmatprep.subr.mxu0 0.0
  %2171 = vmatpush1.msra.mxu0 0.0
  %2172 = vmatprep.subr.mxu0 0.0
  %2173 = vmatpush1.msra.mxu0 0.0
  %2174 = vmatprep.subr.mxu0 0.0
  %2175 = vmatpush1.msra.mxu0 0.0
  %2176 = vmatprep.subr.mxu0 0.0
  %2177 = vmatpush1.msra.mxu0 0.0
  %2178 = vmatprep.subr.mxu0 0.0
  %2179 = vmatpush1.msra.mxu0 0.0
  %2180 = vmatprep.subr.mxu0 0.0
  %2181 = vmatpush1.msra.mxu0 0.0
  %2182 = vmatprep.subr.mxu0 0.0
  %2183 = vmatpush1.msra.mxu0 0.0
  %2184 = vmatprep.subr.mxu0 0.0
  %2185 = vmatpush1.msra.mxu0 0.0
  %2186 = vmatprep.subr.mxu0 0.0
  %2187 = vmatpush1.msra.mxu0 0.0
  %2188 = vmatprep.subr.mxu0 0.0
  %2189 = vmatpush1.msra.mxu0 0.0
  %2190 = vmatprep.subr.mxu0 0.0
  %2191 = vmatpush1.msra.mxu0 0.0
  %2192 = vmatprep.subr.mxu0 0.0
  %2193 = vmatpush1.msra.mxu0 0.0
  %2194 = vmatprep.subr.mxu0 0.0
  %2195 = vmatpush1.msra.mxu0 0.0
  %2196 = vmatprep.subr.mxu0 0.0
  %2197 = vmatpush1.msra.mxu0 0.0
  %2198 = vmatprep.mubr.f32.mxu0 0.0
  %2199 = vmatmul.mubr.f32.gmra.mrb[0].mxu0 %v2083
  %v2200 = vpop.f32.mrb[0].mxu0
  %v2201 = vadd.f32 0.0, %v2200
  %v2202 = vpop.f32.mrb[0].mxu0
  %2203 = vmatprep.mubr.f32.mxu0 0.0
  %2204 = vmatmul.mubr.f32.gmra.mrb[0].mxu0 %v2084
  %v2205 = vpop.f32.mrb[0].mxu0
  %v2206 = vadd.f32 0.0, %v2205
  %v2207 = vpop.f32.mrb[0].mxu0
  %2208 = vmatprep.mubr.f32.mxu0 0.0
  %2209 = vmatmul.mubr.f32.gmra.mrb[0].mxu0 %v2085
  %v2210 = vpop.f32.mrb[0].mxu0
  %v2211 = vadd.f32 0.0, %v2210
  %v2212 = vpop.f32.mrb[0].mxu0
  %2213 = vmatprep.mubr.f32.mxu0 0.0
  %2214 = vmatmul.mubr.f32.gmra.mrb[0].mxu0 %v2086
  %v2215 = vpop.f32.mrb[0].mxu0
  %v2216 = vadd.f32 0.0, %v2215
  %v2217 = vpop.f32.mrb[0].mxu0
  %2218 = vmatprep.mubr.f32.mxu0 0.0
  %2219 = vmatmul.mubr.f32.gmra.mrb[0].mxu0 %v2087
  %v2220 = vpop.f32.mrb[0].mxu0
  %v2221 = vadd.f32 0.0, %v2220
  %v2222 = vpop.f32.mrb[0].mxu0
  %2223 = vmatprep.mubr.f32.mxu0 0.0
  %2224 = vmatmul.mubr.f32.gmra.mrb[0].mxu0 %v2088
  %v2225 = vpop.f32.mrb[0].mxu0
  %v2226 = vpop.f32.mrb[0].mxu0
  %2227 = vmatprep.mubr.f32.mxu0 0.0
  %2228 = vmatmul.mubr.f32.gmra.mrb[0].mxu0 %v2089
  %v2229 = vpop.f32.mrb[0].mxu0
  %v2230 = vpop.f32.mrb[0].mxu0
  %2231 = vmatprep.mubr.f32.mxu0 0.0
  %2232 = vmatmul.mubr.f32.gmra.mrb[0].mxu0 %v2090
  %v2233 = vpop.f32.mrb[0].mxu0
  %v2234 = vadd.f32 0.0, %v2233
  %v2235 = vpop.f32.mrb[0].mxu0
  %2236 = vmatprep.mubr.f32.mxu0 0.0
  %2237 = vmatmul.mubr.f32.gmra.mrb[0].mxu0 %v2091
  %v2238 = vpop.f32.mrb[0].mxu0
  %v2239 = vadd.f32 0.0, %v2238
  %v2240 = vpop.f32.mrb[0].mxu0
  %2241 = vmatprep.mubr.f32.mxu0 0.0
  %2242 = vmatmul.mubr.f32.gmra.mrb[0].mxu0 %v2092
  %v2243 = vpop.f32.mrb[0].mxu0
  %v2244 = vadd.f32 0.0, %v2243
  %v2245 = vpop.f32.mrb[0].mxu0
  %2246 = vmatprep.mubr.f32.mxu0 0.0
  %2247 = vmatmul.mubr.f32.gmra.mrb[0].mxu0 %v2093
  %v2248 = vpop.f32.mrb[0].mxu0
  %v2249 = vadd.f32 0.0, %v2248
  %v2250 = vpop.f32.mrb[0].mxu0
  %2251 = vmatprep.mubr.f32.mxu0 0.0
  %2252 = vmatmul.mubr.f32.gmra.mrb[0].mxu0 %v2094
  %v2253 = vpop.f32.mrb[0].mxu0
  %v2254 = vadd.f32 0.0, %v2253
  %v2255 = vpop.f32.mrb[0].mxu0
  %2256 = vmatprep.mubr.f32.mxu0 0.0
  %2257 = vmatmul.mubr.f32.gmra.mrb[0].mxu0 %v2095
  %v2258 = vpop.f32.mrb[0].mxu0
  %v2259 = vpop.f32.mrb[0].mxu0
  %2260 = vmatprep.mubr.f32.mxu0 0.0
  %2261 = vmatmul.mubr.f32.gmra.mrb[0].mxu0 %v2096
  %v2262 = vpop.f32.mrb[0].mxu0
  %v2263 = vpop.f32.mrb[0].mxu0
  %2264 = vmatprep.mubr.f32.mxu0 0.0
  %2265 = vmatmul.mubr.f32.gmra.mrb[0].mxu0 %v2097
  %v2266 = vpop.f32.mrb[0].mxu0
  %v2267 = vadd.f32 0.0, %v2266
  %v2268 = vpop.f32.mrb[0].mxu0
  %2269 = vmatprep.mubr.f32.mxu0 0.0
  %2270 = vmatmul.mubr.f32.gmra.mrb[0].mxu0 %v2098
  %v2271 = vpop.f32.mrb[0].mxu0
  %v2272 = vadd.f32 0.0, %v2271
  %v2273 = vpop.f32.mrb[0].mxu0
  %2274 = vmatprep.mubr.f32.mxu0 0.0
  %2275 = vmatmul.mubr.f32.gmra.mrb[0].mxu0 %v2099
  %v2276 = vpop.f32.mrb[0].mxu0
  %v2277 = vadd.f32 0.0, %v2276
  %v2278 = vpop.f32.mrb[0].mxu0
  %2279 = vmatprep.mubr.f32.mxu0 0.0
  %2280 = vmatmul.mubr.f32.gmra.mrb[0].mxu0 %v2100
  %v2281 = vpop.f32.mrb[0].mxu0
  %v2282 = vadd.f32 0.0, %v2281
  %v2283 = vpop.f32.mrb[0].mxu0
  %2284 = vmatprep.mubr.f32.mxu0 0.0
  %2285 = vmatmul.mubr.f32.gmra.mrb[0].mxu0 %v2101
  %v2286 = vpop.f32.mrb[0].mxu0
  %v2287 = vadd.f32 0.0, %v2286
  %v2288 = vpop.f32.mrb[0].mxu0
  %2289 = vmatprep.mubr.f32.mxu0 0.0
  %2290 = vmatmul.mubr.f32.gmra.mrb[0].mxu0 %v2102
  %v2291 = vpop.f32.mrb[0].mxu0
  %v2292 = vpop.f32.mrb[0].mxu0
  %2293 = vmatprep.mubr.f32.mxu0 0.0
  %2294 = vmatmul.mubr.f32.gmra.mrb[0].mxu0 %v2103
  %v2295 = vpop.f32.mrb[0].mxu0
  %v2296 = vpop.f32.mrb[0].mxu0
  %2297 = vmatprep.mubr.f32.mxu0 0.0
  %2298 = vmatmul.mubr.f32.gmra.mrb[0].mxu0 %v2104
  %v2299 = vpop.f32.mrb[0].mxu0
  %v2300 = vadd.f32 0.0, %v2299
  %v2301 = vpop.f32.mrb[0].mxu0
  %2302 = vmatprep.mubr.f32.mxu0 0.0
  %2303 = vmatmul.mubr.f32.gmra.mrb[0].mxu0 %v2105
  %v2304 = vpop.f32.mrb[0].mxu0
  %v2305 = vadd.f32 0.0, %v2304
  %v2306 = vpop.f32.mrb[0].mxu0
  %2307 = vmatprep.mubr.f32.mxu0 0.0
  %2308 = vmatmul.mubr.f32.gmra.mrb[0].mxu0 %v2106
  %v2309 = vpop.f32.mrb[0].mxu0
  %v2310 = vadd.f32 0.0, %v2309
  %v2311 = vpop.f32.mrb[0].mxu0
  %2312 = vmatprep.mubr.f32.mxu0 0.0
  %2313 = vmatmul.mubr.f32.gmra.mrb[0].mxu0 %v2107
  %v2314 = vpop.f32.mrb[0].mxu0
  %v2315 = vadd.f32 0.0, %v2314
  %v2316 = vpop.f32.mrb[0].mxu0
  %2317 = vmatprep.mubr.f32.mxu0 0.0
  %2318 = vmatmul.mubr.f32.gmra.mrb[0].mxu0 %v2108
  %v2319 = vpop.f32.mrb[0].mxu0
  %v2320 = vadd.f32 0.0, %v2319
  %v2321 = vpop.f32.mrb[0].mxu0
  %2322 = vmatprep.mubr.f32.mxu0 0.0
  %2323 = vmatmul.mubr.f32.gmra.mrb[0].mxu0 %v2109
  %v2324 = vpop.f32.mrb[0].mxu0
  %v2325 = vpop.f32.mrb[0].mxu0
  %2326 = vmatprep.mubr.f32.mxu0 0.0
  %2327 = vmatmul.mubr.f32.gmra.mrb[0].mxu0 %v2110
  %v2328 = vpop.f32.mrb[0].mxu0
  %v2329 = vpop.f32.mrb[0].mxu0
  %2330 = vmatprep.mubr.f32.mxu0 0.0
  %2331 = vmatmul.mubr.f32.gmra.mrb[0].mxu0 %v2111
  %v2332 = vpop.f32.mrb[0].mxu0
  %v2333 = vadd.f32 0.0, %v2332
  %v2334 = vpop.f32.mrb[0].mxu0
  %2335 = vmatprep.mubr.f32.mxu0 0.0
  %2336 = vmatmul.mubr.f32.gmra.mrb[0].mxu0 %v2112
  %v2337 = vpop.f32.mrb[0].mxu0
  %v2338 = vadd.f32 0.0, %v2337
  %v2339 = vpop.f32.mrb[0].mxu0
  %2340 = vmatprep.mubr.f32.mxu0 0.0
  %2341 = vmatmul.mubr.f32.gmra.mrb[0].mxu0 %v2113
  %v2342 = vpop.f32.mrb[0].mxu0
  %v2343 = vadd.f32 0.0, %v2342
  %v2344 = vpop.f32.mrb[0].mxu0
  %2345 = vmatprep.mubr.f32.mxu0 0.0
  %2346 = vmatmul.mubr.f32.gmra.mrb[0].mxu0 %v2114
  %v2347 = vpop.f32.mrb[0].mxu0
  %v2348 = vadd.f32 0.0, %v2347
  %v2349 = vpop.f32.mrb[0].mxu0
  %2350 = vmatprep.mubr.f32.mxu0 0.0
  %2351 = vmatmul.mubr.f32.gmra.mrb[0].mxu0 %v2115
  %v2352 = vpop.f32.mrb[0].mxu0
  %v2353 = vadd.f32 0.0, %v2352
  %v2354 = vpop.f32.mrb[0].mxu0
  %2355 = vmatprep.mubr.f32.mxu0 0.0
  %2356 = vmatmul.mubr.f32.gmra.mrb[0].mxu0 %v2116
  %v2357 = vpop.f32.mrb[0].mxu0
  %v2358 = vpop.f32.mrb[0].mxu0
  %2359 = vmatprep.mubr.f32.mxu0 0.0
  %2360 = vmatmul.mubr.f32.gmra.mrb[0].mxu0 %v2117
  %v2361 = vpop.f32.mrb[0].mxu0
  %v2362 = vpop.f32.mrb[0].mxu0
  %2363 = vdwg.mxu0
  %v2364 = vadd.f32 %v2058, %v2201
  %v2365 = vadd.f32 %v2059, %v2206
  %v2366 = vadd.f32 %v2060, %v2211
  %v2367 = vadd.f32 %v2061, %v2216
  %v2368 = vadd.f32 %v2062, %v2221
  %v2369 = vadd.f32 %v2063, %v2234
  %v2370 = vadd.f32 %v2064, %v2239
  %v2371 = vadd.f32 %v2065, %v2244
  %v2372 = vadd.f32 %v2066, %v2249
  %v2373 = vadd.f32 %v2067, %v2254
  %v2374 = vadd.f32 %v2068, %v2267
  %v2375 = vadd.f32 %v2069, %v2272
  %v2376 = vadd.f32 %v2070, %v2277
  %v2377 = vadd.f32 %v2071, %v2282
  %v2378 = vadd.f32 %v2072, %v2287
  %v2379 = vadd.f32 %v2073, %v2300
  %v2380 = vadd.f32 %v2074, %v2305
  %v2381 = vadd.f32 %v2075, %v2310
  %v2382 = vadd.f32 %v2076, %v2315
  %v2383 = vadd.f32 %v2077, %v2320
  %v2384 = vadd.f32 %v2078, %v2333
  %v2385 = vadd.f32 %v2079, %v2338
  %v2386 = vadd.f32 %v2080, %v2343
  %v2387 = vadd.f32 %v2081, %v2348
  %v2388 = vadd.f32 %v2082, %v2353
  %v2389 = vld [vmem:[%s0 + $0x80] sm:$0xff]
  %v2390 = vld [vmem:[%s0 + $0x88] sm:$0xff]
  %v2391 = vld [vmem:[%s0 + $0x90] sm:$0xff]
  %v2392 = vld [vmem:[%s0 + $0x98] sm:$0xff]
  %v2393 = vld [vmem:[%s0 + $0xa0] sm:$0xff]
  %v2394 = vld [vmem:[%s0 + $0xa8] sm:$0xff]
  %v2395 = vld [vmem:[%s0 + $0xb0] sm:$0xff]
  %v2396 = vld [vmem:[%s0 + $0xb8] sm:$0xff]
  %v2397 = vld [vmem:[%s0 + $0xc0] sm:$0xff]
  %v2398 = vld [vmem:[%s0 + $0xc8] sm:$0xff]
  %v2399 = vld [vmem:[%s0 + $0xd0] sm:$0xff]
  %v2400 = vld [vmem:[%s0 + $0xd8] sm:$0xff]
  %v2401 = vld [vmem:[%s0 + $0xe0] sm:$0xff]
  %v2402 = vld [vmem:[%s0 + $0xe8] sm:$0xff]
  %v2403 = vld [vmem:[%s0 + $0xf0] sm:$0xff]
  %v2404 = vld [vmem:[%s0 + $0xf8] sm:$0xff]
  %v2405 = vld [vmem:[%s0 + $0x100] sm:$0xff]
  %v2406 = vld [vmem:[%s0 + $0x108] sm:$0xff]
  %v2407 = vld [vmem:[%s0 + $0x110] sm:$0xff]
  %v2408 = vld [vmem:[%s0 + $0x118] sm:$0xff]
  %v2409 = vld [vmem:[%s0 + $0x120] sm:$0xff]
  %v2410 = vld [vmem:[%s0 + $0x128] sm:$0xff]
  %v2411 = vld [vmem:[%s0 + $0x130] sm:$0xff]
  %v2412 = vld [vmem:[%s0 + $0x138] sm:$0xff]
  %v2413 = vld [vmem:[%s0 + $0x140] sm:$0xff]
  %v2414 = vld [vmem:[%s0 + $0x148] sm:$0xff]
  %v2415 = vld [vmem:[%s0 + $0x150] sm:$0xff]
  %v2416 = vld [vmem:[%s0 + $0x158] sm:$0xff]
  %v2417 = vld [vmem:[%s0 + $0x160] sm:$0xff]
  %v2418 = vld [vmem:[%s0 + $0x168] sm:$0xff]
  %v2419 = vld [vmem:[%s0 + $0x170] sm:$0xff]
  %v2420 = vld [vmem:[%s0 + $0x178] sm:$0xff]
  %v2421 = vld [vmem:[%s0 + $0x180] sm:$0xff]
  %v2422 = vld [vmem:[%s0 + $0x188] sm:$0xff]
  %v2423 = vld [vmem:[%s0 + $0x190] sm:$0xff]
  %v2424 = vld [vmem:[%s1 + $0x400] sm:$0xff]
  %v2425 = vld [vmem:[%s1 + $0x408] sm:$0xff]
  %v2426 = vld [vmem:[%s1 + $0x410] sm:$0xff]
  %v2427 = vld [vmem:[%s1 + $0x418] sm:$0xff]
  %v2428 = vld [vmem:[%s1 + $0x420] sm:$0xff]
  %v2429 = vld [vmem:[%s1 + $0x428] sm:$0xff]
  %v2430 = vld [vmem:[%s1 + $0x430] sm:$0xff]
  %v2431 = vld [vmem:[%s1 + $0x438] sm:$0xff]
  %v2432 = vld [vmem:[%s1 + $0x440] sm:$0xff]
  %v2433 = vld [vmem:[%s1 + $0x448] sm:$0xff]
  %v2434 = vld [vmem:[%s1 + $0x450] sm:$0xff]
  %v2435 = vld [vmem:[%s1 + $0x458] sm:$0xff]
  %v2436 = vld [vmem:[%s1 + $0x460] sm:$0xff]
  %v2437 = vld [vmem:[%s1 + $0x468] sm:$0xff]
  %v2438 = vld [vmem:[%s1 + $0x470] sm:$0xff]
  %v2439 = vld [vmem:[%s1 + $0x478] sm:$0xff]
  %2440 = vmatprep.subr.mxu0 0.0
  %2441 = vmatpush1.msra.mxu0 %v2424
  %2442 = vmatprep.subr.mxu0 0.0
  %2443 = vmatpush1.msra.mxu0 %v2425
  %2444 = vmatprep.subr.mxu0 0.0
  %2445 = vmatpush1.msra.mxu0 %v2426
  %2446 = vmatprep.subr.mxu0 0.0
  %2447 = vmatpush1.msra.mxu0 %v2427
  %2448 = vmatprep.subr.mxu0 0.0
  %2449 = vmatpush1.msra.mxu0 %v2428
  %2450 = vmatprep.subr.mxu0 0.0
  %2451 = vmatpush1.msra.mxu0 %v2429
  %2452 = vmatprep.subr.mxu0 0.0
  %2453 = vmatpush1.msra.mxu0 %v2430
  %2454 = vmatprep.subr.mxu0 0.0
  %2455 = vmatpush1.msra.mxu0 %v2431
  %2456 = vmatprep.subr.mxu0 0.0
  %2457 = vmatpush1.msra.mxu0 %v2432
  %2458 = vmatprep.subr.mxu0 0.0
  %2459 = vmatpush1.msra.mxu0 %v2433
  %2460 = vmatprep.subr.mxu0 0.0
  %2461 = vmatpush1.msra.mxu0 %v2434
  %2462 = vmatprep.subr.mxu0 0.0
  %2463 = vmatpush1.msra.mxu0 %v2435
  %2464 = vmatprep.subr.mxu0 0.0
  %2465 = vmatpush1.msra.mxu0 %v2436
  %2466 = vmatprep.subr.mxu0 0.0
  %2467 = vmatpush1.msra.mxu0 %v2437
  %2468 = vmatprep.subr.mxu0 0.0
  %2469 = vmatpush1.msra.mxu0 %v2438
  %2470 = vmatprep.subr.mxu0 0.0
  %2471 = vmatpush1.msra.mxu0 %v2439
  %2472 = vmatprep.subr.mxu0 0.0
  %2473 = vmatpush1.msra.mxu0 0.0
  %2474 = vmatprep.subr.mxu0 0.0
  %2475 = vmatpush1.msra.mxu0 0.0
  %2476 = vmatprep.subr.mxu0 0.0
  %2477 = vmatpush1.msra.mxu0 0.0
  %2478 = vmatprep.subr.mxu0 0.0
  %2479 = vmatpush1.msra.mxu0 0.0
  %2480 = vmatprep.subr.mxu0 0.0
  %2481 = vmatpush1.msra.mxu0 0.0
  %2482 = vmatprep.subr.mxu0 0.0
  %2483 = vmatpush1.msra.mxu0 0.0
  %2484 = vmatprep.subr.mxu0 0.0
  %2485 = vmatpush1.msra.mxu0 0.0
  %2486 = vmatprep.subr.mxu0 0.0
  %2487 = vmatpush1.msra.mxu0 0.0
  %2488 = vmatprep.subr.mxu0 0.0
  %2489 = vmatpush1.msra.mxu0 0.0
  %2490 = vmatprep.subr.mxu0 0.0
  %2491 = vmatpush1.msra.mxu0 0.0
  %2492 = vmatprep.subr.mxu0 0.0
  %2493 = vmatpush1.msra.mxu0 0.0
  %2494 = vmatprep.subr.mxu0 0.0
  %2495 = vmatpush1.msra.mxu0 0.0
  %2496 = vmatprep.subr.mxu0 0.0
  %2497 = vmatpush1.msra.mxu0 0.0
  %2498 = vmatprep.subr.mxu0 0.0
  %2499 = vmatpush1.msra.mxu0 0.0
  %2500 = vmatprep.subr.mxu0 0.0
  %2501 = vmatpush1.msra.mxu0 0.0
  %2502 = vmatprep.subr.mxu0 0.0
  %2503 = vmatpush1.msra.mxu0 0.0
  %2504 = vmatprep.mubr.f32.mxu0 0.0
  %2505 = vmatmul.mubr.f32.gmra.mrb[0].mxu0 %v2389
  %v2506 = vpop.f32.mrb[0].mxu0
  %v2507 = vadd.f32 0.0, %v2506
  %v2508 = vpop.f32.mrb[0].mxu0
  %2509 = vmatprep.mubr.f32.mxu0 0.0
  %2510 = vmatmul.mubr.f32.gmra.mrb[0].mxu0 %v2390
  %v2511 = vpop.f32.mrb[0].mxu0
  %v2512 = vadd.f32 0.0, %v2511
  %v2513 = vpop.f32.mrb[0].mxu0
  %2514 = vmatprep.mubr.f32.mxu0 0.0
  %2515 = vmatmul.mubr.f32.gmra.mrb[0].mxu0 %v2391
  %v2516 = vpop.f32.mrb[0].mxu0
  %v2517 = vadd.f32 0.0, %v2516
  %v2518 = vpop.f32.mrb[0].mxu0
  %2519 = vmatprep.mubr.f32.mxu0 0.0
  %2520 = vmatmul.mubr.f32.gmra.mrb[0].mxu0 %v2392
  %v2521 = vpop.f32.mrb[0].mxu0
  %v2522 = vadd.f32 0.0, %v2521
  %v2523 = vpop.f32.mrb[0].mxu0
  %2524 = vmatprep.mubr.f32.mxu0 0.0
  %2525 = vmatmul.mubr.f32.gmra.mrb[0].mxu0 %v2393
  %v2526 = vpop.f32.mrb[0].mxu0
  %v2527 = vadd.f32 0.0, %v2526
  %v2528 = vpop.f32.mrb[0].mxu0
  %2529 = vmatprep.mubr.f32.mxu0 0.0
  %2530 = vmatmul.mubr.f32.gmra.mrb[0].mxu0 %v2394
  %v2531 = vpop.f32.mrb[0].mxu0
  %v2532 = vpop.f32.mrb[0].mxu0
  %2533 = vmatprep.mubr.f32.mxu0 0.0
  %2534 = vmatmul.mubr.f32.gmra.mrb[0].mxu0 %v2395
  %v2535 = vpop.f32.mrb[0].mxu0
  %v2536 = vpop.f32.mrb[0].mxu0
  %2537 = vmatprep.mubr.f32.mxu0 0.0
  %2538 = vmatmul.mubr.f32.gmra.mrb[0].mxu0 %v2396
  %v2539 = vpop.f32.mrb[0].mxu0
  %v2540 = vadd.f32 0.0, %v2539
  %v2541 = vpop.f32.mrb[0].mxu0
  %2542 = vmatprep.mubr.f32.mxu0 0.0
  %2543 = vmatmul.mubr.f32.gmra.mrb[0].mxu0 %v2397
  %v2544 = vpop.f32.mrb[0].mxu0
  %v2545 = vadd.f32 0.0, %v2544
  %v2546 = vpop.f32.mrb[0].mxu0
  %2547 = vmatprep.mubr.f32.mxu0 0.0
  %2548 = vmatmul.mubr.f32.gmra.mrb[0].mxu0 %v2398
  %v2549 = vpop.f32.mrb[0].mxu0
  %v2550 = vadd.f32 0.0, %v2549
  %v2551 = vpop.f32.mrb[0].mxu0
  %2552 = vmatprep.mubr.f32.mxu0 0.0
  %2553 = vmatmul.mubr.f32.gmra.mrb[0].mxu0 %v2399
  %v2554 = vpop.f32.mrb[0].mxu0
  %v2555 = vadd.f32 0.0, %v2554
  %v2556 = vpop.f32.mrb[0].mxu0
  %2557 = vmatprep.mubr.f32.mxu0 0.0
  %2558 = vmatmul.mubr.f32.gmra.mrb[0].mxu0 %v2400
  %v2559 = vpop.f32.mrb[0].mxu0
  %v2560 = vadd.f32 0.0, %v2559
  %v2561 = vpop.f32.mrb[0].mxu0
  %2562 = vmatprep.mubr.f32.mxu0 0.0
  %2563 = vmatmul.mubr.f32.gmra.mrb[0].mxu0 %v2401
  %v2564 = vpop.f32.mrb[0].mxu0
  %v2565 = vpop.f32.mrb[0].mxu0
  %2566 = vmatprep.mubr.f32.mxu0 0.0
  %2567 = vmatmul.mubr.f32.gmra.mrb[0].mxu0 %v2402
  %v2568 = vpop.f32.mrb[0].mxu0
  %v2569 = vpop.f32.mrb[0].mxu0
  %2570 = vmatprep.mubr.f32.mxu0 0.0
  %2571 = vmatmul.mubr.f32.gmra.mrb[0].mxu0 %v2403
  %v2572 = vpop.f32.mrb[0].mxu0
  %v2573 = vadd.f32 0.0, %v2572
  %v2574 = vpop.f32.mrb[0].mxu0
  %2575 = vmatprep.mubr.f32.mxu0 0.0
  %2576 = vmatmul.mubr.f32.gmra.mrb[0].mxu0 %v2404
  %v2577 = vpop.f32.mrb[0].mxu0
  %v2578 = vadd.f32 0.0, %v2577
  %v2579 = vpop.f32.mrb[0].mxu0
  %2580 = vmatprep.mubr.f32.mxu0 0.0
  %2581 = vmatmul.mubr.f32.gmra.mrb[0].mxu0 %v2405
  %v2582 = vpop.f32.mrb[0].mxu0
  %v2583 = vadd.f32 0.0, %v2582
  %v2584 = vpop.f32.mrb[0].mxu0
  %2585 = vmatprep.mubr.f32.mxu0 0.0
  %2586 = vmatmul.mubr.f32.gmra.mrb[0].mxu0 %v2406
  %v2587 = vpop.f32.mrb[0].mxu0
  %v2588 = vadd.f32 0.0, %v2587
  %v2589 = vpop.f32.mrb[0].mxu0
  %2590 = vmatprep.mubr.f32.mxu0 0.0
  %2591 = vmatmul.mubr.f32.gmra.mrb[0].mxu0 %v2407
  %v2592 = vpop.f32.mrb[0].mxu0
  %v2593 = vadd.f32 0.0, %v2592
  %v2594 = vpop.f32.mrb[0].mxu0
  %2595 = vmatprep.mubr.f32.mxu0 0.0
  %2596 = vmatmul.mubr.f32.gmra.mrb[0].mxu0 %v2408
  %v2597 = vpop.f32.mrb[0].mxu0
  %v2598 = vpop.f32.mrb[0].mxu0
  %2599 = vmatprep.mubr.f32.mxu0 0.0
  %2600 = vmatmul.mubr.f32.gmra.mrb[0].mxu0 %v2409
  %v2601 = vpop.f32.mrb[0].mxu0
  %v2602 = vpop.f32.mrb[0].mxu0
  %2603 = vmatprep.mubr.f32.mxu0 0.0
  %2604 = vmatmul.mubr.f32.gmra.mrb[0].mxu0 %v2410
  %v2605 = vpop.f32.mrb[0].mxu0
  %v2606 = vadd.f32 0.0, %v2605
  %v2607 = vpop.f32.mrb[0].mxu0
  %2608 = vmatprep.mubr.f32.mxu0 0.0
  %2609 = vmatmul.mubr.f32.gmra.mrb[0].mxu0 %v2411
  %v2610 = vpop.f32.mrb[0].mxu0
  %v2611 = vadd.f32 0.0, %v2610
  %v2612 = vpop.f32.mrb[0].mxu0
  %2613 = vmatprep.mubr.f32.mxu0 0.0
  %2614 = vmatmul.mubr.f32.gmra.mrb[0].mxu0 %v2412
  %v2615 = vpop.f32.mrb[0].mxu0
  %v2616 = vadd.f32 0.0, %v2615
  %v2617 = vpop.f32.mrb[0].mxu0
  %2618 = vmatprep.mubr.f32.mxu0 0.0
  %2619 = vmatmul.mubr.f32.gmra.mrb[0].mxu0 %v2413
  %v2620 = vpop.f32.mrb[0].mxu0
  %v2621 = vadd.f32 0.0, %v2620
  %v2622 = vpop.f32.mrb[0].mxu0
  %2623 = vmatprep.mubr.f32.mxu0 0.0
  %2624 = vmatmul.mubr.f32.gmra.mrb[0].mxu0 %v2414
  %v2625 = vpop.f32.mrb[0].mxu0
  %v2626 = vadd.f32 0.0, %v2625
  %v2627 = vpop.f32.mrb[0].mxu0
  %2628 = vmatprep.mubr.f32.mxu0 0.0
  %2629 = vmatmul.mubr.f32.gmra.mrb[0].mxu0 %v2415
  %v2630 = vpop.f32.mrb[0].mxu0
  %v2631 = vpop.f32.mrb[0].mxu0
  %2632 = vmatprep.mubr.f32.mxu0 0.0
  %2633 = vmatmul.mubr.f32.gmra.mrb[0].mxu0 %v2416
  %v2634 = vpop.f32.mrb[0].mxu0
  %v2635 = vpop.f32.mrb[0].mxu0
  %2636 = vmatprep.mubr.f32.mxu0 0.0
  %2637 = vmatmul.mubr.f32.gmra.mrb[0].mxu0 %v2417
  %v2638 = vpop.f32.mrb[0].mxu0
  %v2639 = vadd.f32 0.0, %v2638
  %v2640 = vpop.f32.mrb[0].mxu0
  %2641 = vmatprep.mubr.f32.mxu0 0.0
  %2642 = vmatmul.mubr.f32.gmra.mrb[0].mxu0 %v2418
  %v2643 = vpop.f32.mrb[0].mxu0
  %v2644 = vadd.f32 0.0, %v2643
  %v2645 = vpop.f32.mrb[0].mxu0
  %2646 = vmatprep.mubr.f32.mxu0 0.0
  %2647 = vmatmul.mubr.f32.gmra.mrb[0].mxu0 %v2419
  %v2648 = vpop.f32.mrb[0].mxu0
  %v2649 = vadd.f32 0.0, %v2648
  %v2650 = vpop.f32.mrb[0].mxu0
  %2651 = vmatprep.mubr.f32.mxu0 0.0
  %2652 = vmatmul.mubr.f32.gmra.mrb[0].mxu0 %v2420
  %v2653 = vpop.f32.mrb[0].mxu0
  %v2654 = vadd.f32 0.0, %v2653
  %v2655 = vpop.f32.mrb[0].mxu0
  %2656 = vmatprep.mubr.f32.mxu0 0.0
  %2657 = vmatmul.mubr.f32.gmra.mrb[0].mxu0 %v2421
  %v2658 = vpop.f32.mrb[0].mxu0
  %v2659 = vadd.f32 0.0, %v2658
  %v2660 = vpop.f32.mrb[0].mxu0
  %2661 = vmatprep.mubr.f32.mxu0 0.0
  %2662 = vmatmul.mubr.f32.gmra.mrb[0].mxu0 %v2422
  %v2663 = vpop.f32.mrb[0].mxu0
  %v2664 = vpop.f32.mrb[0].mxu0
  %2665 = vmatprep.mubr.f32.mxu0 0.0
  %2666 = vmatmul.mubr.f32.gmra.mrb[0].mxu0 %v2423
  %v2667 = vpop.f32.mrb[0].mxu0
  %v2668 = vpop.f32.mrb[0].mxu0
  %2669 = vdwg.mxu0
  %v2670 = vadd.f32 %v2364, %v2507
  %v2671 = vadd.f32 %v2365, %v2512
  %v2672 = vadd.f32 %v2366, %v2517
  %v2673 = vadd.f32 %v2367, %v2522
  %v2674 = vadd.f32 %v2368, %v2527
  %v2675 = vadd.f32 %v2369, %v2540
  %v2676 = vadd.f32 %v2370, %v2545
  %v2677 = vadd.f32 %v2371, %v2550
  %v2678 = vadd.f32 %v2372, %v2555
  %v2679 = vadd.f32 %v2373, %v2560
  %v2680 = vadd.f32 %v2374, %v2573
  %v2681 = vadd.f32 %v2375, %v2578
  %v2682 = vadd.f32 %v2376, %v2583
  %v2683 = vadd.f32 %v2377, %v2588
  %v2684 = vadd.f32 %v2378, %v2593
  %v2685 = vadd.f32 %v2379, %v2606
  %v2686 = vadd.f32 %v2380, %v2611
  %v2687 = vadd.f32 %v2381, %v2616
  %v2688 = vadd.f32 %v2382, %v2621
  %v2689 = vadd.f32 %v2383, %v2626
  %v2690 = vadd.f32 %v2384, %v2639
  %v2691 = vadd.f32 %v2385, %v2644
  %v2692 = vadd.f32 %v2386, %v2649
  %v2693 = vadd.f32 %v2387, %v2654
  %v2694 = vadd.f32 %v2388, %v2659
  %v2695 = vlaneseq
  %v2696 = vshrl.u32 %v2695, 7
  %v2697 = vsub.s32 0, %v2696
  %v2698 = vrot.slane %v17, %v2697
  %v2699 = vadd.f32 %v2670, %v2698
  %v2700 = vadd.f32 %v2671, %v2698
  %v2701 = vadd.f32 %v2672, %v2698
  %v2702 = vadd.f32 %v2673, %v2698
  %v2703 = vadd.f32 %v2674, %v2698
  %v2704 = vadd.f32 %v2675, %v2698
  %v2705 = vadd.f32 %v2676, %v2698
  %v2706 = vadd.f32 %v2677, %v2698
  %v2707 = vadd.f32 %v2678, %v2698
  %v2708 = vadd.f32 %v2679, %v2698
  %v2709 = vadd.f32 %v2680, %v2698
  %v2710 = vadd.f32 %v2681, %v2698
  %v2711 = vadd.f32 %v2682, %v2698
  %v2712 = vadd.f32 %v2683, %v2698
  %v2713 = vadd.f32 %v2684, %v2698
  %v2714 = vadd.f32 %v2685, %v2698
  %v2715 = vadd.f32 %v2686, %v2698
  %v2716 = vadd.f32 %v2687, %v2698
  %v2717 = vadd.f32 %v2688, %v2698
  %v2718 = vadd.f32 %v2689, %v2698
  %v2719 = vadd.f32 %v2690, %v2698
  %v2720 = vadd.f32 %v2691, %v2698
  %v2721 = vadd.f32 %v2692, %v2698
  %v2722 = vadd.f32 %v2693, %v2698
  %v2723 = vadd.f32 %v2694, %v2698
  %vm2724 = vcmask 523264
  %v2725 = vsel %vm2724, %v2699, 0.0
  %v2726 = vsel %vm2724, %v2700, 0.0
  %v2727 = vadd.f32 %v2725, %v2726
  %v2728 = vsel %vm2724, %v2701, 0.0
  %v2729 = vadd.f32 %v2727, %v2728
  %v2730 = vsel %vm2724, %v2702, 0.0
  %v2731 = vadd.f32 %v2729, %v2730
  %v2732 = vsel %vm2724, %v2703, 0.0
  %v2733 = vadd.f32 %v2731, %v2732
  %v2734 = vrot.slane %v2733, 4
  %v2735 = vadd.f32 %v2733, %v2734
  %v2736 = vrot.slane %v2735, 2
  %v2737 = vadd.f32 %v2735, %v2736
  %v2738 = vrot.slane %v2737, 1
  %v2739 = vadd.f32 %v2737, %v2738
  %v2740 = vsel %vm2724, %v2704, 0.0
  %v2741 = vsel %vm2724, %v2705, 0.0
  %v2742 = vadd.f32 %v2740, %v2741
  %v2743 = vsel %vm2724, %v2706, 0.0
  %v2744 = vadd.f32 %v2742, %v2743
  %v2745 = vsel %vm2724, %v2707, 0.0
  %v2746 = vadd.f32 %v2744, %v2745
  %v2747 = vsel %vm2724, %v2708, 0.0
  %v2748 = vadd.f32 %v2746, %v2747
  %v2749 = vrot.slane %v2748, 4
  %v2750 = vadd.f32 %v2748, %v2749
  %v2751 = vrot.slane %v2750, 2
  %v2752 = vadd.f32 %v2750, %v2751
  %v2753 = vrot.slane %v2752, 1
  %v2754 = vadd.f32 %v2752, %v2753
  %v2755 = vadd.f32 %v2739, %v2754
  %v2756 = vsel %vm2724, %v2709, 0.0
  %v2757 = vsel %vm2724, %v2710, 0.0
  %v2758 = vadd.f32 %v2756, %v2757
  %v2759 = vsel %vm2724, %v2711, 0.0
  %v2760 = vadd.f32 %v2758, %v2759
  %v2761 = vsel %vm2724, %v2712, 0.0
  %v2762 = vadd.f32 %v2760, %v2761
  %v2763 = vsel %vm2724, %v2713, 0.0
  %v2764 = vadd.f32 %v2762, %v2763
  %v2765 = vrot.slane %v2764, 4
  %v2766 = vadd.f32 %v2764, %v2765
  %v2767 = vrot.slane %v2766, 2
  %v2768 = vadd.f32 %v2766, %v2767
  %v2769 = vrot.slane %v2768, 1
  %v2770 = vadd.f32 %v2768, %v2769
  %v2771 = vadd.f32 %v2755, %v2770
  %v2772 = vsel %vm2724, %v2714, 0.0
  %v2773 = vsel %vm2724, %v2715, 0.0
  %v2774 = vadd.f32 %v2772, %v2773
  %v2775 = vsel %vm2724, %v2716, 0.0
  %v2776 = vadd.f32 %v2774, %v2775
  %v2777 = vsel %vm2724, %v2717, 0.0
  %v2778 = vadd.f32 %v2776, %v2777
  %v2779 = vsel %vm2724, %v2718, 0.0
  %v2780 = vadd.f32 %v2778, %v2779
  %v2781 = vrot.slane %v2780, 4
  %v2782 = vadd.f32 %v2780, %v2781
  %v2783 = vrot.slane %v2782, 2
  %v2784 = vadd.f32 %v2782, %v2783
  %v2785 = vrot.slane %v2784, 1
  %v2786 = vadd.f32 %v2784, %v2785
  %v2787 = vadd.f32 %v2771, %v2786
  %v2788 = vsel %vm2724, %v2719, 0.0
  %v2789 = vsel %vm2724, %v2720, 0.0
  %v2790 = vadd.f32 %v2788, %v2789
  %v2791 = vsel %vm2724, %v2721, 0.0
  %v2792 = vadd.f32 %v2790, %v2791
  %v2793 = vsel %vm2724, %v2722, 0.0
  %v2794 = vadd.f32 %v2792, %v2793
  %v2795 = vsel %vm2724, %v2723, 0.0
  %v2796 = vadd.f32 %v2794, %v2795
  %v2797 = vrot.slane %v2796, 4
  %v2798 = vadd.f32 %v2796, %v2797
  %v2799 = vrot.slane %v2798, 2
  %v2800 = vadd.f32 %v2798, %v2799
  %v2801 = vrot.slane %v2800, 1
  %v2802 = vadd.f32 %v2800, %v2801
  %v2803 = vadd.f32 %v2787, %v2802
  %v2804 = vmul.f32 %v2803, 0.005
  %v2805 = vsub.f32 %v2699, %v2804
  %v2806 = vsub.f32 %v2700, %v2804
  %v2807 = vsub.f32 %v2701, %v2804
  %v2808 = vsub.f32 %v2702, %v2804
  %v2809 = vsub.f32 %v2703, %v2804
  %v2810 = vsub.f32 %v2704, %v2804
  %v2811 = vsub.f32 %v2705, %v2804
  %v2812 = vsub.f32 %v2706, %v2804
  %v2813 = vsub.f32 %v2707, %v2804
  %v2814 = vsub.f32 %v2708, %v2804
  %v2815 = vsub.f32 %v2709, %v2804
  %v2816 = vsub.f32 %v2710, %v2804
  %v2817 = vsub.f32 %v2711, %v2804
  %v2818 = vsub.f32 %v2712, %v2804
  %v2819 = vsub.f32 %v2713, %v2804
  %v2820 = vsub.f32 %v2714, %v2804
  %v2821 = vsub.f32 %v2715, %v2804
  %v2822 = vsub.f32 %v2716, %v2804
  %v2823 = vsub.f32 %v2717, %v2804
  %v2824 = vsub.f32 %v2718, %v2804
  %v2825 = vsub.f32 %v2719, %v2804
  %v2826 = vsub.f32 %v2720, %v2804
  %v2827 = vsub.f32 %v2721, %v2804
  %v2828 = vsub.f32 %v2722, %v2804
  %v2829 = vsub.f32 %v2723, %v2804
  %v2830 = vmul.f32 %v2805, %v2805
  %v2831 = vmul.f32 %v2806, %v2806
  %v2832 = vmul.f32 %v2807, %v2807
  %v2833 = vmul.f32 %v2808, %v2808
  %v2834 = vmul.f32 %v2809, %v2809
  %v2835 = vsel %vm2724, %v2830, 0.0
  %v2836 = vsel %vm2724, %v2831, 0.0
  %v2837 = vadd.f32 %v2835, %v2836
  %v2838 = vsel %vm2724, %v2832, 0.0
  %v2839 = vadd.f32 %v2837, %v2838
  %v2840 = vsel %vm2724, %v2833, 0.0
  %v2841 = vadd.f32 %v2839, %v2840
  %v2842 = vsel %vm2724, %v2834, 0.0
  %v2843 = vadd.f32 %v2841, %v2842
  %v2844 = vrot.slane %v2843, 4
  %v2845 = vadd.f32 %v2843, %v2844
  %v2846 = vrot.slane %v2845, 2
  %v2847 = vadd.f32 %v2845, %v2846
  %v2848 = vrot.slane %v2847, 1
  %v2849 = vadd.f32 %v2847, %v2848
  %v2850 = vmul.f32 %v2810, %v2810
  %v2851 = vmul.f32 %v2811, %v2811
  %v2852 = vmul.f32 %v2812, %v2812
  %v2853 = vmul.f32 %v2813, %v2813
  %v2854 = vmul.f32 %v2814, %v2814
  %v2855 = vsel %vm2724, %v2850, 0.0
  %v2856 = vsel %vm2724, %v2851, 0.0
  %v2857 = vadd.f32 %v2855, %v2856
  %v2858 = vsel %vm2724, %v2852, 0.0
  %v2859 = vadd.f32 %v2857, %v2858
  %v2860 = vsel %vm2724, %v2853, 0.0
  %v2861 = vadd.f32 %v2859, %v2860
  %v2862 = vsel %vm2724, %v2854, 0.0
  %v2863 = vadd.f32 %v2861, %v2862
  %v2864 = vrot.slane %v2863, 4
  %v2865 = vadd.f32 %v2863, %v2864
  %v2866 = vrot.slane %v2865, 2
  %v2867 = vadd.f32 %v2865, %v2866
  %v2868 = vrot.slane %v2867, 1
  %v2869 = vadd.f32 %v2867, %v2868
  %v2870 = vadd.f32 %v2849, %v2869
  %v2871 = vmul.f32 %v2815, %v2815
  %v2872 = vmul.f32 %v2816, %v2816
  %v2873 = vmul.f32 %v2817, %v2817
  %v2874 = vmul.f32 %v2818, %v2818
  %v2875 = vmul.f32 %v2819, %v2819
  %v2876 = vsel %vm2724, %v2871, 0.0
  %v2877 = vsel %vm2724, %v2872, 0.0
  %v2878 = vadd.f32 %v2876, %v2877
  %v2879 = vsel %vm2724, %v2873, 0.0
  %v2880 = vadd.f32 %v2878, %v2879
  %v2881 = vsel %vm2724, %v2874, 0.0
  %v2882 = vadd.f32 %v2880, %v2881
  %v2883 = vsel %vm2724, %v2875, 0.0
  %v2884 = vadd.f32 %v2882, %v2883
  %v2885 = vrot.slane %v2884, 4
  %v2886 = vadd.f32 %v2884, %v2885
  %v2887 = vrot.slane %v2886, 2
  %v2888 = vadd.f32 %v2886, %v2887
  %v2889 = vrot.slane %v2888, 1
  %v2890 = vadd.f32 %v2888, %v2889
  %v2891 = vadd.f32 %v2870, %v2890
  %v2892 = vmul.f32 %v2820, %v2820
  %v2893 = vmul.f32 %v2821, %v2821
  %v2894 = vmul.f32 %v2822, %v2822
  %v2895 = vmul.f32 %v2823, %v2823
  %v2896 = vmul.f32 %v2824, %v2824
  %v2897 = vsel %vm2724, %v2892, 0.0
  %v2898 = vsel %vm2724, %v2893, 0.0
  %v2899 = vadd.f32 %v2897, %v2898
  %v2900 = vsel %vm2724, %v2894, 0.0
  %v2901 = vadd.f32 %v2899, %v2900
  %v2902 = vsel %vm2724, %v2895, 0.0
  %v2903 = vadd.f32 %v2901, %v2902
  %v2904 = vsel %vm2724, %v2896, 0.0
  %v2905 = vadd.f32 %v2903, %v2904
  %v2906 = vrot.slane %v2905, 4
  %v2907 = vadd.f32 %v2905, %v2906
  %v2908 = vrot.slane %v2907, 2
  %v2909 = vadd.f32 %v2907, %v2908
  %v2910 = vrot.slane %v2909, 1
  %v2911 = vadd.f32 %v2909, %v2910
  %v2912 = vadd.f32 %v2891, %v2911
  %v2913 = vmul.f32 %v2825, %v2825
  %v2914 = vmul.f32 %v2826, %v2826
  %v2915 = vmul.f32 %v2827, %v2827
  %v2916 = vmul.f32 %v2828, %v2828
  %v2917 = vmul.f32 %v2829, %v2829
  %v2918 = vsel %vm2724, %v2913, 0.0
  %v2919 = vsel %vm2724, %v2914, 0.0
  %v2920 = vadd.f32 %v2918, %v2919
  %v2921 = vsel %vm2724, %v2915, 0.0
  %v2922 = vadd.f32 %v2920, %v2921
  %v2923 = vsel %vm2724, %v2916, 0.0
  %v2924 = vadd.f32 %v2922, %v2923
  %v2925 = vsel %vm2724, %v2917, 0.0
  %v2926 = vadd.f32 %v2924, %v2925
  %v2927 = vrot.slane %v2926, 4
  %v2928 = vadd.f32 %v2926, %v2927
  %v2929 = vrot.slane %v2928, 2
  %v2930 = vadd.f32 %v2928, %v2929
  %v2931 = vrot.slane %v2930, 1
  %v2932 = vadd.f32 %v2930, %v2931
  %v2933 = vadd.f32 %v2912, %v2932
  %v2934 = vmul.f32 %v2933, 0.005
  %v2935 = vadd.f32 %v2934, 1e-05
  %v2936 = vrsqrt.pop %v2935
  %v2937 = vmul.f32 %v2805, %v2936
  %v2938 = vmul.f32 %v2806, %v2936
  %v2939 = vmul.f32 %v2807, %v2936
  %v2940 = vmul.f32 %v2808, %v2936
  %v2941 = vmul.f32 %v2810, %v2936
  %v2942 = vmul.f32 %v2811, %v2936
  %v2943 = vmul.f32 %v2812, %v2936
  %v2944 = vmul.f32 %v2813, %v2936
  %v2945 = vmul.f32 %v2815, %v2936
  %v2946 = vmul.f32 %v2816, %v2936
  %v2947 = vmul.f32 %v2817, %v2936
  %v2948 = vmul.f32 %v2818, %v2936
  %v2949 = vmul.f32 %v2820, %v2936
  %v2950 = vmul.f32 %v2821, %v2936
  %v2951 = vmul.f32 %v2822, %v2936
  %v2952 = vmul.f32 %v2823, %v2936
  %v2953 = vlaneseq
  %v2954 = vshrl.u32 %v2953, 7
  %v2955 = vsub.s32 0, %v2954
  %v2956 = vrot.slane %v18, %v2955
  %v2957 = vmul.f32 %v2937, %v2956
  %v2958 = vmul.f32 %v2938, %v2956
  %v2959 = vmul.f32 %v2939, %v2956
  %v2960 = vmul.f32 %v2940, %v2956
  %v2961 = vmul.f32 %v2941, %v2956
  %v2962 = vmul.f32 %v2942, %v2956
  %v2963 = vmul.f32 %v2943, %v2956
  %v2964 = vmul.f32 %v2944, %v2956
  %v2965 = vmul.f32 %v2945, %v2956
  %v2966 = vmul.f32 %v2946, %v2956
  %v2967 = vmul.f32 %v2947, %v2956
  %v2968 = vmul.f32 %v2948, %v2956
  %v2969 = vmul.f32 %v2949, %v2956
  %v2970 = vmul.f32 %v2950, %v2956
  %v2971 = vmul.f32 %v2951, %v2956
  %v2972 = vmul.f32 %v2952, %v2956
  %v2973 = vlaneseq
  %v2974 = vshrl.u32 %v2973, 7
  %v2975 = vsub.s32 0, %v2974
  %v2976 = vrot.slane %v19, %v2975
  %v2977 = vadd.f32 %v2957, %v2976
  %v2978 = vadd.f32 %v2958, %v2976
  %v2979 = vadd.f32 %v2959, %v2976
  %v2980 = vadd.f32 %v2960, %v2976
  %v2981 = vadd.f32 %v2961, %v2976
  %v2982 = vadd.f32 %v2962, %v2976
  %v2983 = vadd.f32 %v2963, %v2976
  %v2984 = vadd.f32 %v2964, %v2976
  %v2985 = vadd.f32 %v2965, %v2976
  %v2986 = vadd.f32 %v2966, %v2976
  %v2987 = vadd.f32 %v2967, %v2976
  %v2988 = vadd.f32 %v2968, %v2976
  %v2989 = vadd.f32 %v2969, %v2976
  %v2990 = vadd.f32 %v2970, %v2976
  %v2991 = vadd.f32 %v2971, %v2976
  %v2992 = vadd.f32 %v2972, %v2976
  %v2993 = vmax.f32 %v2977, 0.0
  %v2994 = vmax.f32 %v2978, 0.0
  %v2995 = vmax.f32 %v2979, 0.0
  %v2996 = vmax.f32 %v2980, 0.0
  %v2997 = vmax.f32 %v2981, 0.0
  %v2998 = vmax.f32 %v2982, 0.0
  %v2999 = vmax.f32 %v2983, 0.0
  %v3000 = vmax.f32 %v2984, 0.0
  %v3001 = vmax.f32 %v2985, 0.0
  %v3002 = vmax.f32 %v2986, 0.0
  %v3003 = vmax.f32 %v2987, 0.0
  %v3004 = vmax.f32 %v2988, 0.0
  %v3005 = vmax.f32 %v2989, 0.0
  %v3006 = vmax.f32 %v2990, 0.0
  %v3007 = vmax.f32 %v2991, 0.0
  %v3008 = vmax.f32 %v2992, 0.0
  %v3009 = vmax.f32 %v2993, %v2994
  %v3010 = vmax.f32 %v2997, %v2998
  %v3011 = vmax.f32 %v3009, %v3010
  %v3012 = vmax.f32 %v2995, %v2996
  %v3013 = vmax.f32 %v2999, %v3000
  %v3014 = vmax.f32 %v3012, %v3013
  %v3015 = vmax.f32 %v3001, %v3002
  %v3016 = vmax.f32 %v3005, %v3006
  %v3017 = vmax.f32 %v3015, %v3016
  %v3018 = vmax.f32 %v3003, %v3004
  %v3019 = vmax.f32 %v3007, %v3008
  %v3020 = vmax.f32 %v3018, %v3019
  %3022 = vrot.lane.b32.xlu0 %v3014, 64
  %v3023 = vpop.permute.xlu0 %3022
  %3026 = vrot.lane.b32.xlu0 %v3020, 64
  %v3027 = vpop.permute.xlu0 %3026
  %v3029 = vsel %vm2724, %v3011, %v3023
  %v3030 = vsel %vm2724, %v3017, %v3027
  %v3031 = vld [vmem:[%s1 + $0x480] sm:$0xff]
  %v3032 = vld [vmem:[%s1 + $0x488] sm:$0xff]
  %v3033 = vld [vmem:[%s1 + $0x490] sm:$0xff]
  %v3034 = vld [vmem:[%s1 + $0x498] sm:$0xff]
  %v3035 = vld [vmem:[%s1 + $0x4a0] sm:$0xff]
  %v3036 = vld [vmem:[%s1 + $0x4a8] sm:$0xff]
  %v3037 = vld [vmem:[%s1 + $0x4b0] sm:$0xff]
  %v3038 = vld [vmem:[%s1 + $0x4b8] sm:$0xff]
  %v3039 = vld [vmem:[%s1 + $0x4c0] sm:$0xff]
  %v3040 = vld [vmem:[%s1 + $0x4c8] sm:$0xff]
  %v3041 = vld [vmem:[%s1 + $0x4d0] sm:$0xff]
  %v3042 = vld [vmem:[%s1 + $0x4d8] sm:$0xff]
  %v3043 = vld [vmem:[%s1 + $0x4e0] sm:$0xff]
  %v3044 = vld [vmem:[%s1 + $0x4e8] sm:$0xff]
  %v3045 = vld [vmem:[%s1 + $0x4f0] sm:$0xff]
  %v3046 = vld [vmem:[%s1 + $0x4f8] sm:$0xff]
  %v3047 = vld [vmem:[%s1 + $0x500] sm:$0xff]
  %v3048 = vld [vmem:[%s1 + $0x508] sm:$0xff]
  %v3049 = vld [vmem:[%s1 + $0x510] sm:$0xff]
  %v3050 = vld [vmem:[%s1 + $0x518] sm:$0xff]
  %v3051 = vld [vmem:[%s1 + $0x520] sm:$0xff]
  %v3052 = vld [vmem:[%s1 + $0x528] sm:$0xff]
  %v3053 = vld [vmem:[%s1 + $0x530] sm:$0xff]
  %v3054 = vld [vmem:[%s1 + $0x538] sm:$0xff]
  %v3055 = vld [vmem:[%s1 + $0x540] sm:$0xff]
  %v3056 = vld [vmem:[%s1 + $0x548] sm:$0xff]
  %v3057 = vld [vmem:[%s1 + $0x550] sm:$0xff]
  %v3058 = vld [vmem:[%s1 + $0x558] sm:$0xff]
  %v3059 = vld [vmem:[%s1 + $0x560] sm:$0xff]
  %v3060 = vld [vmem:[%s1 + $0x568] sm:$0xff]
  %v3061 = vld [vmem:[%s1 + $0x570] sm:$0xff]
  %v3062 = vld [vmem:[%s1 + $0x578] sm:$0xff]
  %v3063 = vlaneseq
  %v3064 = vshrl.u32 %v3063, 7
  %v3065 = vsub.s32 0, %v3064
  %v3066 = vrot.slane %v20, %v3065
  %3067 = vmatprep.subr.mxu0 0.0
  %3068 = vmatpush1.msra.mxu0 %v3031
  %3069 = vmatprep.subr.mxu0 0.0
  %3070 = vmatpush1.msra.mxu0 %v3032
  %3071 = vmatprep.subr.mxu0 0.0
  %3072 = vmatpush1.msra.mxu0 %v3033
  %3073 = vmatprep.subr.mxu0 0.0
  %3074 = vmatpush1.msra.mxu0 %v3034
  %3075 = vmatprep.subr.mxu0 0.0
  %3076 = vmatpush1.msra.mxu0 %v3035
  %3077 = vmatprep.subr.mxu0 0.0
  %3078 = vmatpush1.msra.mxu0 %v3036
  %3079 = vmatprep.subr.mxu0 0.0
  %3080 = vmatpush1.msra.mxu0 %v3037
  %3081 = vmatprep.subr.mxu0 0.0
  %3082 = vmatpush1.msra.mxu0 %v3038
  %3083 = vmatprep.subr.mxu0 0.0
  %3084 = vmatpush1.msra.mxu0 %v3039
  %3085 = vmatprep.subr.mxu0 0.0
  %3086 = vmatpush1.msra.mxu0 %v3040
  %3087 = vmatprep.subr.mxu0 0.0
  %3088 = vmatpush1.msra.mxu0 %v3041
  %3089 = vmatprep.subr.mxu0 0.0
  %3090 = vmatpush1.msra.mxu0 %v3042
  %3091 = vmatprep.subr.mxu0 0.0
  %3092 = vmatpush1.msra.mxu0 %v3043
  %3093 = vmatprep.subr.mxu0 0.0
  %3094 = vmatpush1.msra.mxu0 %v3044
  %3095 = vmatprep.subr.mxu0 0.0
  %3096 = vmatpush1.msra.mxu0 %v3045
  %3097 = vmatprep.subr.mxu0 0.0
  %3098 = vmatpush1.msra.mxu0 %v3046
  %3099 = vmatprep.subr.mxu0 0.0
  %3100 = vmatpush1.msra.mxu0 %v3047
  %3101 = vmatprep.subr.mxu0 0.0
  %3102 = vmatpush1.msra.mxu0 %v3048
  %3103 = vmatprep.subr.mxu0 0.0
  %3104 = vmatpush1.msra.mxu0 %v3049
  %3105 = vmatprep.subr.mxu0 0.0
  %3106 = vmatpush1.msra.mxu0 %v3050
  %3107 = vmatprep.subr.mxu0 0.0
  %3108 = vmatpush1.msra.mxu0 %v3051
  %3109 = vmatprep.subr.mxu0 0.0
  %3110 = vmatpush1.msra.mxu0 %v3052
  %3111 = vmatprep.subr.mxu0 0.0
  %3112 = vmatpush1.msra.mxu0 %v3053
  %3113 = vmatprep.subr.mxu0 0.0
  %3114 = vmatpush1.msra.mxu0 %v3054
  %3115 = vmatprep.subr.mxu0 0.0
  %3116 = vmatpush1.msra.mxu0 %v3055
  %3117 = vmatprep.subr.mxu0 0.0
  %3118 = vmatpush1.msra.mxu0 %v3056
  %3119 = vmatprep.subr.mxu0 0.0
  %3120 = vmatpush1.msra.mxu0 %v3057
  %3121 = vmatprep.subr.mxu0 0.0
  %3122 = vmatpush1.msra.mxu0 %v3058
  %3123 = vmatprep.subr.mxu0 0.0
  %3124 = vmatpush1.msra.mxu0 %v3059
  %3125 = vmatprep.subr.mxu0 0.0
  %3126 = vmatpush1.msra.mxu0 %v3060
  %3127 = vmatprep.subr.mxu0 0.0
  %3128 = vmatpush1.msra.mxu0 %v3061
  %3129 = vmatprep.subr.mxu0 0.0
  %3130 = vmatpush1.msra.mxu0 %v3062
  %3131 = vmatprep.mubr.f32.mxu0 %v3030
  %3132 = vmatmul.mubr.f32.gmra.mrb[0].mxu0 %v3029
  %v3133 = vpop.f32.mrb[0].mxu0
  %v3134 = vadd.f32 %v3066, %v3133
  %v3135 = vpop.f32.mrb[0].mxu0
  %3136 = vdwg.mxu0
  %v3137 = vld [vmem:[%s1 + $0x580] sm:$0xff]
  %v3138 = vld [vmem:[%s1 + $0x588] sm:$0xff]
  %v3139 = vld [vmem:[%s1 + $0x590] sm:$0xff]
  %v3140 = vld [vmem:[%s1 + $0x598] sm:$0xff]
  %v3141 = vld [vmem:[%s1 + $0x5a0] sm:$0xff]
  %v3142 = vld [vmem:[%s1 + $0x5a8] sm:$0xff]
  %v3143 = vld [vmem:[%s1 + $0x5b0] sm:$0xff]
  %v3144 = vld [vmem:[%s1 + $0x5b8] sm:$0xff]
  %v3145 = vld [vmem:[%s1 + $0x5c0] sm:$0xff]
  %v3146 = vld [vmem:[%s1 + $0x5c8] sm:$0xff]
  %v3147 = vld [vmem:[%s1 + $0x5d0] sm:$0xff]
  %v3148 = vld [vmem:[%s1 + $0x5d8] sm:$0xff]
  %v3149 = vld [vmem:[%s1 + $0x5e0] sm:$0xff]
  %v3150 = vld [vmem:[%s1 + $0x5e8] sm:$0xff]
  %v3151 = vld [vmem:[%s1 + $0x5f0] sm:$0xff]
  %v3152 = vld [vmem:[%s1 + $0x5f8] sm:$0xff]
  %v3153 = vld [vmem:[%s1 + $0x600] sm:$0xff]
  %v3154 = vld [vmem:[%s1 + $0x608] sm:$0xff]
  %v3155 = vld [vmem:[%s1 + $0x610] sm:$0xff]
  %v3156 = vld [vmem:[%s1 + $0x618] sm:$0xff]
  %v3157 = vld [vmem:[%s1 + $0x620] sm:$0xff]
  %v3158 = vld [vmem:[%s1 + $0x628] sm:$0xff]
  %v3159 = vld [vmem:[%s1 + $0x630] sm:$0xff]
  %v3160 = vld [vmem:[%s1 + $0x638] sm:$0xff]
  %v3161 = vld [vmem:[%s1 + $0x640] sm:$0xff]
  %v3162 = vld [vmem:[%s1 + $0x648] sm:$0xff]
  %v3163 = vld [vmem:[%s1 + $0x650] sm:$0xff]
  %v3164 = vld [vmem:[%s1 + $0x658] sm:$0xff]
  %v3165 = vld [vmem:[%s1 + $0x660] sm:$0xff]
  %v3166 = vld [vmem:[%s1 + $0x668] sm:$0xff]
  %v3167 = vld [vmem:[%s1 + $0x670] sm:$0xff]
  %v3168 = vld [vmem:[%s1 + $0x678] sm:$0xff]
  %3169 = vmatprep.subr.mxu0 0.0
  %3170 = vmatpush1.msra.mxu0 %v3137
  %3171 = vmatprep.subr.mxu0 0.0
  %3172 = vmatpush1.msra.mxu0 %v3138
  %3173 = vmatprep.subr.mxu0 0.0
  %3174 = vmatpush1.msra.mxu0 %v3139
  %3175 = vmatprep.subr.mxu0 0.0
  %3176 = vmatpush1.msra.mxu0 %v3140
  %3177 = vmatprep.subr.mxu0 0.0
  %3178 = vmatpush1.msra.mxu0 %v3141
  %3179 = vmatprep.subr.mxu0 0.0
  %3180 = vmatpush1.msra.mxu0 %v3142
  %3181 = vmatprep.subr.mxu0 0.0
  %3182 = vmatpush1.msra.mxu0 %v3143
  %3183 = vmatprep.subr.mxu0 0.0
  %3184 = vmatpush1.msra.mxu0 %v3144
  %3185 = vmatprep.subr.mxu0 0.0
  %3186 = vmatpush1.msra.mxu0 %v3145
  %3187 = vmatprep.subr.mxu0 0.0
  %3188 = vmatpush1.msra.mxu0 %v3146
  %3189 = vmatprep.subr.mxu0 0.0
  %3190 = vmatpush1.msra.mxu0 %v3147
  %3191 = vmatprep.subr.mxu0 0.0
  %3192 = vmatpush1.msra.mxu0 %v3148
  %3193 = vmatprep.subr.mxu0 0.0
  %3194 = vmatpush1.msra.mxu0 %v3149
  %3195 = vmatprep.subr.mxu0 0.0
  %3196 = vmatpush1.msra.mxu0 %v3150
  %3197 = vmatprep.subr.mxu0 0.0
  %3198 = vmatpush1.msra.mxu0 %v3151
  %3199 = vmatprep.subr.mxu0 0.0
  %3200 = vmatpush1.msra.mxu0 %v3152
  %3201 = vmatprep.subr.mxu0 0.0
  %3202 = vmatpush1.msra.mxu0 %v3153
  %3203 = vmatprep.subr.mxu0 0.0
  %3204 = vmatpush1.msra.mxu0 %v3154
  %3205 = vmatprep.subr.mxu0 0.0
  %3206 = vmatpush1.msra.mxu0 %v3155
  %3207 = vmatprep.subr.mxu0 0.0
  %3208 = vmatpush1.msra.mxu0 %v3156
  %3209 = vmatprep.subr.mxu0 0.0
  %3210 = vmatpush1.msra.mxu0 %v3157
  %3211 = vmatprep.subr.mxu0 0.0
  %3212 = vmatpush1.msra.mxu0 %v3158
  %3213 = vmatprep.subr.mxu0 0.0
  %3214 = vmatpush1.msra.mxu0 %v3159
  %3215 = vmatprep.subr.mxu0 0.0
  %3216 = vmatpush1.msra.mxu0 %v3160
  %3217 = vmatprep.subr.mxu0 0.0
  %3218 = vmatpush1.msra.mxu0 %v3161
  %3219 = vmatprep.subr.mxu0 0.0
  %3220 = vmatpush1.msra.mxu0 %v3162
  %3221 = vmatprep.subr.mxu0 0.0
  %3222 = vmatpush1.msra.mxu0 %v3163
  %3223 = vmatprep.subr.mxu0 0.0
  %3224 = vmatpush1.msra.mxu0 %v3164
  %3225 = vmatprep.subr.mxu0 0.0
  %3226 = vmatpush1.msra.mxu0 %v3165
  %3227 = vmatprep.subr.mxu0 0.0
  %3228 = vmatpush1.msra.mxu0 %v3166
  %3229 = vmatprep.subr.mxu0 0.0
  %3230 = vmatpush1.msra.mxu0 %v3167
  %3231 = vmatprep.subr.mxu0 0.0
  %3232 = vmatpush1.msra.mxu0 %v3168
  %3233 = vmatprep.mubr.f32.mxu0 %v3030
  %3234 = vmatmul.mubr.f32.gmra.mrb[0].mxu0 %v3029
  %v3235 = vpop.f32.mrb[0].mxu0
  %v3236 = vadd.f32 %v3066, %v3235
  %v3237 = vpop.f32.mrb[0].mxu0
  %3238 = vdwg.mxu0
  %v3239 = vld [vmem:[%s1 + $0x680] sm:$0xff]
  %v3240 = vld [vmem:[%s1 + $0x688] sm:$0xff]
  %v3241 = vld [vmem:[%s1 + $0x690] sm:$0xff]
  %v3242 = vld [vmem:[%s1 + $0x698] sm:$0xff]
  %v3243 = vld [vmem:[%s1 + $0x6a0] sm:$0xff]
  %v3244 = vld [vmem:[%s1 + $0x6a8] sm:$0xff]
  %v3245 = vld [vmem:[%s1 + $0x6b0] sm:$0xff]
  %v3246 = vld [vmem:[%s1 + $0x6b8] sm:$0xff]
  %v3247 = vld [vmem:[%s1 + $0x6c0] sm:$0xff]
  %v3248 = vld [vmem:[%s1 + $0x6c8] sm:$0xff]
  %v3249 = vld [vmem:[%s1 + $0x6d0] sm:$0xff]
  %v3250 = vld [vmem:[%s1 + $0x6d8] sm:$0xff]
  %v3251 = vld [vmem:[%s1 + $0x6e0] sm:$0xff]
  %v3252 = vld [vmem:[%s1 + $0x6e8] sm:$0xff]
  %v3253 = vld [vmem:[%s1 + $0x6f0] sm:$0xff]
  %v3254 = vld [vmem:[%s1 + $0x6f8] sm:$0xff]
  %v3255 = vld [vmem:[%s1 + $0x700] sm:$0xff]
  %v3256 = vld [vmem:[%s1 + $0x708] sm:$0xff]
  %v3257 = vld [vmem:[%s1 + $0x710] sm:$0xff]
  %v3258 = vld [vmem:[%s1 + $0x718] sm:$0xff]
  %v3259 = vld [vmem:[%s1 + $0x720] sm:$0xff]
  %v3260 = vld [vmem:[%s1 + $0x728] sm:$0xff]
  %v3261 = vld [vmem:[%s1 + $0x730] sm:$0xff]
  %v3262 = vld [vmem:[%s1 + $0x738] sm:$0xff]
  %v3263 = vld [vmem:[%s1 + $0x740] sm:$0xff]
  %v3264 = vld [vmem:[%s1 + $0x748] sm:$0xff]
  %v3265 = vld [vmem:[%s1 + $0x750] sm:$0xff]
  %v3266 = vld [vmem:[%s1 + $0x758] sm:$0xff]
  %v3267 = vld [vmem:[%s1 + $0x760] sm:$0xff]
  %v3268 = vld [vmem:[%s1 + $0x768] sm:$0xff]
  %v3269 = vld [vmem:[%s1 + $0x770] sm:$0xff]
  %v3270 = vld [vmem:[%s1 + $0x778] sm:$0xff]
  %3271 = vmatprep.subr.mxu0 0.0
  %3272 = vmatpush1.msra.mxu0 %v3239
  %3273 = vmatprep.subr.mxu0 0.0
  %3274 = vmatpush1.msra.mxu0 %v3240
  %3275 = vmatprep.subr.mxu0 0.0
  %3276 = vmatpush1.msra.mxu0 %v3241
  %3277 = vmatprep.subr.mxu0 0.0
  %3278 = vmatpush1.msra.mxu0 %v3242
  %3279 = vmatprep.subr.mxu0 0.0
  %3280 = vmatpush1.msra.mxu0 %v3243
  %3281 = vmatprep.subr.mxu0 0.0
  %3282 = vmatpush1.msra.mxu0 %v3244
  %3283 = vmatprep.subr.mxu0 0.0
  %3284 = vmatpush1.msra.mxu0 %v3245
  %3285 = vmatprep.subr.mxu0 0.0
  %3286 = vmatpush1.msra.mxu0 %v3246
  %3287 = vmatprep.subr.mxu0 0.0
  %3288 = vmatpush1.msra.mxu0 %v3247
  %3289 = vmatprep.subr.mxu0 0.0
  %3290 = vmatpush1.msra.mxu0 %v3248
  %3291 = vmatprep.subr.mxu0 0.0
  %3292 = vmatpush1.msra.mxu0 %v3249
  %3293 = vmatprep.subr.mxu0 0.0
  %3294 = vmatpush1.msra.mxu0 %v3250
  %3295 = vmatprep.subr.mxu0 0.0
  %3296 = vmatpush1.msra.mxu0 %v3251
  %3297 = vmatprep.subr.mxu0 0.0
  %3298 = vmatpush1.msra.mxu0 %v3252
  %3299 = vmatprep.subr.mxu0 0.0
  %3300 = vmatpush1.msra.mxu0 %v3253
  %3301 = vmatprep.subr.mxu0 0.0
  %3302 = vmatpush1.msra.mxu0 %v3254
  %3303 = vmatprep.subr.mxu0 0.0
  %3304 = vmatpush1.msra.mxu0 %v3255
  %3305 = vmatprep.subr.mxu0 0.0
  %3306 = vmatpush1.msra.mxu0 %v3256
  %3307 = vmatprep.subr.mxu0 0.0
  %3308 = vmatpush1.msra.mxu0 %v3257
  %3309 = vmatprep.subr.mxu0 0.0
  %3310 = vmatpush1.msra.mxu0 %v3258
  %3311 = vmatprep.subr.mxu0 0.0
  %3312 = vmatpush1.msra.mxu0 %v3259
  %3313 = vmatprep.subr.mxu0 0.0
  %3314 = vmatpush1.msra.mxu0 %v3260
  %3315 = vmatprep.subr.mxu0 0.0
  %3316 = vmatpush1.msra.mxu0 %v3261
  %3317 = vmatprep.subr.mxu0 0.0
  %3318 = vmatpush1.msra.mxu0 %v3262
  %3319 = vmatprep.subr.mxu0 0.0
  %3320 = vmatpush1.msra.mxu0 %v3263
  %3321 = vmatprep.subr.mxu0 0.0
  %3322 = vmatpush1.msra.mxu0 %v3264
  %3323 = vmatprep.subr.mxu0 0.0
  %3324 = vmatpush1.msra.mxu0 %v3265
  %3325 = vmatprep.subr.mxu0 0.0
  %3326 = vmatpush1.msra.mxu0 %v3266
  %3327 = vmatprep.subr.mxu0 0.0
  %3328 = vmatpush1.msra.mxu0 %v3267
  %3329 = vmatprep.subr.mxu0 0.0
  %3330 = vmatpush1.msra.mxu0 %v3268
  %3331 = vmatprep.subr.mxu0 0.0
  %3332 = vmatpush1.msra.mxu0 %v3269
  %3333 = vmatprep.subr.mxu0 0.0
  %3334 = vmatpush1.msra.mxu0 %v3270
  %3335 = vmatprep.mubr.f32.mxu0 %v3030
  %3336 = vmatmul.mubr.f32.gmra.mrb[0].mxu0 %v3029
  %v3337 = vpop.f32.mrb[0].mxu0
  %v3338 = vadd.f32 %v3066, %v3337
  %v3339 = vpop.f32.mrb[0].mxu0
  %3340 = vdwg.mxu0
  %v3341 = vld [vmem:[%s1 + $0x780] sm:$0xff]
  %v3342 = vld [vmem:[%s1 + $0x788] sm:$0xff]
  %v3343 = vld [vmem:[%s1 + $0x790] sm:$0xff]
  %v3344 = vld [vmem:[%s1 + $0x798] sm:$0xff]
  %v3345 = vld [vmem:[%s1 + $0x7a0] sm:$0xff]
  %v3346 = vld [vmem:[%s1 + $0x7a8] sm:$0xff]
  %v3347 = vld [vmem:[%s1 + $0x7b0] sm:$0xff]
  %v3348 = vld [vmem:[%s1 + $0x7b8] sm:$0xff]
  %v3349 = vld [vmem:[%s1 + $0x7c0] sm:$0xff]
  %v3350 = vld [vmem:[%s1 + $0x7c8] sm:$0xff]
  %v3351 = vld [vmem:[%s1 + $0x7d0] sm:$0xff]
  %v3352 = vld [vmem:[%s1 + $0x7d8] sm:$0xff]
  %v3353 = vld [vmem:[%s1 + $0x7e0] sm:$0xff]
  %v3354 = vld [vmem:[%s1 + $0x7e8] sm:$0xff]
  %v3355 = vld [vmem:[%s1 + $0x7f0] sm:$0xff]
  %v3356 = vld [vmem:[%s1 + $0x7f8] sm:$0xff]
  %v3357 = vld [vmem:[%s1 + $0x800] sm:$0xff]
  %v3358 = vld [vmem:[%s1 + $0x808] sm:$0xff]
  %v3359 = vld [vmem:[%s1 + $0x810] sm:$0xff]
  %v3360 = vld [vmem:[%s1 + $0x818] sm:$0xff]
  %v3361 = vld [vmem:[%s1 + $0x820] sm:$0xff]
  %v3362 = vld [vmem:[%s1 + $0x828] sm:$0xff]
  %v3363 = vld [vmem:[%s1 + $0x830] sm:$0xff]
  %v3364 = vld [vmem:[%s1 + $0x838] sm:$0xff]
  %v3365 = vld [vmem:[%s1 + $0x840] sm:$0xff]
  %v3366 = vld [vmem:[%s1 + $0x848] sm:$0xff]
  %v3367 = vld [vmem:[%s1 + $0x850] sm:$0xff]
  %v3368 = vld [vmem:[%s1 + $0x858] sm:$0xff]
  %v3369 = vld [vmem:[%s1 + $0x860] sm:$0xff]
  %v3370 = vld [vmem:[%s1 + $0x868] sm:$0xff]
  %v3371 = vld [vmem:[%s1 + $0x870] sm:$0xff]
  %v3372 = vld [vmem:[%s1 + $0x878] sm:$0xff]
  %3373 = vmatprep.subr.mxu0 0.0
  %3374 = vmatpush1.msra.mxu0 %v3341
  %3375 = vmatprep.subr.mxu0 0.0
  %3376 = vmatpush1.msra.mxu0 %v3342
  %3377 = vmatprep.subr.mxu0 0.0
  %3378 = vmatpush1.msra.mxu0 %v3343
  %3379 = vmatprep.subr.mxu0 0.0
  %3380 = vmatpush1.msra.mxu0 %v3344
  %3381 = vmatprep.subr.mxu0 0.0
  %3382 = vmatpush1.msra.mxu0 %v3345
  %3383 = vmatprep.subr.mxu0 0.0
  %3384 = vmatpush1.msra.mxu0 %v3346
  %3385 = vmatprep.subr.mxu0 0.0
  %3386 = vmatpush1.msra.mxu0 %v3347
  %3387 = vmatprep.subr.mxu0 0.0
  %3388 = vmatpush1.msra.mxu0 %v3348
  %3389 = vmatprep.subr.mxu0 0.0
  %3390 = vmatpush1.msra.mxu0 %v3349
  %3391 = vmatprep.subr.mxu0 0.0
  %3392 = vmatpush1.msra.mxu0 %v3350
  %3393 = vmatprep.subr.mxu0 0.0
  %3394 = vmatpush1.msra.mxu0 %v3351
  %3395 = vmatprep.subr.mxu0 0.0
  %3396 = vmatpush1.msra.mxu0 %v3352
  %3397 = vmatprep.subr.mxu0 0.0
  %3398 = vmatpush1.msra.mxu0 %v3353
  %3399 = vmatprep.subr.mxu0 0.0
  %3400 = vmatpush1.msra.mxu0 %v3354
  %3401 = vmatprep.subr.mxu0 0.0
  %3402 = vmatpush1.msra.mxu0 %v3355
  %3403 = vmatprep.subr.mxu0 0.0
  %3404 = vmatpush1.msra.mxu0 %v3356
  %3405 = vmatprep.subr.mxu0 0.0
  %3406 = vmatpush1.msra.mxu0 %v3357
  %3407 = vmatprep.subr.mxu0 0.0
  %3408 = vmatpush1.msra.mxu0 %v3358
  %3409 = vmatprep.subr.mxu0 0.0
  %3410 = vmatpush1.msra.mxu0 %v3359
  %3411 = vmatprep.subr.mxu0 0.0
  %3412 = vmatpush1.msra.mxu0 %v3360
  %3413 = vmatprep.subr.mxu0 0.0
  %3414 = vmatpush1.msra.mxu0 %v3361
  %3415 = vmatprep.subr.mxu0 0.0
  %3416 = vmatpush1.msra.mxu0 %v3362
  %3417 = vmatprep.subr.mxu0 0.0
  %3418 = vmatpush1.msra.mxu0 %v3363
  %3419 = vmatprep.subr.mxu0 0.0
  %3420 = vmatpush1.msra.mxu0 %v3364
  %3421 = vmatprep.subr.mxu0 0.0
  %3422 = vmatpush1.msra.mxu0 %v3365
  %3423 = vmatprep.subr.mxu0 0.0
  %3424 = vmatpush1.msra.mxu0 %v3366
  %3425 = vmatprep.subr.mxu0 0.0
  %3426 = vmatpush1.msra.mxu0 %v3367
  %3427 = vmatprep.subr.mxu0 0.0
  %3428 = vmatpush1.msra.mxu0 %v3368
  %3429 = vmatprep.subr.mxu0 0.0
  %3430 = vmatpush1.msra.mxu0 %v3369
  %3431 = vmatprep.subr.mxu0 0.0
  %3432 = vmatpush1.msra.mxu0 %v3370
  %3433 = vmatprep.subr.mxu0 0.0
  %3434 = vmatpush1.msra.mxu0 %v3371
  %3435 = vmatprep.subr.mxu0 0.0
  %3436 = vmatpush1.msra.mxu0 %v3372
  %3437 = vmatprep.mubr.f32.mxu0 %v3030
  %3438 = vmatmul.mubr.f32.gmra.mrb[0].mxu0 %v3029
  %v3439 = vpop.f32.mrb[0].mxu0
  %v3440 = vadd.f32 %v3066, %v3439
  %v3441 = vpop.f32.mrb[0].mxu0
  %3442 = vdwg.mxu0
  %v3443 = vadd.f32 %v3134, %v3236
  %v3444 = vadd.f32 %v3443, %v3338
  %v3445 = vadd.f32 %v3444, %v3440
  %v3446 = vsel %vm2724, %v3445, 0.0
  %v3447 = vrot.slane %v3446, 4
  %v3448 = vadd.f32 %v3446, %v3447
  %v3449 = vrot.slane %v3448, 2
  %v3450 = vadd.f32 %v3448, %v3449
  %v3451 = vrot.slane %v3450, 1
  %v3452 = vadd.f32 %v3450, %v3451
  %v3453 = vmul.f32 %v3452, 0.03125
  %v3454 = vsub.f32 %v3134, %v3453
  %v3455 = vsub.f32 %v3236, %v3453
  %v3456 = vsub.f32 %v3338, %v3453
  %v3457 = vsub.f32 %v3440, %v3453
  %v3458 = vmul.f32 %v3454, %v3454
  %v3459 = vmul.f32 %v3455, %v3455
  %v3460 = vadd.f32 %v3458, %v3459
  %v3461 = vmul.f32 %v3456, %v3456
  %v3462 = vadd.f32 %v3460, %v3461
  %v3463 = vmul.f32 %v3457, %v3457
  %v3464 = vadd.f32 %v3462, %v3463
  %v3465 = vsel %vm2724, %v3464, 0.0
  %v3466 = vrot.slane %v3465, 4
  %v3467 = vadd.f32 %v3465, %v3466
  %v3468 = vrot.slane %v3467, 2
  %v3469 = vadd.f32 %v3467, %v3468
  %v3470 = vrot.slane %v3469, 1
  %v3471 = vadd.f32 %v3469, %v3470
  %v3472 = vmul.f32 %v3471, 0.03125
  %v3473 = vadd.f32 %v3472, 1e-05
  %v3474 = vrsqrt.pop %v3473
  %v3475 = vmul.f32 %v3454, %v3474
  %v3476 = vlaneseq
  %v3477 = vshrl.u32 %v3476, 7
  %v3478 = vsub.s32 0, %v3477
  %v3479 = vrot.slane %v21, %v3478
  %v3480 = vmul.f32 %v3475, %v3479
  %v3481 = vlaneseq
  %v3482 = vshrl.u32 %v3481, 7
  %v3483 = vsub.s32 0, %v3482
  %v3484 = vrot.slane %v22, %v3483
  %v3485 = vadd.f32 %v3480, %v3484
  %v3486 = vmax.f32 %v3485, 0.0
  %v3487 = vmul.f32 %v3455, %v3474
  %v3488 = vmul.f32 %v3487, %v3479
  %v3489 = vadd.f32 %v3488, %v3484
  %v3490 = vmax.f32 %v3489, 0.0
  %v3491 = vmul.f32 %v3456, %v3474
  %v3492 = vmul.f32 %v3491, %v3479
  %v3493 = vadd.f32 %v3492, %v3484
  %v3494 = vmax.f32 %v3493, 0.0
  %v3495 = vmul.f32 %v3457, %v3474
  %v3496 = vmul.f32 %v3495, %v3479
  %v3497 = vadd.f32 %v3496, %v3484
  %v3498 = vmax.f32 %v3497, 0.0
  %v3499 = vmax.f32 %v3486, %v3490
  %v3500 = vmax.f32 %v3494, %v3498
  %v3501 = vmax.f32 %v3499, %v3500
  %v3502 = vld [vmem:[%s3] sm:$0xff]
  %v3503 = vld [vmem:[%s3 + $0x8] sm:$0xff]
  %v3504 = vld [vmem:[%s3 + $0x10] sm:$0xff]
  %v3505 = vld [vmem:[%s3 + $0x18] sm:$0xff]
  %v3506 = vld [vmem:[%s3 + $0x20] sm:$0xff]
  %v3507 = vld [vmem:[%s3 + $0x28] sm:$0xff]
  %v3508 = vld [vmem:[%s3 + $0x30] sm:$0xff]
  %v3509 = vld [vmem:[%s3 + $0x38] sm:$0xff]
  %v3510 = vld [vmem:[%s3 + $0x40] sm:$0xff]
  %v3511 = vlaneseq
  %v3512 = vshrl.u32 %v3511, 7
  %v3513 = vsub.s32 0, %v3512
  %v3514 = vrot.slane %v23, %v3513
  %v3516 = vsel %vm2724, %v3501, 0
  %3518 = vmatprep.subr.mxu0 0.0
  %3519 = vmatpush1.msra.mxu0 %v3502
  %3520 = vmatprep.subr.mxu0 0.0
  %3521 = vmatpush1.msra.mxu0 %v3503
  %3522 = vmatprep.subr.mxu0 0.0
  %3523 = vmatpush1.msra.mxu0 %v3504
  %3524 = vmatprep.subr.mxu0 0.0
  %3525 = vmatpush1.msra.mxu0 %v3505
  %3526 = vmatprep.subr.mxu0 0.0
  %3527 = vmatpush1.msra.mxu0 %v3506
  %3528 = vmatprep.subr.mxu0 0.0
  %3529 = vmatpush1.msra.mxu0 %v3507
  %3530 = vmatprep.subr.mxu0 0.0
  %3531 = vmatpush1.msra.mxu0 %v3508
  %3532 = vmatprep.subr.mxu0 0.0
  %3533 = vmatpush1.msra.mxu0 %v3509
  %3534 = vmatprep.subr.mxu0 0.0
  %3535 = vmatpush1.msra.mxu0 0.0
  %3536 = vmatprep.subr.mxu0 0.0
  %3537 = vmatpush1.msra.mxu0 0.0
  %3538 = vmatprep.subr.mxu0 0.0
  %3539 = vmatpush1.msra.mxu0 0.0
  %3540 = vmatprep.subr.mxu0 0.0
  %3541 = vmatpush1.msra.mxu0 0.0
  %3542 = vmatprep.subr.mxu0 0.0
  %3543 = vmatpush1.msra.mxu0 0.0
  %3544 = vmatprep.subr.mxu0 0.0
  %3545 = vmatpush1.msra.mxu0 0.0
  %3546 = vmatprep.subr.mxu0 0.0
  %3547 = vmatpush1.msra.mxu0 0.0
  %3548 = vmatprep.subr.mxu0 0.0
  %3549 = vmatpush1.msra.mxu0 0.0
  %3550 = vmatprep.subr.mxu0 0.0
  %3551 = vmatpush1.msra.mxu0 0.0
  %3552 = vmatprep.subr.mxu0 0.0
  %3553 = vmatpush1.msra.mxu0 0.0
  %3554 = vmatprep.subr.mxu0 0.0
  %3555 = vmatpush1.msra.mxu0 0.0
  %3556 = vmatprep.subr.mxu0 0.0
  %3557 = vmatpush1.msra.mxu0 0.0
  %3558 = vmatprep.subr.mxu0 0.0
  %3559 = vmatpush1.msra.mxu0 0.0
  %3560 = vmatprep.subr.mxu0 0.0
  %3561 = vmatpush1.msra.mxu0 0.0
  %3562 = vmatprep.subr.mxu0 0.0
  %3563 = vmatpush1.msra.mxu0 0.0
  %3564 = vmatprep.subr.mxu0 0.0
  %3565 = vmatpush1.msra.mxu0 0.0
  %3566 = vmatprep.subr.mxu0 0.0
  %3567 = vmatpush1.msra.mxu0 0.0
  %3568 = vmatprep.subr.mxu0 0.0
  %3569 = vmatpush1.msra.mxu0 0.0
  %3570 = vmatprep.subr.mxu0 0.0
  %3571 = vmatpush1.msra.mxu0 0.0
  %3572 = vmatprep.subr.mxu0 0.0
  %3573 = vmatpush1.msra.mxu0 0.0
  %3574 = vmatprep.subr.mxu0 0.0
  %3575 = vmatpush1.msra.mxu0 0.0
  %3576 = vmatprep.subr.mxu0 0.0
  %3577 = vmatpush1.msra.mxu0 0.0
  %3578 = vmatprep.subr.mxu0 0.0
  %3579 = vmatpush1.msra.mxu0 0.0
  %3580 = vmatprep.subr.mxu0 0.0
  %3581 = vmatpush1.msra.mxu0 0.0
  %3582 = vmatprep.mubr.f32.mxu0 0.0
  %3583 = vmatmul.mubr.f32.gmra.mrb[0].mxu0 %v3516
  %v3584 = vpop.f32.mrb[0].mxu0
  %v3585 = vadd.f32 %v3514, %v3584
  %v3586 = vpop.f32.mrb[0].mxu0
  %3587 = vdwg.mxu0
  %v3588 = vmax.f32 %v3585, 0.0
  %v3589 = vlaneseq
  %v3590 = vshrl.u32 %v3589, 7
  %v3591 = vsub.s32 0, %v3590
  %v3592 = vrot.slane %v24, %v3591
  %vm3593 = vcmask 64512
  %v3595 = vsel %vm3593, %v3588, 0
  %3597 = vmatprep.subr.mxu0 0.0
  %3598 = vmatpush1.msra.mxu0 %v3510
  %3599 = vmatprep.subr.mxu0 0.0
  %3600 = vmatpush1.msra.mxu0 0.0
  %3601 = vmatprep.subr.mxu0 0.0
  %3602 = vmatpush1.msra.mxu0 0.0
  %3603 = vmatprep.subr.mxu0 0.0
  %3604 = vmatpush1.msra.mxu0 0.0
  %3605 = vmatprep.subr.mxu0 0.0
  %3606 = vmatpush1.msra.mxu0 0.0
  %3607 = vmatprep.subr.mxu0 0.0
  %3608 = vmatpush1.msra.mxu0 0.0
  %3609 = vmatprep.subr.mxu0 0.0
  %3610 = vmatpush1.msra.mxu0 0.0
  %3611 = vmatprep.subr.mxu0 0.0
  %3612 = vmatpush1.msra.mxu0 0.0
  %3613 = vmatprep.subr.mxu0 0.0
  %3614 = vmatpush1.msra.mxu0 0.0
  %3615 = vmatprep.subr.mxu0 0.0
  %3616 = vmatpush1.msra.mxu0 0.0
  %3617 = vmatprep.subr.mxu0 0.0
  %3618 = vmatpush1.msra.mxu0 0.0
  %3619 = vmatprep.subr.mxu0 0.0
  %3620 = vmatpush1.msra.mxu0 0.0
  %3621 = vmatprep.subr.mxu0 0.0
  %3622 = vmatpush1.msra.mxu0 0.0
  %3623 = vmatprep.subr.mxu0 0.0
  %3624 = vmatpush1.msra.mxu0 0.0
  %3625 = vmatprep.subr.mxu0 0.0
  %3626 = vmatpush1.msra.mxu0 0.0
  %3627 = vmatprep.subr.mxu0 0.0
  %3628 = vmatpush1.msra.mxu0 0.0
  %3629 = vmatprep.subr.mxu0 0.0
  %3630 = vmatpush1.msra.mxu0 0.0
  %3631 = vmatprep.subr.mxu0 0.0
  %3632 = vmatpush1.msra.mxu0 0.0
  %3633 = vmatprep.subr.mxu0 0.0
  %3634 = vmatpush1.msra.mxu0 0.0
  %3635 = vmatprep.subr.mxu0 0.0
  %3636 = vmatpush1.msra.mxu0 0.0
  %3637 = vmatprep.subr.mxu0 0.0
  %3638 = vmatpush1.msra.mxu0 0.0
  %3639 = vmatprep.subr.mxu0 0.0
  %3640 = vmatpush1.msra.mxu0 0.0
  %3641 = vmatprep.subr.mxu0 0.0
  %3642 = vmatpush1.msra.mxu0 0.0
  %3643 = vmatprep.subr.mxu0 0.0
  %3644 = vmatpush1.msra.mxu0 0.0
  %3645 = vmatprep.subr.mxu0 0.0
  %3646 = vmatpush1.msra.mxu0 0.0
  %3647 = vmatprep.subr.mxu0 0.0
  %3648 = vmatpush1.msra.mxu0 0.0
  %3649 = vmatprep.subr.mxu0 0.0
  %3650 = vmatpush1.msra.mxu0 0.0
  %3651 = vmatprep.subr.mxu0 0.0
  %3652 = vmatpush1.msra.mxu0 0.0
  %3653 = vmatprep.subr.mxu0 0.0
  %3654 = vmatpush1.msra.mxu0 0.0
  %3655 = vmatprep.subr.mxu0 0.0
  %3656 = vmatpush1.msra.mxu0 0.0
  %3657 = vmatprep.subr.mxu0 0.0
  %3658 = vmatpush1.msra.mxu0 0.0
  %3659 = vmatprep.subr.mxu0 0.0
  %3660 = vmatpush1.msra.mxu0 0.0
  %3661 = vmatprep.mubr.f32.mxu0 0.0
  %3662 = vmatmul.mubr.f32.gmra.mrb[0].mxu0 %v3595
  %v3663 = vpop.f32.mrb[0].mxu0
  %v3664 = vadd.f32 %v3592, %v3663
  %v3665 = vpop.f32.mrb[0].mxu0
  %3666 = vdwg.mxu0
  %v3667 = vsub.f32 0.0, %v3664
  %v3668 = vmul.f32 %v3667, 1.442695
  %v3669 = vpow.pop %v3668
  %v3670 = vadd.f32 %v3669, 1.0
  %v3671 = vrcp.pop %v3670
  %v3672 = vmul.f32 1.0, %v3671
  %vm3673 = vcmask 7168
  %3674 = vst.msk [vmem:[%s4] sm:$0xff] %vm3673, %v3672
  // Predicated region
  $region18: #{relation_net_forward.1} parent=0 // pred_check
    _
  $region19: #{relation_net_forward.1} parent=0 // pred_check_branch
    %3676 = sbr.rel (0) target = $region21
  $region20: #{relation_net_forward.1} parent=0 // pred_region
    _
  $region21: #{relation_net_forward.1} parent=0 // pred_fallthru
    _
  // Predicated region
  $region22: #{relation_net_forward.1} parent=0 // pred_check
    _
  $region23: #{relation_net_forward.1} parent=0 // pred_check_branch
    %3678 = sbr.rel (0) target = $region25
  $region24: #{relation_net_forward.1} parent=0 // pred_region
    _
  $region25: #{relation_net_forward.1} parent=0 // pred_fallthru
    _

</llo_original>
